<compile_context>
chip_gen: v5e
topology: v5e:2x2
jax: 0.10.0
libtpu: 0.0.40
codegen_flags: <defaults>
</compile_context>

<pallas_src>
import functools
import math

import jax
import jax.numpy as jnp
from jax.experimental import pallas as pl
from jax.experimental.pallas import tpu as pltpu


# --------------------------- fused forward kernel ---------------------------

def _fused_transformer_kernel(*refs, nhead, batch, seq, num_layers, eps):
    """Entire forward pass in one kernel invocation; weights resident in VMEM.

    Row layout of all (rows, E) activations: row = s_rev * batch + b, where
    s_rev = seq - 1 - s (sequence reversed), so the last sequence position
    lives in rows [0, batch).
    """
    n_layer_refs = 12 * num_layers
    x_ref, w_in_ref, b_in_ref = refs[0], refs[1], refs[2]
    layer_refs = refs[3:3 + n_layer_refs]
    w_out_ref, b_out_ref = refs[3 + n_layer_refs], refs[4 + n_layer_refs]
    o_ref = refs[-1]

    rows = seq * batch
    d_model = w_in_ref.shape[1]
    d_head = d_model // nhead
    scale = 1.0 / math.sqrt(d_head)

    def layer_norm(y, g, b):
        mu = jnp.mean(y, axis=-1, keepdims=True)
        var = jnp.mean((y - mu) ** 2, axis=-1, keepdims=True)
        return (y - mu) * jax.lax.rsqrt(var + eps) * g + b

    def attention_out_proj(q, k, v, wo, n_q):
        """softmax(q k^T / sqrt(dh)) v  followed by the w_o projection.

        q: (n_q, E) -- the first n_q rows; k, v: (rows, E).  Per-head outputs
        are folded straight into w_o (block matmul), so the concatenated
        multi-head tensor is never materialized.
        """
        q_batch = jax.lax.broadcasted_iota(jnp.int32, (n_q, rows), 0) % batch
        k_batch = jax.lax.broadcasted_iota(jnp.int32, (n_q, rows), 1) % batch
        same_batch = q_batch == k_batch
        acc = jnp.zeros((n_q, d_model), jnp.float32)
        for h in range(nhead):
            lo, hi = h * d_head, (h + 1) * d_head
            s = jax.lax.dot_general(
                q[:, lo:hi], k[:, lo:hi], (((1,), (1,)), ((), ())),
                preferred_element_type=jnp.float32) * scale            # (n_q, rows)
            s = jnp.where(same_batch, s, -1e30)
            s = s - jnp.max(s, axis=-1, keepdims=True)
            p = jnp.exp(s)
            p = p * pl.reciprocal(jnp.sum(p, axis=-1, keepdims=True), approx=True)
            o_h = jnp.dot(p, v[:, lo:hi], preferred_element_type=jnp.float32)
            acc = acc + jnp.dot(o_h, wo[lo:hi, :],
                                preferred_element_type=jnp.float32)
        return acc

    def encoder_layer(h2, lw, n_q):
        (wqkv, bqkv, wo, bo, g1, b1, wff1, bff1, wff2, bff2, g2, b2) = lw
        qkv = jnp.dot(h2, wqkv, preferred_element_type=jnp.float32) + bqkv
        q = qkv[0:n_q, 0:d_model]
        k = qkv[:, d_model:2 * d_model]
        v = qkv[:, 2 * d_model:3 * d_model]
        attn = attention_out_proj(q, k, v, wo, n_q) + bo
        h = layer_norm(h2[0:n_q, :] + attn, g1, b1)                    # norm1(x + sa(x))
        ff = jnp.dot(h, wff1, preferred_element_type=jnp.float32) + bff1
        ff = jnp.maximum(ff, 0.0)
        ff = jnp.dot(ff, wff2, preferred_element_type=jnp.float32) + bff2
        return layer_norm(h + ff, g2, b2)                              # norm2(x + ff(x))

    # linear_in
    h = jnp.dot(x_ref[...], w_in_ref[...],
                preferred_element_type=jnp.float32) + b_in_ref[...]    # (rows, E)

    # TODO(synk): dropout layers treated as identity (eval-mode semantics).
    for layer in range(num_layers):
        lw = tuple(r[...] for r in layer_refs[12 * layer:12 * (layer + 1)])
        # Last layer: only the final sequence position (rows [0, batch)) feeds
        # fc_out, so restrict queries / w_o / LayerNorm / FFN to those rows.
        n_q = batch if layer == num_layers - 1 else rows
        h = encoder_layer(h, lw, n_q)

    # fc_out folded into the same kernel (epilogue of the last layer).
    out = jnp.dot(h, w_out_ref[...],
                  preferred_element_type=jnp.float32) + b_out_ref[...]  # (batch, 1)
    o_ref[...] = out.astype(o_ref.dtype)


# ----------------------------- parameters -----------------------------

def init_params(key, input_size=8, d_model=128, nhead=4, num_layers=2, dff=2048):
    def nxt():
        nonlocal key
        key, sub = jax.random.split(key)
        return sub

    def w(shape):
        return (0.02 * jax.random.normal(nxt(), shape)).astype(jnp.float32)

    params = {
        "w_in": w((input_size, d_model)), "b_in": jnp.zeros((d_model,), jnp.float32),
        "w_out": w((d_model, 1)), "b_out": jnp.zeros((1,), jnp.float32),
        "layers": [],
    }
    for _ in range(num_layers):
        params["layers"].append({
            "w_qkv": w((d_model, 3 * d_model)), "b_qkv": jnp.zeros((3 * d_model,), jnp.float32),
            "w_o": w((d_model, d_model)), "b_o": jnp.zeros((d_model,), jnp.float32),
            "ln1_g": jnp.ones((d_model,), jnp.float32), "ln1_b": jnp.zeros((d_model,), jnp.float32),
            "w_ff1": w((d_model, dff)), "b_ff1": jnp.zeros((dff,), jnp.float32),
            "w_ff2": w((dff, d_model)), "b_ff2": jnp.zeros((d_model,), jnp.float32),
            "ln2_g": jnp.ones((d_model,), jnp.float32), "ln2_b": jnp.zeros((d_model,), jnp.float32),
        })
    return params


# ----------------------------- forward pass -----------------------------

def transformer_forward(x, params, nhead=4):
    B, S, I = x.shape
    E = params["w_in"].shape[1]
    num_layers = len(params["layers"])

    # (B, S, I) -> reversed-seq, seq-major, flattened to (S*B, I) so the final
    # sequence position occupies rows [0, B).  One tiny one-time XLA op.
    x_flat = jnp.flip(x, axis=1).transpose(1, 0, 2).reshape(S * B, I)

    args = [x_flat, params["w_in"], params["b_in"].reshape(1, E)]
    for lp in params["layers"]:
        args += [
            lp["w_qkv"], lp["b_qkv"].reshape(1, -1),
            lp["w_o"], lp["b_o"].reshape(1, -1),
            lp["ln1_g"].reshape(1, -1), lp["ln1_b"].reshape(1, -1),
            lp["w_ff1"], lp["b_ff1"].reshape(1, -1),
            lp["w_ff2"], lp["b_ff2"].reshape(1, -1),
            lp["ln2_g"].reshape(1, -1), lp["ln2_b"].reshape(1, -1),
        ]
    args += [params["w_out"], params["b_out"].reshape(1, -1)]

    kernel = functools.partial(
        _fused_transformer_kernel,
        nhead=nhead, batch=B, seq=S, num_layers=num_layers, eps=1e-5)

    vmem_spec = pl.BlockSpec(memory_space=pltpu.MemorySpace.VMEM)
    # TODO(synk): single-TensorCore kernel; a batch-parallel grid axis would be
    # needed to engage the second TC on v7x (workload is overhead-bound anyway).
    return pl.pallas_call(
        kernel,
        out_shape=jax.ShapeDtypeStruct((B, 1), x.dtype),
        in_specs=[vmem_spec] * len(args),
        out_specs=vmem_spec,
        compiler_params=pltpu.CompilerParams(vmem_limit_bytes=32 * 1024 * 1024),
    )(*args)


# ----------------------------- entry point -----------------------------

if __name__ == "__main__":
    key = jax.random.PRNGKey(0)
    pkey, xkey = jax.random.split(key)

    BATCH, SEQ, INPUT_SIZE = 2, 8, 8
    D_MODEL, NHEAD, NUM_LAYERS = 128, 4, 2

    params = init_params(pkey, input_size=INPUT_SIZE, d_model=D_MODEL,
                         nhead=NHEAD, num_layers=NUM_LAYERS)
    x = jax.random.normal(xkey, (BATCH, SEQ, INPUT_SIZE), dtype=jnp.float32)

    fwd = jax.jit(functools.partial(transformer_forward, nhead=NHEAD))
    out = fwd(x, params)
    out = jax.block_until_ready(out)
    assert out.shape == (BATCH, 1), out.shape
    print("KERNEL_OK")
</pallas_src>

<mosaic_0001>
module attributes {stable_mosaic.version = 11 : i64} {
  func.func @_fused_transformer_kernel(%arg0: memref<16x8xf32, #tpu.memory_space<vmem>>, %arg1: memref<8x128xf32, #tpu.memory_space<vmem>>, %arg2: memref<1x128xf32, #tpu.memory_space<vmem>>, %arg3: memref<128x384xf32, #tpu.memory_space<vmem>>, %arg4: memref<1x384xf32, #tpu.memory_space<vmem>>, %arg5: memref<128x128xf32, #tpu.memory_space<vmem>>, %arg6: memref<1x128xf32, #tpu.memory_space<vmem>>, %arg7: memref<1x128xf32, #tpu.memory_space<vmem>>, %arg8: memref<1x128xf32, #tpu.memory_space<vmem>>, %arg9: memref<128x2048xf32, #tpu.memory_space<vmem>>, %arg10: memref<1x2048xf32, #tpu.memory_space<vmem>>, %arg11: memref<2048x128xf32, #tpu.memory_space<vmem>>, %arg12: memref<1x128xf32, #tpu.memory_space<vmem>>, %arg13: memref<1x128xf32, #tpu.memory_space<vmem>>, %arg14: memref<1x128xf32, #tpu.memory_space<vmem>>, %arg15: memref<128x384xf32, #tpu.memory_space<vmem>>, %arg16: memref<1x384xf32, #tpu.memory_space<vmem>>, %arg17: memref<128x128xf32, #tpu.memory_space<vmem>>, %arg18: memref<1x128xf32, #tpu.memory_space<vmem>>, %arg19: memref<1x128xf32, #tpu.memory_space<vmem>>, %arg20: memref<1x128xf32, #tpu.memory_space<vmem>>, %arg21: memref<128x2048xf32, #tpu.memory_space<vmem>>, %arg22: memref<1x2048xf32, #tpu.memory_space<vmem>>, %arg23: memref<2048x128xf32, #tpu.memory_space<vmem>>, %arg24: memref<1x128xf32, #tpu.memory_space<vmem>>, %arg25: memref<1x128xf32, #tpu.memory_space<vmem>>, %arg26: memref<1x128xf32, #tpu.memory_space<vmem>>, %arg27: memref<128x1xf32, #tpu.memory_space<vmem>>, %arg28: memref<1x1xf32, #tpu.memory_space<vmem>>, %arg29: memref<2x1xf32, #tpu.memory_space<vmem>>) attributes {dimension_semantics = [], scalar_prefetch = 0 : i64, scratch_operands = 0 : i64, tpu.core_type = #tpu.core_type<tc>} {
    %c0 = arith.constant 0 : index
    %c0_0 = arith.constant 0 : index
    %0 = vector.load %arg0[%c0, %c0_0] : memref<16x8xf32, #tpu.memory_space<vmem>>, vector<16x8xf32>
    %c0_1 = arith.constant 0 : index
    %c0_2 = arith.constant 0 : index
    %1 = vector.load %arg1[%c0_1, %c0_2] : memref<8x128xf32, #tpu.memory_space<vmem>>, vector<8x128xf32>
    %cst = arith.constant dense<0.000000e+00> : vector<16x128xf32>
    %2 = tpu.matmul %0, %1, %cst {dimension_numbers = #tpu.dot_dimension_numbers<[1], [0], [0], [1], [0, 0, 1, 1], [], []>} : vector<16x8xf32>, vector<8x128xf32>, vector<16x128xf32> -> vector<16x128xf32>
    %c0_3 = arith.constant 0 : index
    %c0_4 = arith.constant 0 : index
    %3 = vector.load %arg2[%c0_3, %c0_4] : memref<1x128xf32, #tpu.memory_space<vmem>>, vector<1x128xf32>
    %4 = vector.broadcast %3 : vector<1x128xf32> to vector<16x128xf32>
    %5 = arith.addf %2, %4 : vector<16x128xf32>
    %c0_5 = arith.constant 0 : index
    %c0_6 = arith.constant 0 : index
    %6 = vector.load %arg3[%c0_5, %c0_6] : memref<128x384xf32, #tpu.memory_space<vmem>>, vector<128x384xf32>
    %c0_7 = arith.constant 0 : index
    %c0_8 = arith.constant 0 : index
    %7 = vector.load %arg4[%c0_7, %c0_8] : memref<1x384xf32, #tpu.memory_space<vmem>>, vector<1x384xf32>
    %c0_9 = arith.constant 0 : index
    %c0_10 = arith.constant 0 : index
    %8 = vector.load %arg5[%c0_9, %c0_10] : memref<128x128xf32, #tpu.memory_space<vmem>>, vector<128x128xf32>
    %c0_11 = arith.constant 0 : index
    %c0_12 = arith.constant 0 : index
    %9 = vector.load %arg6[%c0_11, %c0_12] : memref<1x128xf32, #tpu.memory_space<vmem>>, vector<1x128xf32>
    %c0_13 = arith.constant 0 : index
    %c0_14 = arith.constant 0 : index
    %10 = vector.load %arg7[%c0_13, %c0_14] : memref<1x128xf32, #tpu.memory_space<vmem>>, vector<1x128xf32>
    %c0_15 = arith.constant 0 : index
    %c0_16 = arith.constant 0 : index
    %11 = vector.load %arg8[%c0_15, %c0_16] : memref<1x128xf32, #tpu.memory_space<vmem>>, vector<1x128xf32>
    %c0_17 = arith.constant 0 : index
    %c0_18 = arith.constant 0 : index
    %12 = vector.load %arg9[%c0_17, %c0_18] : memref<128x2048xf32, #tpu.memory_space<vmem>>, vector<128x2048xf32>
    %c0_19 = arith.constant 0 : index
    %c0_20 = arith.constant 0 : index
    %13 = vector.load %arg10[%c0_19, %c0_20] : memref<1x2048xf32, #tpu.memory_space<vmem>>, vector<1x2048xf32>
    %c0_21 = arith.constant 0 : index
    %c0_22 = arith.constant 0 : index
    %14 = vector.load %arg11[%c0_21, %c0_22] : memref<2048x128xf32, #tpu.memory_space<vmem>>, vector<2048x128xf32>
    %c0_23 = arith.constant 0 : index
    %c0_24 = arith.constant 0 : index
    %15 = vector.load %arg12[%c0_23, %c0_24] : memref<1x128xf32, #tpu.memory_space<vmem>>, vector<1x128xf32>
    %c0_25 = arith.constant 0 : index
    %c0_26 = arith.constant 0 : index
    %16 = vector.load %arg13[%c0_25, %c0_26] : memref<1x128xf32, #tpu.memory_space<vmem>>, vector<1x128xf32>
    %c0_27 = arith.constant 0 : index
    %c0_28 = arith.constant 0 : index
    %17 = vector.load %arg14[%c0_27, %c0_28] : memref<1x128xf32, #tpu.memory_space<vmem>>, vector<1x128xf32>
    %cst_29 = arith.constant dense<0.000000e+00> : vector<16x384xf32>
    %18 = tpu.matmul %5, %6, %cst_29 {dimension_numbers = #tpu.dot_dimension_numbers<[1], [0], [0], [1], [0, 0, 1, 1], [], []>} : vector<16x128xf32>, vector<128x384xf32>, vector<16x384xf32> -> vector<16x384xf32>
    %19 = vector.broadcast %7 : vector<1x384xf32> to vector<16x384xf32>
    %20 = arith.addf %18, %19 : vector<16x384xf32>
    %21 = vector.extract_strided_slice %20 {offsets = [0, 0], sizes = [16, 128], strides = [1, 1]} : vector<16x384xf32> to vector<16x128xf32>
    %22 = vector.extract_strided_slice %20 {offsets = [0, 128], sizes = [16, 128], strides = [1, 1]} : vector<16x384xf32> to vector<16x128xf32>
    %23 = vector.extract_strided_slice %20 {offsets = [0, 256], sizes = [16, 128], strides = [1, 1]} : vector<16x384xf32> to vector<16x128xf32>
    %24 = tpu.iota {dimensions = array<i32: 0>} : vector<16x16xi32>
    %c2_i32 = arith.constant 2 : i32
    %c0_i32 = arith.constant 0 : i32
    %25 = arith.cmpi eq, %c2_i32, %c0_i32 : i32
    %c1_i32 = arith.constant 1 : i32
    %26 = arith.select %25, %c1_i32, %c2_i32 : i32
    %27 = vector.broadcast %26 : i32 to vector<16x16xi32>
    %28 = arith.remsi %24, %27 : vector<16x16xi32>
    %c0_i32_30 = arith.constant 0 : i32
    %29 = vector.broadcast %c0_i32_30 : i32 to vector<16x16xi32>
    %30 = arith.cmpi ne, %28, %29 : vector<16x16xi32>
    %c0_i32_31 = arith.constant 0 : i32
    %31 = vector.broadcast %c0_i32_31 : i32 to vector<16x16xi32>
    %32 = arith.cmpi slt, %28, %31 : vector<16x16xi32>
    %c0_i32_32 = arith.constant 0 : i32
    %33 = arith.cmpi slt, %26, %c0_i32_32 : i32
    %34 = vector.broadcast %33 : i1 to vector<16x16xi1>
    %35 = vector.broadcast %34 : vector<16x16xi1> to vector<16x16xi1>
    %36 = arith.xori %32, %35 : vector<16x16xi1>
    %37 = arith.andi %36, %30 : vector<16x16xi1>
    %38 = vector.broadcast %26 : i32 to vector<16x16xi32>
    %39 = arith.addi %28, %38 : vector<16x16xi32>
    %40 = arith.select %37, %39, %28 : vector<16x16xi1>, vector<16x16xi32>
    %41 = tpu.iota {dimensions = array<i32: 1>} : vector<16x16xi32>
    %c2_i32_33 = arith.constant 2 : i32
    %c0_i32_34 = arith.constant 0 : i32
    %42 = arith.cmpi eq, %c2_i32_33, %c0_i32_34 : i32
    %c1_i32_35 = arith.constant 1 : i32
    %43 = arith.select %42, %c1_i32_35, %c2_i32_33 : i32
    %44 = vector.broadcast %43 : i32 to vector<16x16xi32>
    %45 = arith.remsi %41, %44 : vector<16x16xi32>
    %c0_i32_36 = arith.constant 0 : i32
    %46 = vector.broadcast %c0_i32_36 : i32 to vector<16x16xi32>
    %47 = arith.cmpi ne, %45, %46 : vector<16x16xi32>
    %c0_i32_37 = arith.constant 0 : i32
    %48 = vector.broadcast %c0_i32_37 : i32 to vector<16x16xi32>
    %49 = arith.cmpi slt, %45, %48 : vector<16x16xi32>
    %c0_i32_38 = arith.constant 0 : i32
    %50 = arith.cmpi slt, %43, %c0_i32_38 : i32
    %51 = vector.broadcast %50 : i1 to vector<16x16xi1>
    %52 = vector.broadcast %51 : vector<16x16xi1> to vector<16x16xi1>
    %53 = arith.xori %49, %52 : vector<16x16xi1>
    %54 = arith.andi %53, %47 : vector<16x16xi1>
    %55 = vector.broadcast %43 : i32 to vector<16x16xi32>
    %56 = arith.addi %45, %55 : vector<16x16xi32>
    %57 = arith.select %54, %56, %45 : vector<16x16xi1>, vector<16x16xi32>
    %58 = arith.cmpi eq, %40, %57 : vector<16x16xi32>
    %cst_39 = arith.constant 0.000000e+00 : f32
    %59 = vector.broadcast %cst_39 : f32 to vector<16x128xf32>
    %60 = vector.extract_strided_slice %21 {offsets = [0, 0], sizes = [16, 32], strides = [1, 1]} : vector<16x128xf32> to vector<16x32xf32>
    %61 = vector.extract_strided_slice %22 {offsets = [0, 0], sizes = [16, 32], strides = [1, 1]} : vector<16x128xf32> to vector<16x32xf32>
    %cst_40 = arith.constant dense<0.000000e+00> : vector<16x16xf32>
    %62 = tpu.matmul %60, %61, %cst_40 {dimension_numbers = #tpu.dot_dimension_numbers<[1], [1], [0], [0], [0, 0, 1, 0], [], []>} : vector<16x32xf32>, vector<16x32xf32>, vector<16x16xf32> -> vector<16x16xf32>
    %cst_41 = arith.constant 0.176776692 : f32
    %63 = vector.broadcast %cst_41 : f32 to vector<16x16xf32>
    %64 = arith.mulf %62, %63 : vector<16x16xf32>
    %cst_42 = arith.constant -1.000000e+30 : f32
    %65 = vector.broadcast %cst_42 : f32 to vector<16x16xf32>
    %66 = arith.select %58, %64, %65 : vector<16x16xi1>, vector<16x16xf32>
    %cst_43 = arith.constant dense<0xFF800000> : vector<16xf32>
    %67 = vector.multi_reduction <maximumf>, %66, %cst_43 [1] : vector<16x16xf32> to vector<16xf32>
    %68 = vector.shape_cast %67 : vector<16xf32> to vector<16x1xf32>
    %69 = vector.broadcast %68 : vector<16x1xf32> to vector<16x16xf32>
    %70 = arith.subf %66, %69 : vector<16x16xf32>
    %71 = math.exp %70 : vector<16x16xf32>
    %cst_44 = arith.constant dense<0.000000e+00> : vector<16xf32>
    %72 = vector.multi_reduction <add>, %71, %cst_44 [1] : vector<16x16xf32> to vector<16xf32>
    %73 = vector.shape_cast %72 : vector<16xf32> to vector<16x1xf32>
    %74 = tpu.reciprocal %73 {approx = true} : vector<16x1xf32> -> vector<16x1xf32>
    %75 = vector.broadcast %74 : vector<16x1xf32> to vector<16x16xf32>
    %76 = arith.mulf %71, %75 : vector<16x16xf32>
    %77 = vector.extract_strided_slice %23 {offsets = [0, 0], sizes = [16, 32], strides = [1, 1]} : vector<16x128xf32> to vector<16x32xf32>
    %cst_45 = arith.constant dense<0.000000e+00> : vector<16x32xf32>
    %78 = tpu.matmul %76, %77, %cst_45 {dimension_numbers = #tpu.dot_dimension_numbers<[1], [0], [0], [1], [0, 0, 1, 1], [], []>} : vector<16x16xf32>, vector<16x32xf32>, vector<16x32xf32> -> vector<16x32xf32>
    %79 = vector.extract_strided_slice %8 {offsets = [0, 0], sizes = [32, 128], strides = [1, 1]} : vector<128x128xf32> to vector<32x128xf32>
    %cst_46 = arith.constant dense<0.000000e+00> : vector<16x128xf32>
    %80 = tpu.matmul %78, %79, %cst_46 {dimension_numbers = #tpu.dot_dimension_numbers<[1], [0], [0], [1], [0, 0, 1, 1], [], []>} : vector<16x32xf32>, vector<32x128xf32>, vector<16x128xf32> -> vector<16x128xf32>
    %81 = arith.addf %59, %80 : vector<16x128xf32>
    %82 = vector.extract_strided_slice %21 {offsets = [0, 32], sizes = [16, 32], strides = [1, 1]} : vector<16x128xf32> to vector<16x32xf32>
    %83 = vector.extract_strided_slice %22 {offsets = [0, 32], sizes = [16, 32], strides = [1, 1]} : vector<16x128xf32> to vector<16x32xf32>
    %cst_47 = arith.constant dense<0.000000e+00> : vector<16x16xf32>
    %84 = tpu.matmul %82, %83, %cst_47 {dimension_numbers = #tpu.dot_dimension_numbers<[1], [1], [0], [0], [0, 0, 1, 0], [], []>} : vector<16x32xf32>, vector<16x32xf32>, vector<16x16xf32> -> vector<16x16xf32>
    %cst_48 = arith.constant 0.176776692 : f32
    %85 = vector.broadcast %cst_48 : f32 to vector<16x16xf32>
    %86 = arith.mulf %84, %85 : vector<16x16xf32>
    %cst_49 = arith.constant -1.000000e+30 : f32
    %87 = vector.broadcast %cst_49 : f32 to vector<16x16xf32>
    %88 = arith.select %58, %86, %87 : vector<16x16xi1>, vector<16x16xf32>
    %cst_50 = arith.constant dense<0xFF800000> : vector<16xf32>
    %89 = vector.multi_reduction <maximumf>, %88, %cst_50 [1] : vector<16x16xf32> to vector<16xf32>
    %90 = vector.shape_cast %89 : vector<16xf32> to vector<16x1xf32>
    %91 = vector.broadcast %90 : vector<16x1xf32> to vector<16x16xf32>
    %92 = arith.subf %88, %91 : vector<16x16xf32>
    %93 = math.exp %92 : vector<16x16xf32>
    %cst_51 = arith.constant dense<0.000000e+00> : vector<16xf32>
    %94 = vector.multi_reduction <add>, %93, %cst_51 [1] : vector<16x16xf32> to vector<16xf32>
    %95 = vector.shape_cast %94 : vector<16xf32> to vector<16x1xf32>
    %96 = tpu.reciprocal %95 {approx = true} : vector<16x1xf32> -> vector<16x1xf32>
    %97 = vector.broadcast %96 : vector<16x1xf32> to vector<16x16xf32>
    %98 = arith.mulf %93, %97 : vector<16x16xf32>
    %99 = vector.extract_strided_slice %23 {offsets = [0, 32], sizes = [16, 32], strides = [1, 1]} : vector<16x128xf32> to vector<16x32xf32>
    %cst_52 = arith.constant dense<0.000000e+00> : vector<16x32xf32>
    %100 = tpu.matmul %98, %99, %cst_52 {dimension_numbers = #tpu.dot_dimension_numbers<[1], [0], [0], [1], [0, 0, 1, 1], [], []>} : vector<16x16xf32>, vector<16x32xf32>, vector<16x32xf32> -> vector<16x32xf32>
    %101 = vector.extract_strided_slice %8 {offsets = [32, 0], sizes = [32, 128], strides = [1, 1]} : vector<128x128xf32> to vector<32x128xf32>
    %cst_53 = arith.constant dense<0.000000e+00> : vector<16x128xf32>
    %102 = tpu.matmul %100, %101, %cst_53 {dimension_numbers = #tpu.dot_dimension_numbers<[1], [0], [0], [1], [0, 0, 1, 1], [], []>} : vector<16x32xf32>, vector<32x128xf32>, vector<16x128xf32> -> vector<16x128xf32>
    %103 = arith.addf %81, %102 : vector<16x128xf32>
    %104 = vector.extract_strided_slice %21 {offsets = [0, 64], sizes = [16, 32], strides = [1, 1]} : vector<16x128xf32> to vector<16x32xf32>
    %105 = vector.extract_strided_slice %22 {offsets = [0, 64], sizes = [16, 32], strides = [1, 1]} : vector<16x128xf32> to vector<16x32xf32>
    %cst_54 = arith.constant dense<0.000000e+00> : vector<16x16xf32>
    %106 = tpu.matmul %104, %105, %cst_54 {dimension_numbers = #tpu.dot_dimension_numbers<[1], [1], [0], [0], [0, 0, 1, 0], [], []>} : vector<16x32xf32>, vector<16x32xf32>, vector<16x16xf32> -> vector<16x16xf32>
    %cst_55 = arith.constant 0.176776692 : f32
    %107 = vector.broadcast %cst_55 : f32 to vector<16x16xf32>
    %108 = arith.mulf %106, %107 : vector<16x16xf32>
    %cst_56 = arith.constant -1.000000e+30 : f32
    %109 = vector.broadcast %cst_56 : f32 to vector<16x16xf32>
    %110 = arith.select %58, %108, %109 : vector<16x16xi1>, vector<16x16xf32>
    %cst_57 = arith.constant dense<0xFF800000> : vector<16xf32>
    %111 = vector.multi_reduction <maximumf>, %110, %cst_57 [1] : vector<16x16xf32> to vector<16xf32>
    %112 = vector.shape_cast %111 : vector<16xf32> to vector<16x1xf32>
    %113 = vector.broadcast %112 : vector<16x1xf32> to vector<16x16xf32>
    %114 = arith.subf %110, %113 : vector<16x16xf32>
    %115 = math.exp %114 : vector<16x16xf32>
    %cst_58 = arith.constant dense<0.000000e+00> : vector<16xf32>
    %116 = vector.multi_reduction <add>, %115, %cst_58 [1] : vector<16x16xf32> to vector<16xf32>
    %117 = vector.shape_cast %116 : vector<16xf32> to vector<16x1xf32>
    %118 = tpu.reciprocal %117 {approx = true} : vector<16x1xf32> -> vector<16x1xf32>
    %119 = vector.broadcast %118 : vector<16x1xf32> to vector<16x16xf32>
    %120 = arith.mulf %115, %119 : vector<16x16xf32>
    %121 = vector.extract_strided_slice %23 {offsets = [0, 64], sizes = [16, 32], strides = [1, 1]} : vector<16x128xf32> to vector<16x32xf32>
    %cst_59 = arith.constant dense<0.000000e+00> : vector<16x32xf32>
    %122 = tpu.matmul %120, %121, %cst_59 {dimension_numbers = #tpu.dot_dimension_numbers<[1], [0], [0], [1], [0, 0, 1, 1], [], []>} : vector<16x16xf32>, vector<16x32xf32>, vector<16x32xf32> -> vector<16x32xf32>
    %123 = vector.extract_strided_slice %8 {offsets = [64, 0], sizes = [32, 128], strides = [1, 1]} : vector<128x128xf32> to vector<32x128xf32>
    %cst_60 = arith.constant dense<0.000000e+00> : vector<16x128xf32>
    %124 = tpu.matmul %122, %123, %cst_60 {dimension_numbers = #tpu.dot_dimension_numbers<[1], [0], [0], [1], [0, 0, 1, 1], [], []>} : vector<16x32xf32>, vector<32x128xf32>, vector<16x128xf32> -> vector<16x128xf32>
    %125 = arith.addf %103, %124 : vector<16x128xf32>
    %126 = vector.extract_strided_slice %21 {offsets = [0, 96], sizes = [16, 32], strides = [1, 1]} : vector<16x128xf32> to vector<16x32xf32>
    %127 = vector.extract_strided_slice %22 {offsets = [0, 96], sizes = [16, 32], strides = [1, 1]} : vector<16x128xf32> to vector<16x32xf32>
    %cst_61 = arith.constant dense<0.000000e+00> : vector<16x16xf32>
    %128 = tpu.matmul %126, %127, %cst_61 {dimension_numbers = #tpu.dot_dimension_numbers<[1], [1], [0], [0], [0, 0, 1, 0], [], []>} : vector<16x32xf32>, vector<16x32xf32>, vector<16x16xf32> -> vector<16x16xf32>
    %cst_62 = arith.constant 0.176776692 : f32
    %129 = vector.broadcast %cst_62 : f32 to vector<16x16xf32>
    %130 = arith.mulf %128, %129 : vector<16x16xf32>
    %cst_63 = arith.constant -1.000000e+30 : f32
    %131 = vector.broadcast %cst_63 : f32 to vector<16x16xf32>
    %132 = arith.select %58, %130, %131 : vector<16x16xi1>, vector<16x16xf32>
    %cst_64 = arith.constant dense<0xFF800000> : vector<16xf32>
    %133 = vector.multi_reduction <maximumf>, %132, %cst_64 [1] : vector<16x16xf32> to vector<16xf32>
    %134 = vector.shape_cast %133 : vector<16xf32> to vector<16x1xf32>
    %135 = vector.broadcast %134 : vector<16x1xf32> to vector<16x16xf32>
    %136 = arith.subf %132, %135 : vector<16x16xf32>
    %137 = math.exp %136 : vector<16x16xf32>
    %cst_65 = arith.constant dense<0.000000e+00> : vector<16xf32>
    %138 = vector.multi_reduction <add>, %137, %cst_65 [1] : vector<16x16xf32> to vector<16xf32>
    %139 = vector.shape_cast %138 : vector<16xf32> to vector<16x1xf32>
    %140 = tpu.reciprocal %139 {approx = true} : vector<16x1xf32> -> vector<16x1xf32>
    %141 = vector.broadcast %140 : vector<16x1xf32> to vector<16x16xf32>
    %142 = arith.mulf %137, %141 : vector<16x16xf32>
    %143 = vector.extract_strided_slice %23 {offsets = [0, 96], sizes = [16, 32], strides = [1, 1]} : vector<16x128xf32> to vector<16x32xf32>
    %cst_66 = arith.constant dense<0.000000e+00> : vector<16x32xf32>
    %144 = tpu.matmul %142, %143, %cst_66 {dimension_numbers = #tpu.dot_dimension_numbers<[1], [0], [0], [1], [0, 0, 1, 1], [], []>} : vector<16x16xf32>, vector<16x32xf32>, vector<16x32xf32> -> vector<16x32xf32>
    %145 = vector.extract_strided_slice %8 {offsets = [96, 0], sizes = [32, 128], strides = [1, 1]} : vector<128x128xf32> to vector<32x128xf32>
    %cst_67 = arith.constant dense<0.000000e+00> : vector<16x128xf32>
    %146 = tpu.matmul %144, %145, %cst_67 {dimension_numbers = #tpu.dot_dimension_numbers<[1], [0], [0], [1], [0, 0, 1, 1], [], []>} : vector<16x32xf32>, vector<32x128xf32>, vector<16x128xf32> -> vector<16x128xf32>
    %147 = arith.addf %125, %146 : vector<16x128xf32>
    %148 = vector.broadcast %9 : vector<1x128xf32> to vector<16x128xf32>
    %149 = arith.addf %147, %148 : vector<16x128xf32>
    %150 = arith.addf %5, %149 : vector<16x128xf32>
    %cst_68 = arith.constant dense<0.000000e+00> : vector<16xf32>
    %151 = vector.multi_reduction <add>, %150, %cst_68 [1] : vector<16x128xf32> to vector<16xf32>
    %152 = vector.shape_cast %151 : vector<16xf32> to vector<16x1xf32>
    %cst_69 = arith.constant 1.280000e+02 : f32
    %153 = vector.broadcast %cst_69 : f32 to vector<16x1xf32>
    %154 = arith.divf %152, %153 : vector<16x1xf32>
    %155 = vector.broadcast %154 : vector<16x1xf32> to vector<16x128xf32>
    %156 = arith.subf %150, %155 : vector<16x128xf32>
    %157 = arith.mulf %156, %156 : vector<16x128xf32>
    %cst_70 = arith.constant dense<0.000000e+00> : vector<16xf32>
    %158 = vector.multi_reduction <add>, %157, %cst_70 [1] : vector<16x128xf32> to vector<16xf32>
    %159 = vector.shape_cast %158 : vector<16xf32> to vector<16x1xf32>
    %cst_71 = arith.constant 1.280000e+02 : f32
    %160 = vector.broadcast %cst_71 : f32 to vector<16x1xf32>
    %161 = arith.divf %159, %160 : vector<16x1xf32>
    %162 = vector.broadcast %154 : vector<16x1xf32> to vector<16x128xf32>
    %163 = arith.subf %150, %162 : vector<16x128xf32>
    %cst_72 = arith.constant 9.99999974E-6 : f32
    %164 = vector.broadcast %cst_72 : f32 to vector<16x1xf32>
    %165 = arith.addf %161, %164 : vector<16x1xf32>
    %166 = math.rsqrt %165 : vector<16x1xf32>
    %167 = vector.broadcast %166 : vector<16x1xf32> to vector<16x128xf32>
    %168 = arith.mulf %163, %167 : vector<16x128xf32>
    %169 = vector.broadcast %10 : vector<1x128xf32> to vector<16x128xf32>
    %170 = arith.mulf %168, %169 : vector<16x128xf32>
    %171 = vector.broadcast %11 : vector<1x128xf32> to vector<16x128xf32>
    %172 = arith.addf %170, %171 : vector<16x128xf32>
    %cst_73 = arith.constant dense<0.000000e+00> : vector<16x2048xf32>
    %173 = tpu.matmul %172, %12, %cst_73 {dimension_numbers = #tpu.dot_dimension_numbers<[1], [0], [0], [1], [0, 0, 1, 1], [], []>} : vector<16x128xf32>, vector<128x2048xf32>, vector<16x2048xf32> -> vector<16x2048xf32>
    %174 = vector.broadcast %13 : vector<1x2048xf32> to vector<16x2048xf32>
    %175 = arith.addf %173, %174 : vector<16x2048xf32>
    %cst_74 = arith.constant 0.000000e+00 : f32
    %176 = vector.broadcast %cst_74 : f32 to vector<16x2048xf32>
    %177 = arith.maximumf %175, %176 : vector<16x2048xf32>
    %cst_75 = arith.constant dense<0.000000e+00> : vector<16x128xf32>
    %178 = tpu.matmul %177, %14, %cst_75 {dimension_numbers = #tpu.dot_dimension_numbers<[1], [0], [0], [1], [0, 0, 1, 1], [], []>} : vector<16x2048xf32>, vector<2048x128xf32>, vector<16x128xf32> -> vector<16x128xf32>
    %179 = vector.broadcast %15 : vector<1x128xf32> to vector<16x128xf32>
    %180 = arith.addf %178, %179 : vector<16x128xf32>
    %181 = arith.addf %172, %180 : vector<16x128xf32>
    %cst_76 = arith.constant dense<0.000000e+00> : vector<16xf32>
    %182 = vector.multi_reduction <add>, %181, %cst_76 [1] : vector<16x128xf32> to vector<16xf32>
    %183 = vector.shape_cast %182 : vector<16xf32> to vector<16x1xf32>
    %cst_77 = arith.constant 1.280000e+02 : f32
    %184 = vector.broadcast %cst_77 : f32 to vector<16x1xf32>
    %185 = arith.divf %183, %184 : vector<16x1xf32>
    %186 = vector.broadcast %185 : vector<16x1xf32> to vector<16x128xf32>
    %187 = arith.subf %181, %186 : vector<16x128xf32>
    %188 = arith.mulf %187, %187 : vector<16x128xf32>
    %cst_78 = arith.constant dense<0.000000e+00> : vector<16xf32>
    %189 = vector.multi_reduction <add>, %188, %cst_78 [1] : vector<16x128xf32> to vector<16xf32>
    %190 = vector.shape_cast %189 : vector<16xf32> to vector<16x1xf32>
    %cst_79 = arith.constant 1.280000e+02 : f32
    %191 = vector.broadcast %cst_79 : f32 to vector<16x1xf32>
    %192 = arith.divf %190, %191 : vector<16x1xf32>
    %193 = vector.broadcast %185 : vector<16x1xf32> to vector<16x128xf32>
    %194 = arith.subf %181, %193 : vector<16x128xf32>
    %cst_80 = arith.constant 9.99999974E-6 : f32
    %195 = vector.broadcast %cst_80 : f32 to vector<16x1xf32>
    %196 = arith.addf %192, %195 : vector<16x1xf32>
    %197 = math.rsqrt %196 : vector<16x1xf32>
    %198 = vector.broadcast %197 : vector<16x1xf32> to vector<16x128xf32>
    %199 = arith.mulf %194, %198 : vector<16x128xf32>
    %200 = vector.broadcast %16 : vector<1x128xf32> to vector<16x128xf32>
    %201 = arith.mulf %199, %200 : vector<16x128xf32>
    %202 = vector.broadcast %17 : vector<1x128xf32> to vector<16x128xf32>
    %203 = arith.addf %201, %202 : vector<16x128xf32>
    %c0_81 = arith.constant 0 : index
    %c0_82 = arith.constant 0 : index
    %204 = vector.load %arg15[%c0_81, %c0_82] : memref<128x384xf32, #tpu.memory_space<vmem>>, vector<128x384xf32>
    %c0_83 = arith.constant 0 : index
    %c0_84 = arith.constant 0 : index
    %205 = vector.load %arg16[%c0_83, %c0_84] : memref<1x384xf32, #tpu.memory_space<vmem>>, vector<1x384xf32>
    %c0_85 = arith.constant 0 : index
    %c0_86 = arith.constant 0 : index
    %206 = vector.load %arg17[%c0_85, %c0_86] : memref<128x128xf32, #tpu.memory_space<vmem>>, vector<128x128xf32>
    %c0_87 = arith.constant 0 : index
    %c0_88 = arith.constant 0 : index
    %207 = vector.load %arg18[%c0_87, %c0_88] : memref<1x128xf32, #tpu.memory_space<vmem>>, vector<1x128xf32>
    %c0_89 = arith.constant 0 : index
    %c0_90 = arith.constant 0 : index
    %208 = vector.load %arg19[%c0_89, %c0_90] : memref<1x128xf32, #tpu.memory_space<vmem>>, vector<1x128xf32>
    %c0_91 = arith.constant 0 : index
    %c0_92 = arith.constant 0 : index
    %209 = vector.load %arg20[%c0_91, %c0_92] : memref<1x128xf32, #tpu.memory_space<vmem>>, vector<1x128xf32>
    %c0_93 = arith.constant 0 : index
    %c0_94 = arith.constant 0 : index
    %210 = vector.load %arg21[%c0_93, %c0_94] : memref<128x2048xf32, #tpu.memory_space<vmem>>, vector<128x2048xf32>
    %c0_95 = arith.constant 0 : index
    %c0_96 = arith.constant 0 : index
    %211 = vector.load %arg22[%c0_95, %c0_96] : memref<1x2048xf32, #tpu.memory_space<vmem>>, vector<1x2048xf32>
    %c0_97 = arith.constant 0 : index
    %c0_98 = arith.constant 0 : index
    %212 = vector.load %arg23[%c0_97, %c0_98] : memref<2048x128xf32, #tpu.memory_space<vmem>>, vector<2048x128xf32>
    %c0_99 = arith.constant 0 : index
    %c0_100 = arith.constant 0 : index
    %213 = vector.load %arg24[%c0_99, %c0_100] : memref<1x128xf32, #tpu.memory_space<vmem>>, vector<1x128xf32>
    %c0_101 = arith.constant 0 : index
    %c0_102 = arith.constant 0 : index
    %214 = vector.load %arg25[%c0_101, %c0_102] : memref<1x128xf32, #tpu.memory_space<vmem>>, vector<1x128xf32>
    %c0_103 = arith.constant 0 : index
    %c0_104 = arith.constant 0 : index
    %215 = vector.load %arg26[%c0_103, %c0_104] : memref<1x128xf32, #tpu.memory_space<vmem>>, vector<1x128xf32>
    %cst_105 = arith.constant dense<0.000000e+00> : vector<16x384xf32>
    %216 = tpu.matmul %203, %204, %cst_105 {dimension_numbers = #tpu.dot_dimension_numbers<[1], [0], [0], [1], [0, 0, 1, 1], [], []>} : vector<16x128xf32>, vector<128x384xf32>, vector<16x384xf32> -> vector<16x384xf32>
    %217 = vector.broadcast %205 : vector<1x384xf32> to vector<16x384xf32>
    %218 = arith.addf %216, %217 : vector<16x384xf32>
    %219 = vector.extract_strided_slice %218 {offsets = [0, 0], sizes = [2, 128], strides = [1, 1]} : vector<16x384xf32> to vector<2x128xf32>
    %220 = vector.extract_strided_slice %218 {offsets = [0, 128], sizes = [16, 128], strides = [1, 1]} : vector<16x384xf32> to vector<16x128xf32>
    %221 = vector.extract_strided_slice %218 {offsets = [0, 256], sizes = [16, 128], strides = [1, 1]} : vector<16x384xf32> to vector<16x128xf32>
    %222 = tpu.iota {dimensions = array<i32: 0>} : vector<2x16xi32>
    %c2_i32_106 = arith.constant 2 : i32
    %c0_i32_107 = arith.constant 0 : i32
    %223 = arith.cmpi eq, %c2_i32_106, %c0_i32_107 : i32
    %c1_i32_108 = arith.constant 1 : i32
    %224 = arith.select %223, %c1_i32_108, %c2_i32_106 : i32
    %225 = vector.broadcast %224 : i32 to vector<2x16xi32>
    %226 = arith.remsi %222, %225 : vector<2x16xi32>
    %c0_i32_109 = arith.constant 0 : i32
    %227 = vector.broadcast %c0_i32_109 : i32 to vector<2x16xi32>
    %228 = arith.cmpi ne, %226, %227 : vector<2x16xi32>
    %c0_i32_110 = arith.constant 0 : i32
    %229 = vector.broadcast %c0_i32_110 : i32 to vector<2x16xi32>
    %230 = arith.cmpi slt, %226, %229 : vector<2x16xi32>
    %c0_i32_111 = arith.constant 0 : i32
    %231 = arith.cmpi slt, %224, %c0_i32_111 : i32
    %232 = vector.broadcast %231 : i1 to vector<2x16xi1>
    %233 = vector.broadcast %232 : vector<2x16xi1> to vector<2x16xi1>
    %234 = arith.xori %230, %233 : vector<2x16xi1>
    %235 = arith.andi %234, %228 : vector<2x16xi1>
    %236 = vector.broadcast %224 : i32 to vector<2x16xi32>
    %237 = arith.addi %226, %236 : vector<2x16xi32>
    %238 = arith.select %235, %237, %226 : vector<2x16xi1>, vector<2x16xi32>
    %239 = tpu.iota {dimensions = array<i32: 1>} : vector<2x16xi32>
    %c2_i32_112 = arith.constant 2 : i32
    %c0_i32_113 = arith.constant 0 : i32
    %240 = arith.cmpi eq, %c2_i32_112, %c0_i32_113 : i32
    %c1_i32_114 = arith.constant 1 : i32
    %241 = arith.select %240, %c1_i32_114, %c2_i32_112 : i32
    %242 = vector.broadcast %241 : i32 to vector<2x16xi32>
    %243 = arith.remsi %239, %242 : vector<2x16xi32>
    %c0_i32_115 = arith.constant 0 : i32
    %244 = vector.broadcast %c0_i32_115 : i32 to vector<2x16xi32>
    %245 = arith.cmpi ne, %243, %244 : vector<2x16xi32>
    %c0_i32_116 = arith.constant 0 : i32
    %246 = vector.broadcast %c0_i32_116 : i32 to vector<2x16xi32>
    %247 = arith.cmpi slt, %243, %246 : vector<2x16xi32>
    %c0_i32_117 = arith.constant 0 : i32
    %248 = arith.cmpi slt, %241, %c0_i32_117 : i32
    %249 = vector.broadcast %248 : i1 to vector<2x16xi1>
    %250 = vector.broadcast %249 : vector<2x16xi1> to vector<2x16xi1>
    %251 = arith.xori %247, %250 : vector<2x16xi1>
    %252 = arith.andi %251, %245 : vector<2x16xi1>
    %253 = vector.broadcast %241 : i32 to vector<2x16xi32>
    %254 = arith.addi %243, %253 : vector<2x16xi32>
    %255 = arith.select %252, %254, %243 : vector<2x16xi1>, vector<2x16xi32>
    %256 = arith.cmpi eq, %238, %255 : vector<2x16xi32>
    %cst_118 = arith.constant 0.000000e+00 : f32
    %257 = vector.broadcast %cst_118 : f32 to vector<2x128xf32>
    %258 = vector.extract_strided_slice %219 {offsets = [0, 0], sizes = [2, 32], strides = [1, 1]} : vector<2x128xf32> to vector<2x32xf32>
    %259 = vector.extract_strided_slice %220 {offsets = [0, 0], sizes = [16, 32], strides = [1, 1]} : vector<16x128xf32> to vector<16x32xf32>
    %cst_119 = arith.constant dense<0.000000e+00> : vector<2x16xf32>
    %260 = tpu.matmul %258, %259, %cst_119 {dimension_numbers = #tpu.dot_dimension_numbers<[1], [1], [0], [0], [0, 0, 1, 0], [], []>} : vector<2x32xf32>, vector<16x32xf32>, vector<2x16xf32> -> vector<2x16xf32>
    %cst_120 = arith.constant 0.176776692 : f32
    %261 = vector.broadcast %cst_120 : f32 to vector<2x16xf32>
    %262 = arith.mulf %260, %261 : vector<2x16xf32>
    %cst_121 = arith.constant -1.000000e+30 : f32
    %263 = vector.broadcast %cst_121 : f32 to vector<2x16xf32>
    %264 = arith.select %256, %262, %263 : vector<2x16xi1>, vector<2x16xf32>
    %cst_122 = arith.constant dense<0xFF800000> : vector<2xf32>
    %265 = vector.multi_reduction <maximumf>, %264, %cst_122 [1] : vector<2x16xf32> to vector<2xf32>
    %266 = vector.shape_cast %265 : vector<2xf32> to vector<2x1xf32>
    %267 = vector.broadcast %266 : vector<2x1xf32> to vector<2x16xf32>
    %268 = arith.subf %264, %267 : vector<2x16xf32>
    %269 = math.exp %268 : vector<2x16xf32>
    %cst_123 = arith.constant dense<0.000000e+00> : vector<2xf32>
    %270 = vector.multi_reduction <add>, %269, %cst_123 [1] : vector<2x16xf32> to vector<2xf32>
    %271 = vector.shape_cast %270 : vector<2xf32> to vector<2x1xf32>
    %272 = tpu.reciprocal %271 {approx = true} : vector<2x1xf32> -> vector<2x1xf32>
    %273 = vector.broadcast %272 : vector<2x1xf32> to vector<2x16xf32>
    %274 = arith.mulf %269, %273 : vector<2x16xf32>
    %275 = vector.extract_strided_slice %221 {offsets = [0, 0], sizes = [16, 32], strides = [1, 1]} : vector<16x128xf32> to vector<16x32xf32>
    %cst_124 = arith.constant dense<0.000000e+00> : vector<2x32xf32>
    %276 = tpu.matmul %274, %275, %cst_124 {dimension_numbers = #tpu.dot_dimension_numbers<[1], [0], [0], [1], [0, 0, 1, 1], [], []>} : vector<2x16xf32>, vector<16x32xf32>, vector<2x32xf32> -> vector<2x32xf32>
    %277 = vector.extract_strided_slice %206 {offsets = [0, 0], sizes = [32, 128], strides = [1, 1]} : vector<128x128xf32> to vector<32x128xf32>
    %cst_125 = arith.constant dense<0.000000e+00> : vector<2x128xf32>
    %278 = tpu.matmul %276, %277, %cst_125 {dimension_numbers = #tpu.dot_dimension_numbers<[1], [0], [0], [1], [0, 0, 1, 1], [], []>} : vector<2x32xf32>, vector<32x128xf32>, vector<2x128xf32> -> vector<2x128xf32>
    %279 = arith.addf %257, %278 : vector<2x128xf32>
    %280 = vector.extract_strided_slice %219 {offsets = [0, 32], sizes = [2, 32], strides = [1, 1]} : vector<2x128xf32> to vector<2x32xf32>
    %281 = vector.extract_strided_slice %220 {offsets = [0, 32], sizes = [16, 32], strides = [1, 1]} : vector<16x128xf32> to vector<16x32xf32>
    %cst_126 = arith.constant dense<0.000000e+00> : vector<2x16xf32>
    %282 = tpu.matmul %280, %281, %cst_126 {dimension_numbers = #tpu.dot_dimension_numbers<[1], [1], [0], [0], [0, 0, 1, 0], [], []>} : vector<2x32xf32>, vector<16x32xf32>, vector<2x16xf32> -> vector<2x16xf32>
    %cst_127 = arith.constant 0.176776692 : f32
    %283 = vector.broadcast %cst_127 : f32 to vector<2x16xf32>
    %284 = arith.mulf %282, %283 : vector<2x16xf32>
    %cst_128 = arith.constant -1.000000e+30 : f32
    %285 = vector.broadcast %cst_128 : f32 to vector<2x16xf32>
    %286 = arith.select %256, %284, %285 : vector<2x16xi1>, vector<2x16xf32>
    %cst_129 = arith.constant dense<0xFF800000> : vector<2xf32>
    %287 = vector.multi_reduction <maximumf>, %286, %cst_129 [1] : vector<2x16xf32> to vector<2xf32>
    %288 = vector.shape_cast %287 : vector<2xf32> to vector<2x1xf32>
    %289 = vector.broadcast %288 : vector<2x1xf32> to vector<2x16xf32>
    %290 = arith.subf %286, %289 : vector<2x16xf32>
    %291 = math.exp %290 : vector<2x16xf32>
    %cst_130 = arith.constant dense<0.000000e+00> : vector<2xf32>
    %292 = vector.multi_reduction <add>, %291, %cst_130 [1] : vector<2x16xf32> to vector<2xf32>
    %293 = vector.shape_cast %292 : vector<2xf32> to vector<2x1xf32>
    %294 = tpu.reciprocal %293 {approx = true} : vector<2x1xf32> -> vector<2x1xf32>
    %295 = vector.broadcast %294 : vector<2x1xf32> to vector<2x16xf32>
    %296 = arith.mulf %291, %295 : vector<2x16xf32>
    %297 = vector.extract_strided_slice %221 {offsets = [0, 32], sizes = [16, 32], strides = [1, 1]} : vector<16x128xf32> to vector<16x32xf32>
    %cst_131 = arith.constant dense<0.000000e+00> : vector<2x32xf32>
    %298 = tpu.matmul %296, %297, %cst_131 {dimension_numbers = #tpu.dot_dimension_numbers<[1], [0], [0], [1], [0, 0, 1, 1], [], []>} : vector<2x16xf32>, vector<16x32xf32>, vector<2x32xf32> -> vector<2x32xf32>
    %299 = vector.extract_strided_slice %206 {offsets = [32, 0], sizes = [32, 128], strides = [1, 1]} : vector<128x128xf32> to vector<32x128xf32>
    %cst_132 = arith.constant dense<0.000000e+00> : vector<2x128xf32>
    %300 = tpu.matmul %298, %299, %cst_132 {dimension_numbers = #tpu.dot_dimension_numbers<[1], [0], [0], [1], [0, 0, 1, 1], [], []>} : vector<2x32xf32>, vector<32x128xf32>, vector<2x128xf32> -> vector<2x128xf32>
    %301 = arith.addf %279, %300 : vector<2x128xf32>
    %302 = vector.extract_strided_slice %219 {offsets = [0, 64], sizes = [2, 32], strides = [1, 1]} : vector<2x128xf32> to vector<2x32xf32>
    %303 = vector.extract_strided_slice %220 {offsets = [0, 64], sizes = [16, 32], strides = [1, 1]} : vector<16x128xf32> to vector<16x32xf32>
    %cst_133 = arith.constant dense<0.000000e+00> : vector<2x16xf32>
    %304 = tpu.matmul %302, %303, %cst_133 {dimension_numbers = #tpu.dot_dimension_numbers<[1], [1], [0], [0], [0, 0, 1, 0], [], []>} : vector<2x32xf32>, vector<16x32xf32>, vector<2x16xf32> -> vector<2x16xf32>
    %cst_134 = arith.constant 0.176776692 : f32
    %305 = vector.broadcast %cst_134 : f32 to vector<2x16xf32>
    %306 = arith.mulf %304, %305 : vector<2x16xf32>
    %cst_135 = arith.constant -1.000000e+30 : f32
    %307 = vector.broadcast %cst_135 : f32 to vector<2x16xf32>
    %308 = arith.select %256, %306, %307 : vector<2x16xi1>, vector<2x16xf32>
    %cst_136 = arith.constant dense<0xFF800000> : vector<2xf32>
    %309 = vector.multi_reduction <maximumf>, %308, %cst_136 [1] : vector<2x16xf32> to vector<2xf32>
    %310 = vector.shape_cast %309 : vector<2xf32> to vector<2x1xf32>
    %311 = vector.broadcast %310 : vector<2x1xf32> to vector<2x16xf32>
    %312 = arith.subf %308, %311 : vector<2x16xf32>
    %313 = math.exp %312 : vector<2x16xf32>
    %cst_137 = arith.constant dense<0.000000e+00> : vector<2xf32>
    %314 = vector.multi_reduction <add>, %313, %cst_137 [1] : vector<2x16xf32> to vector<2xf32>
    %315 = vector.shape_cast %314 : vector<2xf32> to vector<2x1xf32>
    %316 = tpu.reciprocal %315 {approx = true} : vector<2x1xf32> -> vector<2x1xf32>
    %317 = vector.broadcast %316 : vector<2x1xf32> to vector<2x16xf32>
    %318 = arith.mulf %313, %317 : vector<2x16xf32>
    %319 = vector.extract_strided_slice %221 {offsets = [0, 64], sizes = [16, 32], strides = [1, 1]} : vector<16x128xf32> to vector<16x32xf32>
    %cst_138 = arith.constant dense<0.000000e+00> : vector<2x32xf32>
    %320 = tpu.matmul %318, %319, %cst_138 {dimension_numbers = #tpu.dot_dimension_numbers<[1], [0], [0], [1], [0, 0, 1, 1], [], []>} : vector<2x16xf32>, vector<16x32xf32>, vector<2x32xf32> -> vector<2x32xf32>
    %321 = vector.extract_strided_slice %206 {offsets = [64, 0], sizes = [32, 128], strides = [1, 1]} : vector<128x128xf32> to vector<32x128xf32>
    %cst_139 = arith.constant dense<0.000000e+00> : vector<2x128xf32>
    %322 = tpu.matmul %320, %321, %cst_139 {dimension_numbers = #tpu.dot_dimension_numbers<[1], [0], [0], [1], [0, 0, 1, 1], [], []>} : vector<2x32xf32>, vector<32x128xf32>, vector<2x128xf32> -> vector<2x128xf32>
    %323 = arith.addf %301, %322 : vector<2x128xf32>
    %324 = vector.extract_strided_slice %219 {offsets = [0, 96], sizes = [2, 32], strides = [1, 1]} : vector<2x128xf32> to vector<2x32xf32>
    %325 = vector.extract_strided_slice %220 {offsets = [0, 96], sizes = [16, 32], strides = [1, 1]} : vector<16x128xf32> to vector<16x32xf32>
    %cst_140 = arith.constant dense<0.000000e+00> : vector<2x16xf32>
    %326 = tpu.matmul %324, %325, %cst_140 {dimension_numbers = #tpu.dot_dimension_numbers<[1], [1], [0], [0], [0, 0, 1, 0], [], []>} : vector<2x32xf32>, vector<16x32xf32>, vector<2x16xf32> -> vector<2x16xf32>
    %cst_141 = arith.constant 0.176776692 : f32
    %327 = vector.broadcast %cst_141 : f32 to vector<2x16xf32>
    %328 = arith.mulf %326, %327 : vector<2x16xf32>
    %cst_142 = arith.constant -1.000000e+30 : f32
    %329 = vector.broadcast %cst_142 : f32 to vector<2x16xf32>
    %330 = arith.select %256, %328, %329 : vector<2x16xi1>, vector<2x16xf32>
    %cst_143 = arith.constant dense<0xFF800000> : vector<2xf32>
    %331 = vector.multi_reduction <maximumf>, %330, %cst_143 [1] : vector<2x16xf32> to vector<2xf32>
    %332 = vector.shape_cast %331 : vector<2xf32> to vector<2x1xf32>
    %333 = vector.broadcast %332 : vector<2x1xf32> to vector<2x16xf32>
    %334 = arith.subf %330, %333 : vector<2x16xf32>
    %335 = math.exp %334 : vector<2x16xf32>
    %cst_144 = arith.constant dense<0.000000e+00> : vector<2xf32>
    %336 = vector.multi_reduction <add>, %335, %cst_144 [1] : vector<2x16xf32> to vector<2xf32>
    %337 = vector.shape_cast %336 : vector<2xf32> to vector<2x1xf32>
    %338 = tpu.reciprocal %337 {approx = true} : vector<2x1xf32> -> vector<2x1xf32>
    %339 = vector.broadcast %338 : vector<2x1xf32> to vector<2x16xf32>
    %340 = arith.mulf %335, %339 : vector<2x16xf32>
    %341 = vector.extract_strided_slice %221 {offsets = [0, 96], sizes = [16, 32], strides = [1, 1]} : vector<16x128xf32> to vector<16x32xf32>
    %cst_145 = arith.constant dense<0.000000e+00> : vector<2x32xf32>
    %342 = tpu.matmul %340, %341, %cst_145 {dimension_numbers = #tpu.dot_dimension_numbers<[1], [0], [0], [1], [0, 0, 1, 1], [], []>} : vector<2x16xf32>, vector<16x32xf32>, vector<2x32xf32> -> vector<2x32xf32>
    %343 = vector.extract_strided_slice %206 {offsets = [96, 0], sizes = [32, 128], strides = [1, 1]} : vector<128x128xf32> to vector<32x128xf32>
    %cst_146 = arith.constant dense<0.000000e+00> : vector<2x128xf32>
    %344 = tpu.matmul %342, %343, %cst_146 {dimension_numbers = #tpu.dot_dimension_numbers<[1], [0], [0], [1], [0, 0, 1, 1], [], []>} : vector<2x32xf32>, vector<32x128xf32>, vector<2x128xf32> -> vector<2x128xf32>
    %345 = arith.addf %323, %344 : vector<2x128xf32>
    %346 = vector.broadcast %207 : vector<1x128xf32> to vector<2x128xf32>
    %347 = arith.addf %345, %346 : vector<2x128xf32>
    %348 = vector.extract_strided_slice %203 {offsets = [0, 0], sizes = [2, 128], strides = [1, 1]} : vector<16x128xf32> to vector<2x128xf32>
    %349 = arith.addf %348, %347 : vector<2x128xf32>
    %cst_147 = arith.constant dense<0.000000e+00> : vector<2xf32>
    %350 = vector.multi_reduction <add>, %349, %cst_147 [1] : vector<2x128xf32> to vector<2xf32>
    %351 = vector.shape_cast %350 : vector<2xf32> to vector<2x1xf32>
    %cst_148 = arith.constant 1.280000e+02 : f32
    %352 = vector.broadcast %cst_148 : f32 to vector<2x1xf32>
    %353 = arith.divf %351, %352 : vector<2x1xf32>
    %354 = vector.broadcast %353 : vector<2x1xf32> to vector<2x128xf32>
    %355 = arith.subf %349, %354 : vector<2x128xf32>
    %356 = arith.mulf %355, %355 : vector<2x128xf32>
    %cst_149 = arith.constant dense<0.000000e+00> : vector<2xf32>
    %357 = vector.multi_reduction <add>, %356, %cst_149 [1] : vector<2x128xf32> to vector<2xf32>
    %358 = vector.shape_cast %357 : vector<2xf32> to vector<2x1xf32>
    %cst_150 = arith.constant 1.280000e+02 : f32
    %359 = vector.broadcast %cst_150 : f32 to vector<2x1xf32>
    %360 = arith.divf %358, %359 : vector<2x1xf32>
    %361 = vector.broadcast %353 : vector<2x1xf32> to vector<2x128xf32>
    %362 = arith.subf %349, %361 : vector<2x128xf32>
    %cst_151 = arith.constant 9.99999974E-6 : f32
    %363 = vector.broadcast %cst_151 : f32 to vector<2x1xf32>
    %364 = arith.addf %360, %363 : vector<2x1xf32>
    %365 = math.rsqrt %364 : vector<2x1xf32>
    %366 = vector.broadcast %365 : vector<2x1xf32> to vector<2x128xf32>
    %367 = arith.mulf %362, %366 : vector<2x128xf32>
    %368 = vector.broadcast %208 : vector<1x128xf32> to vector<2x128xf32>
    %369 = arith.mulf %367, %368 : vector<2x128xf32>
    %370 = vector.broadcast %209 : vector<1x128xf32> to vector<2x128xf32>
    %371 = arith.addf %369, %370 : vector<2x128xf32>
    %cst_152 = arith.constant dense<0.000000e+00> : vector<2x2048xf32>
    %372 = tpu.matmul %371, %210, %cst_152 {dimension_numbers = #tpu.dot_dimension_numbers<[1], [0], [0], [1], [0, 0, 1, 1], [], []>} : vector<2x128xf32>, vector<128x2048xf32>, vector<2x2048xf32> -> vector<2x2048xf32>
    %373 = vector.broadcast %211 : vector<1x2048xf32> to vector<2x2048xf32>
    %374 = arith.addf %372, %373 : vector<2x2048xf32>
    %cst_153 = arith.constant 0.000000e+00 : f32
    %375 = vector.broadcast %cst_153 : f32 to vector<2x2048xf32>
    %376 = arith.maximumf %374, %375 : vector<2x2048xf32>
    %cst_154 = arith.constant dense<0.000000e+00> : vector<2x128xf32>
    %377 = tpu.matmul %376, %212, %cst_154 {dimension_numbers = #tpu.dot_dimension_numbers<[1], [0], [0], [1], [0, 0, 1, 1], [], []>} : vector<2x2048xf32>, vector<2048x128xf32>, vector<2x128xf32> -> vector<2x128xf32>
    %378 = vector.broadcast %213 : vector<1x128xf32> to vector<2x128xf32>
    %379 = arith.addf %377, %378 : vector<2x128xf32>
    %380 = arith.addf %371, %379 : vector<2x128xf32>
    %cst_155 = arith.constant dense<0.000000e+00> : vector<2xf32>
    %381 = vector.multi_reduction <add>, %380, %cst_155 [1] : vector<2x128xf32> to vector<2xf32>
    %382 = vector.shape_cast %381 : vector<2xf32> to vector<2x1xf32>
    %cst_156 = arith.constant 1.280000e+02 : f32
    %383 = vector.broadcast %cst_156 : f32 to vector<2x1xf32>
    %384 = arith.divf %382, %383 : vector<2x1xf32>
    %385 = vector.broadcast %384 : vector<2x1xf32> to vector<2x128xf32>
    %386 = arith.subf %380, %385 : vector<2x128xf32>
    %387 = arith.mulf %386, %386 : vector<2x128xf32>
    %cst_157 = arith.constant dense<0.000000e+00> : vector<2xf32>
    %388 = vector.multi_reduction <add>, %387, %cst_157 [1] : vector<2x128xf32> to vector<2xf32>
    %389 = vector.shape_cast %388 : vector<2xf32> to vector<2x1xf32>
    %cst_158 = arith.constant 1.280000e+02 : f32
    %390 = vector.broadcast %cst_158 : f32 to vector<2x1xf32>
    %391 = arith.divf %389, %390 : vector<2x1xf32>
    %392 = vector.broadcast %384 : vector<2x1xf32> to vector<2x128xf32>
    %393 = arith.subf %380, %392 : vector<2x128xf32>
    %cst_159 = arith.constant 9.99999974E-6 : f32
    %394 = vector.broadcast %cst_159 : f32 to vector<2x1xf32>
    %395 = arith.addf %391, %394 : vector<2x1xf32>
    %396 = math.rsqrt %395 : vector<2x1xf32>
    %397 = vector.broadcast %396 : vector<2x1xf32> to vector<2x128xf32>
    %398 = arith.mulf %393, %397 : vector<2x128xf32>
    %399 = vector.broadcast %214 : vector<1x128xf32> to vector<2x128xf32>
    %400 = arith.mulf %398, %399 : vector<2x128xf32>
    %401 = vector.broadcast %215 : vector<1x128xf32> to vector<2x128xf32>
    %402 = arith.addf %400, %401 : vector<2x128xf32>
    %c0_160 = arith.constant 0 : index
    %c0_161 = arith.constant 0 : index
    %403 = vector.load %arg27[%c0_160, %c0_161] : memref<128x1xf32, #tpu.memory_space<vmem>>, vector<128x1xf32>
    %cst_162 = arith.constant dense<0.000000e+00> : vector<2x1xf32>
    %404 = tpu.matmul %402, %403, %cst_162 {dimension_numbers = #tpu.dot_dimension_numbers<[1], [0], [0], [1], [0, 0, 1, 1], [], []>} : vector<2x128xf32>, vector<128x1xf32>, vector<2x1xf32> -> vector<2x1xf32>
    %c0_163 = arith.constant 0 : index
    %c0_164 = arith.constant 0 : index
    %405 = vector.load %arg28[%c0_163, %c0_164] : memref<1x1xf32, #tpu.memory_space<vmem>>, vector<1x1xf32>
    %406 = vector.broadcast %405 : vector<1x1xf32> to vector<2x1xf32>
    %407 = arith.addf %404, %406 : vector<2x1xf32>
    %c0_165 = arith.constant 0 : index
    %c0_166 = arith.constant 0 : index
    %408 = vector.load %arg29[%c0_165, %c0_166] : memref<2x1xf32, #tpu.memory_space<vmem>>, vector<2x1xf32>
    tpu.vector_store %arg29[%c0_165, %c0_166], %407 {strides = array<i32>} : memref<2x1xf32, #tpu.memory_space<vmem>>, vector<2x1xf32>,
    return
  }
}

</mosaic_0001>

<llo_original>
// kernel: transformer_forward.1
$region0: #{transformer_forward.1}
  #allocation0 [shape = 'u32[]', space=smem, size = 0x4, offset = 0x4, fixed_abs, tag = 'smem constant byte address 0x4 - core index']
  #allocation1 [shape = 'u32[72,128]{1,0:T(1,128)}', space=vmem, size = 0x9000, scoped, tag = 'internal scratch']
  #allocation2 [shape = 'f32[1,1]{1,0:T(1,128)S(1)}', space=vmem, size = 0x200, scoped, tag = 'scoped memory for transformer_forward.1']
  %s0 = inlined_call_operand.smem [shape: u32[30], index: -1, kind: input, shape index: {}]
  %s1 = sld [smem:[%s0]]
  %s2 = scalar_lea.smem %s0, 1
  %s3 = sld [smem:[%s2]]
  %s4 = scalar_lea.smem %s0, 2
  %s5 = sld [smem:[%s4]]
  %s6 = scalar_lea.smem %s0, 3
  %s7 = sld [smem:[%s6]]
  %s8 = scalar_lea.smem %s0, 4
  %s9 = sld [smem:[%s8]]
  %s10 = scalar_lea.smem %s0, 5
  %s11 = sld [smem:[%s10]]
  %s12 = scalar_lea.smem %s0, 6
  %s13 = sld [smem:[%s12]]
  %s14 = scalar_lea.smem %s0, 7
  %s15 = sld [smem:[%s14]]
  %s16 = scalar_lea.smem %s0, 8
  %s17 = sld [smem:[%s16]]
  %s18 = scalar_lea.smem %s0, 9
  %s19 = sld [smem:[%s18]]
  %s20 = scalar_lea.smem %s0, 10
  %s21 = sld [smem:[%s20]]
  %s22 = scalar_lea.smem %s0, 11
  %s23 = sld [smem:[%s22]]
  %s24 = scalar_lea.smem %s0, 12
  %s25 = sld [smem:[%s24]]
  %s26 = scalar_lea.smem %s0, 13
  %s27 = sld [smem:[%s26]]
  %s28 = scalar_lea.smem %s0, 14
  %s29 = sld [smem:[%s28]]
  %s30 = scalar_lea.smem %s0, 15
  %s31 = sld [smem:[%s30]]
  %s32 = scalar_lea.smem %s0, 16
  %s33 = sld [smem:[%s32]]
  %s34 = scalar_lea.smem %s0, 17
  %s35 = sld [smem:[%s34]]
  %s36 = scalar_lea.smem %s0, 18
  %s37 = sld [smem:[%s36]]
  %s38 = scalar_lea.smem %s0, 19
  %s39 = sld [smem:[%s38]]
  %s40 = scalar_lea.smem %s0, 20
  %s41 = sld [smem:[%s40]]
  %s42 = scalar_lea.smem %s0, 21
  %s43 = sld [smem:[%s42]]
  %s44 = scalar_lea.smem %s0, 22
  %s45 = sld [smem:[%s44]]
  %s46 = scalar_lea.smem %s0, 23
  %s47 = sld [smem:[%s46]]
  %s48 = scalar_lea.smem %s0, 24
  %s49 = sld [smem:[%s48]]
  %s50 = scalar_lea.smem %s0, 25
  %s51 = sld [smem:[%s50]]
  %s52 = scalar_lea.smem %s0, 26
  %s53 = sld [smem:[%s52]]
  %s54 = scalar_lea.smem %s0, 27
  %s55 = sld [smem:[%s54]]
  %s56 = scalar_lea.smem %s0, 28
  %s57 = sld [smem:[%s56]]
  %s58 = scalar_lea.smem %s0, 29
  %s59 = sld [smem:[%s58]]
  %s60 = sld [smem:[#allocation0]]
  $region154: #{transformer_forward.1} parent=0
    _
  %s62 = ssub.s32 1, %s60
  %s63 = scalar_select 0, %s62, %s60
  %v64 = vstv %s57
  %65 = vst [vmem:[#allocation2] sm:$0x1] %v64
  $region1: #{transformer_forward.1} parent=0
    #allocation3 [shape = 'u8[196608]{0}', space=vmem, size = 0x30000, scoped, tag = 'input window, operand 3, single buffered']
    #allocation4 [shape = 's32[1]{0}', space=sflag, size = 0x4, scoped, tag = 'scoped memory for transformer_forward.1']
    #allocation5 [shape = 'u8[1048576]{0}', space=vmem, size = 0x100000, scoped, tag = 'input window, operand 9, single buffered']
    #allocation6 [shape = 's32[1]{0}', space=sflag, size = 0x4, scoped, tag = 'scoped memory for transformer_forward.1']
    #allocation7 [shape = 'u8[1048576]{0}', space=vmem, size = 0x100000, scoped, tag = 'input window, operand 11, single buffered']
    #allocation8 [shape = 'u8[196608]{0}', space=vmem, size = 0x30000, scoped, tag = 'input window, operand 15, single buffered']
    #allocation9 [shape = 's32[1]{0}', space=sflag, size = 0x4, scoped, tag = 'scoped memory for transformer_forward.1']
    #allocation10 [shape = 'u8[65536]{0}', space=vmem, size = 0x10000, scoped, tag = 'input window, operand 17, single buffered']
    #allocation11 [shape = 'u8[1048576]{0}', space=vmem, size = 0x100000, scoped, tag = 'input window, operand 21, single buffered']
    #allocation12 [shape = 's32[1]{0}', space=sflag, size = 0x4, scoped, tag = 'scoped memory for transformer_forward.1']
    #allocation13 [shape = 'u8[1048576]{0}', space=vmem, size = 0x100000, scoped, tag = 'input window, operand 23, single buffered']
    %66 = vsyncpa [#allocation4], 0
    %67 = vsyncpa [#allocation6], 0
    %68 = vsyncpa [#allocation9], 0
    %69 = vsyncpa [#allocation12], 0
    // Predicated region
    $region2: #{transformer_forward.1} parent=1 // pred_check
      _
    $region3: #{transformer_forward.1} parent=1 // pred_check_branch
      %71 = sbr.rel (0) target = $region5
    $region4: #{transformer_forward.1} parent=1 // pred_region
      _
    $region5: #{transformer_forward.1} parent=1 // pred_fallthru
      _
    // Predicated region
    $region6: #{transformer_forward.1} parent=1 // pred_check
      _
    $region7: #{transformer_forward.1} parent=1 // pred_check_branch
      %73 = sbr.rel (0) target = $region9
    $region8: #{transformer_forward.1} parent=1 // pred_region
      _
    $region9: #{transformer_forward.1} parent=1 // pred_fallthru
      _
    // Predicated region
    $region10: #{transformer_forward.1} parent=1 // pred_check
      _
    $region11: #{transformer_forward.1} parent=1 // pred_check_branch
      %75 = sbr.rel (0) target = $region13
    $region12: #{transformer_forward.1} parent=1 // pred_region
      _
    $region13: #{transformer_forward.1} parent=1 // pred_fallthru
      _
    // Predicated region
    $region14: #{transformer_forward.1} parent=1 // pred_check
      _
    $region15: #{transformer_forward.1} parent=1 // pred_check_branch
      %77 = sbr.rel (0) target = $region17
    $region16: #{transformer_forward.1} parent=1 // pred_region
      %79 = vsyncadd [#allocation4], 0
      %s80 = sshll.u32 %s7, 4
      %s81 = int_to_ptr.hbm [resolvable:$true] %s80
      %s82 = sshll.u32 [#allocation3], 4
      %s83 = int_to_ptr.vmem [resolvable:$true] %s82
      %88 = dma.hbm_to_vmem [thread:$0]  %s81, 6144, %s83, [#allocation4], 384, 384, 24
    $region17: #{transformer_forward.1} parent=1 // pred_fallthru
      _
    // Predicated region
    $region18: #{transformer_forward.1} parent=1 // pred_check
      _
    $region19: #{transformer_forward.1} parent=1 // pred_check_branch
      %90 = sbr.rel (0) target = $region21
    $region20: #{transformer_forward.1} parent=1 // pred_region
      _
    $region21: #{transformer_forward.1} parent=1 // pred_fallthru
      _
    // Predicated region
    $region22: #{transformer_forward.1} parent=1 // pred_check
      _
    $region23: #{transformer_forward.1} parent=1 // pred_check_branch
      %92 = sbr.rel (0) target = $region25
    $region24: #{transformer_forward.1} parent=1 // pred_region
      _
    $region25: #{transformer_forward.1} parent=1 // pred_fallthru
      _
    // Predicated region
    $region26: #{transformer_forward.1} parent=1 // pred_check
      _
    $region27: #{transformer_forward.1} parent=1 // pred_check_branch
      %94 = sbr.rel (0) target = $region29
    $region28: #{transformer_forward.1} parent=1 // pred_region
      _
    $region29: #{transformer_forward.1} parent=1 // pred_fallthru
      _
    // Predicated region
    $region30: #{transformer_forward.1} parent=1 // pred_check
      _
    $region31: #{transformer_forward.1} parent=1 // pred_check_branch
      %96 = sbr.rel (0) target = $region33
    $region32: #{transformer_forward.1} parent=1 // pred_region
      _
    $region33: #{transformer_forward.1} parent=1 // pred_fallthru
      _
    // Predicated region
    $region34: #{transformer_forward.1} parent=1 // pred_check
      _
    $region35: #{transformer_forward.1} parent=1 // pred_check_branch
      %98 = sbr.rel (0) target = $region37
    $region36: #{transformer_forward.1} parent=1 // pred_region
      _
    $region37: #{transformer_forward.1} parent=1 // pred_fallthru
      _
    // Predicated region
    $region38: #{transformer_forward.1} parent=1 // pred_check
      _
    $region39: #{transformer_forward.1} parent=1 // pred_check_branch
      %100 = sbr.rel (0) target = $region41
    $region40: #{transformer_forward.1} parent=1 // pred_region
      %102 = vsyncadd [#allocation6], 0
      %s103 = sshll.u32 %s19, 4
      %s104 = int_to_ptr.hbm [resolvable:$true] %s103
      %s105 = sshll.u32 [#allocation5], 4
      %s106 = int_to_ptr.vmem [resolvable:$true] %s105
      %111 = dma.hbm_to_vmem [thread:$0]  %s104, 32768, %s106, [#allocation6], 2048, 2048, 128
    $region41: #{transformer_forward.1} parent=1 // pred_fallthru
      _
    // Predicated region
    $region42: #{transformer_forward.1} parent=1 // pred_check
      _
    $region43: #{transformer_forward.1} parent=1 // pred_check_branch
      %113 = sbr.rel (0) target = $region45
    $region44: #{transformer_forward.1} parent=1 // pred_region
      _
    $region45: #{transformer_forward.1} parent=1 // pred_fallthru
      _
    // Predicated region
    $region46: #{transformer_forward.1} parent=1 // pred_check
      _
    $region47: #{transformer_forward.1} parent=1 // pred_check_branch
      %115 = sbr.rel (0) target = $region49
    $region48: #{transformer_forward.1} parent=1 // pred_region
      %117 = vsyncadd [#allocation6], 0
      %s118 = sshll.u32 %s23, 4
      %s119 = int_to_ptr.hbm [resolvable:$true] %s118
      %s120 = sshll.u32 [#allocation7], 4
      %s121 = int_to_ptr.vmem [resolvable:$true] %s120
      %126 = dma.hbm_to_vmem [thread:$0]  %s119, 32768, %s121, [#allocation6], 128, 128, 8
    $region49: #{transformer_forward.1} parent=1 // pred_fallthru
      _
    // Predicated region
    $region50: #{transformer_forward.1} parent=1 // pred_check
      _
    $region51: #{transformer_forward.1} parent=1 // pred_check_branch
      %128 = sbr.rel (0) target = $region53
    $region52: #{transformer_forward.1} parent=1 // pred_region
      _
    $region53: #{transformer_forward.1} parent=1 // pred_fallthru
      _
    // Predicated region
    $region54: #{transformer_forward.1} parent=1 // pred_check
      _
    $region55: #{transformer_forward.1} parent=1 // pred_check_branch
      %130 = sbr.rel (0) target = $region57
    $region56: #{transformer_forward.1} parent=1 // pred_region
      _
    $region57: #{transformer_forward.1} parent=1 // pred_fallthru
      _
    // Predicated region
    $region58: #{transformer_forward.1} parent=1 // pred_check
      _
    $region59: #{transformer_forward.1} parent=1 // pred_check_branch
      %132 = sbr.rel (0) target = $region61
    $region60: #{transformer_forward.1} parent=1 // pred_region
      _
    $region61: #{transformer_forward.1} parent=1 // pred_fallthru
      _
    // Predicated region
    $region62: #{transformer_forward.1} parent=1 // pred_check
      _
    $region63: #{transformer_forward.1} parent=1 // pred_check_branch
      %134 = sbr.rel (0) target = $region65
    $region64: #{transformer_forward.1} parent=1 // pred_region
      %136 = vsyncadd [#allocation9], 0
      %s137 = sshll.u32 %s31, 4
      %s138 = int_to_ptr.hbm [resolvable:$true] %s137
      %s139 = sshll.u32 [#allocation8], 4
      %s140 = int_to_ptr.vmem [resolvable:$true] %s139
      %145 = dma.hbm_to_vmem [thread:$0]  %s138, 6144, %s140, [#allocation9], 384, 384, 24
    $region65: #{transformer_forward.1} parent=1 // pred_fallthru
      _
    // Predicated region
    $region66: #{transformer_forward.1} parent=1 // pred_check
      _
    $region67: #{transformer_forward.1} parent=1 // pred_check_branch
      %147 = sbr.rel (0) target = $region69
    $region68: #{transformer_forward.1} parent=1 // pred_region
      _
    $region69: #{transformer_forward.1} parent=1 // pred_fallthru
      _
    // Predicated region
    $region70: #{transformer_forward.1} parent=1 // pred_check
      _
    $region71: #{transformer_forward.1} parent=1 // pred_check_branch
      %149 = sbr.rel (0) target = $region73
    $region72: #{transformer_forward.1} parent=1 // pred_region
      %151 = vsyncadd [#allocation9], 0
      %s152 = sshll.u32 %s35, 4
      %s153 = int_to_ptr.hbm [resolvable:$true] %s152
      %s154 = sshll.u32 [#allocation10], 4
      %s155 = int_to_ptr.vmem [resolvable:$true] %s154
      %160 = dma.hbm_to_vmem [thread:$0]  %s153, 2048, %s155, [#allocation9], 128, 128, 8
    $region73: #{transformer_forward.1} parent=1 // pred_fallthru
      _
    // Predicated region
    $region74: #{transformer_forward.1} parent=1 // pred_check
      _
    $region75: #{transformer_forward.1} parent=1 // pred_check_branch
      %162 = sbr.rel (0) target = $region77
    $region76: #{transformer_forward.1} parent=1 // pred_region
      _
    $region77: #{transformer_forward.1} parent=1 // pred_fallthru
      _
    // Predicated region
    $region78: #{transformer_forward.1} parent=1 // pred_check
      _
    $region79: #{transformer_forward.1} parent=1 // pred_check_branch
      %164 = sbr.rel (0) target = $region81
    $region80: #{transformer_forward.1} parent=1 // pred_region
      _
    $region81: #{transformer_forward.1} parent=1 // pred_fallthru
      _
    // Predicated region
    $region82: #{transformer_forward.1} parent=1 // pred_check
      _
    $region83: #{transformer_forward.1} parent=1 // pred_check_branch
      %166 = sbr.rel (0) target = $region85
    $region84: #{transformer_forward.1} parent=1 // pred_region
      _
    $region85: #{transformer_forward.1} parent=1 // pred_fallthru
      _
    // Predicated region
    $region86: #{transformer_forward.1} parent=1 // pred_check
      _
    $region87: #{transformer_forward.1} parent=1 // pred_check_branch
      %168 = sbr.rel (0) target = $region89
    $region88: #{transformer_forward.1} parent=1 // pred_region
      %170 = vsyncadd [#allocation12], 0
      %s171 = sshll.u32 %s43, 4
      %s172 = int_to_ptr.hbm [resolvable:$true] %s171
      %s173 = sshll.u32 [#allocation11], 4
      %s174 = int_to_ptr.vmem [resolvable:$true] %s173
      %179 = dma.hbm_to_vmem [thread:$0]  %s172, 32768, %s174, [#allocation12], 2048, 2048, 128
    $region89: #{transformer_forward.1} parent=1 // pred_fallthru
      _
    // Predicated region
    $region90: #{transformer_forward.1} parent=1 // pred_check
      _
    $region91: #{transformer_forward.1} parent=1 // pred_check_branch
      %181 = sbr.rel (0) target = $region93
    $region92: #{transformer_forward.1} parent=1 // pred_region
      _
    $region93: #{transformer_forward.1} parent=1 // pred_fallthru
      _
    // Predicated region
    $region94: #{transformer_forward.1} parent=1 // pred_check
      _
    $region95: #{transformer_forward.1} parent=1 // pred_check_branch
      %183 = sbr.rel (0) target = $region97
    $region96: #{transformer_forward.1} parent=1 // pred_region
      %185 = vsyncadd [#allocation12], 0
      %s186 = sshll.u32 %s47, 4
      %s187 = int_to_ptr.hbm [resolvable:$true] %s186
      %s188 = sshll.u32 [#allocation13], 4
      %s189 = int_to_ptr.vmem [resolvable:$true] %s188
      %194 = dma.hbm_to_vmem [thread:$0]  %s187, 32768, %s189, [#allocation12], 128, 128, 8
    $region97: #{transformer_forward.1} parent=1 // pred_fallthru
      _
    // Predicated region
    $region98: #{transformer_forward.1} parent=1 // pred_check
      _
    $region99: #{transformer_forward.1} parent=1 // pred_check_branch
      %196 = sbr.rel (0) target = $region101
    $region100: #{transformer_forward.1} parent=1 // pred_region
      _
    $region101: #{transformer_forward.1} parent=1 // pred_fallthru
      _
    // Predicated region
    $region102: #{transformer_forward.1} parent=1 // pred_check
      _
    $region103: #{transformer_forward.1} parent=1 // pred_check_branch
      %198 = sbr.rel (0) target = $region105
    $region104: #{transformer_forward.1} parent=1 // pred_region
      _
    $region105: #{transformer_forward.1} parent=1 // pred_fallthru
      _
    // Predicated region
    $region106: #{transformer_forward.1} parent=1 // pred_check
      _
    $region107: #{transformer_forward.1} parent=1 // pred_check_branch
      %200 = sbr.rel (0) target = $region109
    $region108: #{transformer_forward.1} parent=1 // pred_region
      _
    $region109: #{transformer_forward.1} parent=1 // pred_fallthru
      _
    // Predicated region
    $region110: #{transformer_forward.1} parent=1 // pred_check
      _
    $region111: #{transformer_forward.1} parent=1 // pred_check_branch
      %202 = sbr.rel (0) target = $region113
    $region112: #{transformer_forward.1} parent=1 // pred_region
      _
    $region113: #{transformer_forward.1} parent=1 // pred_fallthru
      _
    // Predicated region
    $region114: #{transformer_forward.1} parent=1 // pred_check
      _
    $region115: #{transformer_forward.1} parent=1 // pred_check_branch
      %204 = sbr.rel (0) target = $region117
    $region116: #{transformer_forward.1} parent=1 // pred_region
      _
    $region117: #{transformer_forward.1} parent=1 // pred_fallthru
      _
    // Predicated region
    $region118: #{transformer_forward.1} parent=1 // pred_check
      _
    $region119: #{transformer_forward.1} parent=1 // pred_check_branch
      %206 = sbr.rel (0) target = $region121
    $region120: #{transformer_forward.1} parent=1 // pred_region
      %208 = dma.done [#allocation4], 6144
    $region121: #{transformer_forward.1} parent=1 // pred_fallthru
      _
    // Predicated region
    $region122: #{transformer_forward.1} parent=1 // pred_check
      _
    $region123: #{transformer_forward.1} parent=1 // pred_check_branch
      %210 = sbr.rel (0) target = $region125
    $region124: #{transformer_forward.1} parent=1 // pred_region
      %212 = dma.done [#allocation6], 32768
    $region125: #{transformer_forward.1} parent=1 // pred_fallthru
      _
    // Predicated region
    $region126: #{transformer_forward.1} parent=1 // pred_check
      _
    $region127: #{transformer_forward.1} parent=1 // pred_check_branch
      %214 = sbr.rel (0) target = $region129
    $region128: #{transformer_forward.1} parent=1 // pred_region
      %216 = dma.done [#allocation6], 32768
    $region129: #{transformer_forward.1} parent=1 // pred_fallthru
      _
    // Predicated region
    $region130: #{transformer_forward.1} parent=1 // pred_check
      _
    $region131: #{transformer_forward.1} parent=1 // pred_check_branch
      %218 = sbr.rel (0) target = $region133
    $region132: #{transformer_forward.1} parent=1 // pred_region
      %220 = dma.done [#allocation9], 6144
    $region133: #{transformer_forward.1} parent=1 // pred_fallthru
      _
    // Predicated region
    $region134: #{transformer_forward.1} parent=1 // pred_check
      _
    $region135: #{transformer_forward.1} parent=1 // pred_check_branch
      %222 = sbr.rel (0) target = $region137
    $region136: #{transformer_forward.1} parent=1 // pred_region
      %224 = dma.done [#allocation9], 2048
    $region137: #{transformer_forward.1} parent=1 // pred_fallthru
      _
    // Predicated region
    $region138: #{transformer_forward.1} parent=1 // pred_check
      _
    $region139: #{transformer_forward.1} parent=1 // pred_check_branch
      %226 = sbr.rel (0) target = $region141
    $region140: #{transformer_forward.1} parent=1 // pred_region
      %228 = dma.done [#allocation12], 32768
    $region141: #{transformer_forward.1} parent=1 // pred_fallthru
      _
    // Predicated region
    $region142: #{transformer_forward.1} parent=1 // pred_check
      _
    $region143: #{transformer_forward.1} parent=1 // pred_check_branch
      %230 = sbr.rel (0) target = $region145
    $region144: #{transformer_forward.1} parent=1 // pred_region
      %232 = dma.done [#allocation12], 32768
    $region145: #{transformer_forward.1} parent=1 // pred_fallthru
      _
    %v233 = vld [vmem:[%s1] sm:$0xff]
    %v234 = vld [vmem:[%s1 + $0x8] sm:$0xff]
    %v235 = vld [vmem:[%s3] sm:$0xff]
    %v236 = vld [vmem:[%s5] sm:$0x1]
    %v238 = vperm.slane %v236, 0
    %vm240 = vcmask 64512
    %v242 = vsel %vm240, %v233, 0
    %v245 = vsel %vm240, %v234, 0
    %247 = vmatpush.msra.mxu0 0.0
    %248 = vmatpush.msra.mxu0 0.0
    %249 = vmatpush.msra.mxu0 0.0
    %250 = vmatpush.msra.mxu0 0.0
    %251 = vmatpush.msra.mxu0 0.0
    %252 = vmatpush.msra.mxu0 0.0
    %253 = vmatpush.msra.mxu0 0.0
    %254 = vmatpush.msra.mxu0 0.0
    %255 = vmatpush.msra.mxu0 0.0
    %256 = vmatpush.msra.mxu0 0.0
    %257 = vmatpush.msra.mxu0 0.0
    %258 = vmatpush.msra.mxu0 0.0
    %259 = vmatpush.msra.mxu0 0.0
    %260 = vmatpush.msra.mxu0 0.0
    %261 = vmatpush.msra.mxu0 0.0
    %262 = vmatpush.msra.mxu0 %v235
    %263 = vmatmul.f32.gmra.mxu0 %v242
    %v264 = vpop.f32.mrf.mxu0
    %v265 = vadd.f32 %v238, %v264
    %266 = vmatmul.f32.gmra.mxu0 %v245
    %v267 = vpop.f32.mrf.mxu0
    %v268 = vadd.f32 %v238, %v267
    %269 = vdwg.mxu0
    %v270 = vld [vmem:[#allocation3] sm:$0xff]
    %v271 = vld [vmem:[#allocation3 + $0x8] sm:$0xff]
    %v272 = vld [vmem:[#allocation3 + $0x10] sm:$0xff]
    %v273 = vld [vmem:[#allocation3 + $0x18] sm:$0xff]
    %v274 = vld [vmem:[#allocation3 + $0x20] sm:$0xff]
    %v275 = vld [vmem:[#allocation3 + $0x28] sm:$0xff]
    %v276 = vld [vmem:[#allocation3 + $0x30] sm:$0xff]
    %v277 = vld [vmem:[#allocation3 + $0x38] sm:$0xff]
    %v278 = vld [vmem:[#allocation3 + $0x40] sm:$0xff]
    %v279 = vld [vmem:[#allocation3 + $0x48] sm:$0xff]
    %v280 = vld [vmem:[#allocation3 + $0x50] sm:$0xff]
    %v281 = vld [vmem:[#allocation3 + $0x58] sm:$0xff]
    %v282 = vld [vmem:[#allocation3 + $0x60] sm:$0xff]
    %v283 = vld [vmem:[#allocation3 + $0x68] sm:$0xff]
    %v284 = vld [vmem:[#allocation3 + $0x70] sm:$0xff]
    %v285 = vld [vmem:[#allocation3 + $0x78] sm:$0xff]
    %v286 = vld [vmem:[#allocation3 + $0x80] sm:$0xff]
    %v287 = vld [vmem:[#allocation3 + $0x88] sm:$0xff]
    %v288 = vld [vmem:[#allocation3 + $0x90] sm:$0xff]
    %v289 = vld [vmem:[#allocation3 + $0x98] sm:$0xff]
    %v290 = vld [vmem:[#allocation3 + $0xa0] sm:$0xff]
    %v291 = vld [vmem:[#allocation3 + $0xa8] sm:$0xff]
    %v292 = vld [vmem:[#allocation3 + $0xb0] sm:$0xff]
    %v293 = vld [vmem:[#allocation3 + $0xb8] sm:$0xff]
    %v294 = vld [vmem:[#allocation3 + $0xc0] sm:$0xff]
    %v295 = vld [vmem:[#allocation3 + $0xc8] sm:$0xff]
    %v296 = vld [vmem:[#allocation3 + $0xd0] sm:$0xff]
    %v297 = vld [vmem:[#allocation3 + $0xd8] sm:$0xff]
    %v298 = vld [vmem:[#allocation3 + $0xe0] sm:$0xff]
    %v299 = vld [vmem:[#allocation3 + $0xe8] sm:$0xff]
    %v300 = vld [vmem:[#allocation3 + $0xf0] sm:$0xff]
    %v301 = vld [vmem:[#allocation3 + $0xf8] sm:$0xff]
    %v302 = vld [vmem:[#allocation3 + $0x100] sm:$0xff]
    %v303 = vld [vmem:[#allocation3 + $0x108] sm:$0xff]
    %v304 = vld [vmem:[#allocation3 + $0x110] sm:$0xff]
    %v305 = vld [vmem:[#allocation3 + $0x118] sm:$0xff]
    %v306 = vld [vmem:[#allocation3 + $0x120] sm:$0xff]
    %v307 = vld [vmem:[#allocation3 + $0x128] sm:$0xff]
    %v308 = vld [vmem:[#allocation3 + $0x130] sm:$0xff]
    %v309 = vld [vmem:[#allocation3 + $0x138] sm:$0xff]
    %v310 = vld [vmem:[#allocation3 + $0x140] sm:$0xff]
    %v311 = vld [vmem:[#allocation3 + $0x148] sm:$0xff]
    %v312 = vld [vmem:[#allocation3 + $0x150] sm:$0xff]
    %v313 = vld [vmem:[#allocation3 + $0x158] sm:$0xff]
    %v314 = vld [vmem:[#allocation3 + $0x160] sm:$0xff]
    %v315 = vld [vmem:[#allocation3 + $0x168] sm:$0xff]
    %v316 = vld [vmem:[#allocation3 + $0x170] sm:$0xff]
    %v317 = vld [vmem:[#allocation3 + $0x178] sm:$0xff]
    %v318 = vld [vmem:[%s9] sm:$0x7]
    %v319 = vld [vmem:[%s11] sm:$0xff]
    %v320 = vld [vmem:[%s11 + $0x8] sm:$0xff]
    %v321 = vld [vmem:[%s11 + $0x10] sm:$0xff]
    %v322 = vld [vmem:[%s11 + $0x18] sm:$0xff]
    %v323 = vld [vmem:[%s11 + $0x20] sm:$0xff]
    %v324 = vld [vmem:[%s11 + $0x28] sm:$0xff]
    %v325 = vld [vmem:[%s11 + $0x30] sm:$0xff]
    %v326 = vld [vmem:[%s11 + $0x38] sm:$0xff]
    %v327 = vld [vmem:[%s11 + $0x40] sm:$0xff]
    %v328 = vld [vmem:[%s11 + $0x48] sm:$0xff]
    %v329 = vld [vmem:[%s11 + $0x50] sm:$0xff]
    %v330 = vld [vmem:[%s11 + $0x58] sm:$0xff]
    %v331 = vld [vmem:[%s11 + $0x60] sm:$0xff]
    %v332 = vld [vmem:[%s11 + $0x68] sm:$0xff]
    %v333 = vld [vmem:[%s11 + $0x70] sm:$0xff]
    %v334 = vld [vmem:[%s11 + $0x78] sm:$0xff]
    %v335 = vld [vmem:[%s13] sm:$0x1]
    %v336 = vld [vmem:[%s15] sm:$0x1]
    %v337 = vld [vmem:[%s17] sm:$0x1]
    %v338 = vld [vmem:[#allocation5] sm:$0xff]
    %v339 = vld [vmem:[#allocation5 + $0x8] sm:$0xff]
    %v340 = vld [vmem:[#allocation5 + $0x10] sm:$0xff]
    %v341 = vld [vmem:[#allocation5 + $0x18] sm:$0xff]
    %v342 = vld [vmem:[#allocation5 + $0x20] sm:$0xff]
    %v343 = vld [vmem:[#allocation5 + $0x28] sm:$0xff]
    %v344 = vld [vmem:[#allocation5 + $0x30] sm:$0xff]
    %v345 = vld [vmem:[#allocation5 + $0x38] sm:$0xff]
    %v346 = vld [vmem:[#allocation5 + $0x40] sm:$0xff]
    %v347 = vld [vmem:[#allocation5 + $0x48] sm:$0xff]
    %v348 = vld [vmem:[#allocation5 + $0x50] sm:$0xff]
    %v349 = vld [vmem:[#allocation5 + $0x58] sm:$0xff]
    %v350 = vld [vmem:[#allocation5 + $0x60] sm:$0xff]
    %v351 = vld [vmem:[#allocation5 + $0x68] sm:$0xff]
    %v352 = vld [vmem:[#allocation5 + $0x70] sm:$0xff]
    %v353 = vld [vmem:[#allocation5 + $0x78] sm:$0xff]
    %v354 = vld [vmem:[#allocation5 + $0x80] sm:$0xff]
    %v355 = vld [vmem:[#allocation5 + $0x88] sm:$0xff]
    %v356 = vld [vmem:[#allocation5 + $0x90] sm:$0xff]
    %v357 = vld [vmem:[#allocation5 + $0x98] sm:$0xff]
    %v358 = vld [vmem:[#allocation5 + $0xa0] sm:$0xff]
    %v359 = vld [vmem:[#allocation5 + $0xa8] sm:$0xff]
    %v360 = vld [vmem:[#allocation5 + $0xb0] sm:$0xff]
    %v361 = vld [vmem:[#allocation5 + $0xb8] sm:$0xff]
    %v362 = vld [vmem:[#allocation5 + $0xc0] sm:$0xff]
    %v363 = vld [vmem:[#allocation5 + $0xc8] sm:$0xff]
    %v364 = vld [vmem:[#allocation5 + $0xd0] sm:$0xff]
    %v365 = vld [vmem:[#allocation5 + $0xd8] sm:$0xff]
    %v366 = vld [vmem:[#allocation5 + $0xe0] sm:$0xff]
    %v367 = vld [vmem:[#allocation5 + $0xe8] sm:$0xff]
    %v368 = vld [vmem:[#allocation5 + $0xf0] sm:$0xff]
    %v369 = vld [vmem:[#allocation5 + $0xf8] sm:$0xff]
    %v370 = vld [vmem:[#allocation5 + $0x100] sm:$0xff]
    %v371 = vld [vmem:[#allocation5 + $0x108] sm:$0xff]
    %v372 = vld [vmem:[#allocation5 + $0x110] sm:$0xff]
    %v373 = vld [vmem:[#allocation5 + $0x118] sm:$0xff]
    %v374 = vld [vmem:[#allocation5 + $0x120] sm:$0xff]
    %v375 = vld [vmem:[#allocation5 + $0x128] sm:$0xff]
    %v376 = vld [vmem:[#allocation5 + $0x130] sm:$0xff]
    %v377 = vld [vmem:[#allocation5 + $0x138] sm:$0xff]
    %v378 = vld [vmem:[#allocation5 + $0x140] sm:$0xff]
    %v379 = vld [vmem:[#allocation5 + $0x148] sm:$0xff]
    %v380 = vld [vmem:[#allocation5 + $0x150] sm:$0xff]
    %v381 = vld [vmem:[#allocation5 + $0x158] sm:$0xff]
    %v382 = vld [vmem:[#allocation5 + $0x160] sm:$0xff]
    %v383 = vld [vmem:[#allocation5 + $0x168] sm:$0xff]
    %v384 = vld [vmem:[#allocation5 + $0x170] sm:$0xff]
    %v385 = vld [vmem:[#allocation5 + $0x178] sm:$0xff]
    %v386 = vld [vmem:[#allocation5 + $0x180] sm:$0xff]
    %v387 = vld [vmem:[#allocation5 + $0x188] sm:$0xff]
    %v388 = vld [vmem:[#allocation5 + $0x190] sm:$0xff]
    %v389 = vld [vmem:[#allocation5 + $0x198] sm:$0xff]
    %v390 = vld [vmem:[#allocation5 + $0x1a0] sm:$0xff]
    %v391 = vld [vmem:[#allocation5 + $0x1a8] sm:$0xff]
    %v392 = vld [vmem:[#allocation5 + $0x1b0] sm:$0xff]
    %v393 = vld [vmem:[#allocation5 + $0x1b8] sm:$0xff]
    %v394 = vld [vmem:[#allocation5 + $0x1c0] sm:$0xff]
    %v395 = vld [vmem:[#allocation5 + $0x1c8] sm:$0xff]
    %v396 = vld [vmem:[#allocation5 + $0x1d0] sm:$0xff]
    %v397 = vld [vmem:[#allocation5 + $0x1d8] sm:$0xff]
    %v398 = vld [vmem:[#allocation5 + $0x1e0] sm:$0xff]
    %v399 = vld [vmem:[#allocation5 + $0x1e8] sm:$0xff]
    %v400 = vld [vmem:[#allocation5 + $0x1f0] sm:$0xff]
    %v401 = vld [vmem:[#allocation5 + $0x1f8] sm:$0xff]
    %v402 = vld [vmem:[#allocation5 + $0x200] sm:$0xff]
    %v403 = vld [vmem:[#allocation5 + $0x208] sm:$0xff]
    %v404 = vld [vmem:[#allocation5 + $0x210] sm:$0xff]
    %v405 = vld [vmem:[#allocation5 + $0x218] sm:$0xff]
    %v406 = vld [vmem:[#allocation5 + $0x220] sm:$0xff]
    %v407 = vld [vmem:[#allocation5 + $0x228] sm:$0xff]
    %v408 = vld [vmem:[#allocation5 + $0x230] sm:$0xff]
    %v409 = vld [vmem:[#allocation5 + $0x238] sm:$0xff]
    %v410 = vld [vmem:[#allocation5 + $0x240] sm:$0xff]
    %v411 = vld [vmem:[#allocation5 + $0x248] sm:$0xff]
    %v412 = vld [vmem:[#allocation5 + $0x250] sm:$0xff]
    %v413 = vld [vmem:[#allocation5 + $0x258] sm:$0xff]
    %v414 = vld [vmem:[#allocation5 + $0x260] sm:$0xff]
    %v415 = vld [vmem:[#allocation5 + $0x268] sm:$0xff]
    %v416 = vld [vmem:[#allocation5 + $0x270] sm:$0xff]
    %v417 = vld [vmem:[#allocation5 + $0x278] sm:$0xff]
    %v418 = vld [vmem:[#allocation5 + $0x280] sm:$0xff]
    %v419 = vld [vmem:[#allocation5 + $0x288] sm:$0xff]
    %v420 = vld [vmem:[#allocation5 + $0x290] sm:$0xff]
    %v421 = vld [vmem:[#allocation5 + $0x298] sm:$0xff]
    %v422 = vld [vmem:[#allocation5 + $0x2a0] sm:$0xff]
    %v423 = vld [vmem:[#allocation5 + $0x2a8] sm:$0xff]
    %v424 = vld [vmem:[#allocation5 + $0x2b0] sm:$0xff]
    %v425 = vld [vmem:[#allocation5 + $0x2b8] sm:$0xff]
    %v426 = vld [vmem:[#allocation5 + $0x2c0] sm:$0xff]
    %v427 = vld [vmem:[#allocation5 + $0x2c8] sm:$0xff]
    %v428 = vld [vmem:[#allocation5 + $0x2d0] sm:$0xff]
    %v429 = vld [vmem:[#allocation5 + $0x2d8] sm:$0xff]
    %v430 = vld [vmem:[#allocation5 + $0x2e0] sm:$0xff]
    %v431 = vld [vmem:[#allocation5 + $0x2e8] sm:$0xff]
    %v432 = vld [vmem:[#allocation5 + $0x2f0] sm:$0xff]
    %v433 = vld [vmem:[#allocation5 + $0x2f8] sm:$0xff]
    %v434 = vld [vmem:[#allocation5 + $0x300] sm:$0xff]
    %v435 = vld [vmem:[#allocation5 + $0x308] sm:$0xff]
    %v436 = vld [vmem:[#allocation5 + $0x310] sm:$0xff]
    %v437 = vld [vmem:[#allocation5 + $0x318] sm:$0xff]
    %v438 = vld [vmem:[#allocation5 + $0x320] sm:$0xff]
    %v439 = vld [vmem:[#allocation5 + $0x328] sm:$0xff]
    %v440 = vld [vmem:[#allocation5 + $0x330] sm:$0xff]
    %v441 = vld [vmem:[#allocation5 + $0x338] sm:$0xff]
    %v442 = vld [vmem:[#allocation5 + $0x340] sm:$0xff]
    %v443 = vld [vmem:[#allocation5 + $0x348] sm:$0xff]
    %v444 = vld [vmem:[#allocation5 + $0x350] sm:$0xff]
    %v445 = vld [vmem:[#allocation5 + $0x358] sm:$0xff]
    %v446 = vld [vmem:[#allocation5 + $0x360] sm:$0xff]
    %v447 = vld [vmem:[#allocation5 + $0x368] sm:$0xff]
    %v448 = vld [vmem:[#allocation5 + $0x370] sm:$0xff]
    %v449 = vld [vmem:[#allocation5 + $0x378] sm:$0xff]
    %v450 = vld [vmem:[#allocation5 + $0x380] sm:$0xff]
    %v451 = vld [vmem:[#allocation5 + $0x388] sm:$0xff]
    %v452 = vld [vmem:[#allocation5 + $0x390] sm:$0xff]
    %v453 = vld [vmem:[#allocation5 + $0x398] sm:$0xff]
    %v454 = vld [vmem:[#allocation5 + $0x3a0] sm:$0xff]
    %v455 = vld [vmem:[#allocation5 + $0x3a8] sm:$0xff]
    %v456 = vld [vmem:[#allocation5 + $0x3b0] sm:$0xff]
    %v457 = vld [vmem:[#allocation5 + $0x3b8] sm:$0xff]
    %v458 = vld [vmem:[#allocation5 + $0x3c0] sm:$0xff]
    %v459 = vld [vmem:[#allocation5 + $0x3c8] sm:$0xff]
    %v460 = vld [vmem:[#allocation5 + $0x3d0] sm:$0xff]
    %v461 = vld [vmem:[#allocation5 + $0x3d8] sm:$0xff]
    %v462 = vld [vmem:[#allocation5 + $0x3e0] sm:$0xff]
    %v463 = vld [vmem:[#allocation5 + $0x3e8] sm:$0xff]
    %v464 = vld [vmem:[#allocation5 + $0x3f0] sm:$0xff]
    %v465 = vld [vmem:[#allocation5 + $0x3f8] sm:$0xff]
    %v466 = vld [vmem:[#allocation5 + $0x400] sm:$0xff]
    %v467 = vld [vmem:[#allocation5 + $0x408] sm:$0xff]
    %v468 = vld [vmem:[#allocation5 + $0x410] sm:$0xff]
    %v469 = vld [vmem:[#allocation5 + $0x418] sm:$0xff]
    %v470 = vld [vmem:[#allocation5 + $0x420] sm:$0xff]
    %v471 = vld [vmem:[#allocation5 + $0x428] sm:$0xff]
    %v472 = vld [vmem:[#allocation5 + $0x430] sm:$0xff]
    %v473 = vld [vmem:[#allocation5 + $0x438] sm:$0xff]
    %v474 = vld [vmem:[#allocation5 + $0x440] sm:$0xff]
    %v475 = vld [vmem:[#allocation5 + $0x448] sm:$0xff]
    %v476 = vld [vmem:[#allocation5 + $0x450] sm:$0xff]
    %v477 = vld [vmem:[#allocation5 + $0x458] sm:$0xff]
    %v478 = vld [vmem:[#allocation5 + $0x460] sm:$0xff]
    %v479 = vld [vmem:[#allocation5 + $0x468] sm:$0xff]
    %v480 = vld [vmem:[#allocation5 + $0x470] sm:$0xff]
    %v481 = vld [vmem:[#allocation5 + $0x478] sm:$0xff]
    %v482 = vld [vmem:[#allocation5 + $0x480] sm:$0xff]
    %v483 = vld [vmem:[#allocation5 + $0x488] sm:$0xff]
    %v484 = vld [vmem:[#allocation5 + $0x490] sm:$0xff]
    %v485 = vld [vmem:[#allocation5 + $0x498] sm:$0xff]
    %v486 = vld [vmem:[#allocation5 + $0x4a0] sm:$0xff]
    %v487 = vld [vmem:[#allocation5 + $0x4a8] sm:$0xff]
    %v488 = vld [vmem:[#allocation5 + $0x4b0] sm:$0xff]
    %v489 = vld [vmem:[#allocation5 + $0x4b8] sm:$0xff]
    %v490 = vld [vmem:[#allocation5 + $0x4c0] sm:$0xff]
    %v491 = vld [vmem:[#allocation5 + $0x4c8] sm:$0xff]
    %v492 = vld [vmem:[#allocation5 + $0x4d0] sm:$0xff]
    %v493 = vld [vmem:[#allocation5 + $0x4d8] sm:$0xff]
    %v494 = vld [vmem:[#allocation5 + $0x4e0] sm:$0xff]
    %v495 = vld [vmem:[#allocation5 + $0x4e8] sm:$0xff]
    %v496 = vld [vmem:[#allocation5 + $0x4f0] sm:$0xff]
    %v497 = vld [vmem:[#allocation5 + $0x4f8] sm:$0xff]
    %v498 = vld [vmem:[#allocation5 + $0x500] sm:$0xff]
    %v499 = vld [vmem:[#allocation5 + $0x508] sm:$0xff]
    %v500 = vld [vmem:[#allocation5 + $0x510] sm:$0xff]
    %v501 = vld [vmem:[#allocation5 + $0x518] sm:$0xff]
    %v502 = vld [vmem:[#allocation5 + $0x520] sm:$0xff]
    %v503 = vld [vmem:[#allocation5 + $0x528] sm:$0xff]
    %v504 = vld [vmem:[#allocation5 + $0x530] sm:$0xff]
    %v505 = vld [vmem:[#allocation5 + $0x538] sm:$0xff]
    %v506 = vld [vmem:[#allocation5 + $0x540] sm:$0xff]
    %v507 = vld [vmem:[#allocation5 + $0x548] sm:$0xff]
    %v508 = vld [vmem:[#allocation5 + $0x550] sm:$0xff]
    %v509 = vld [vmem:[#allocation5 + $0x558] sm:$0xff]
    %v510 = vld [vmem:[#allocation5 + $0x560] sm:$0xff]
    %v511 = vld [vmem:[#allocation5 + $0x568] sm:$0xff]
    %v512 = vld [vmem:[#allocation5 + $0x570] sm:$0xff]
    %v513 = vld [vmem:[#allocation5 + $0x578] sm:$0xff]
    %v514 = vld [vmem:[#allocation5 + $0x580] sm:$0xff]
    %v515 = vld [vmem:[#allocation5 + $0x588] sm:$0xff]
    %v516 = vld [vmem:[#allocation5 + $0x590] sm:$0xff]
    %v517 = vld [vmem:[#allocation5 + $0x598] sm:$0xff]
    %v518 = vld [vmem:[#allocation5 + $0x5a0] sm:$0xff]
    %v519 = vld [vmem:[#allocation5 + $0x5a8] sm:$0xff]
    %v520 = vld [vmem:[#allocation5 + $0x5b0] sm:$0xff]
    %v521 = vld [vmem:[#allocation5 + $0x5b8] sm:$0xff]
    %v522 = vld [vmem:[#allocation5 + $0x5c0] sm:$0xff]
    %v523 = vld [vmem:[#allocation5 + $0x5c8] sm:$0xff]
    %v524 = vld [vmem:[#allocation5 + $0x5d0] sm:$0xff]
    %v525 = vld [vmem:[#allocation5 + $0x5d8] sm:$0xff]
    %v526 = vld [vmem:[#allocation5 + $0x5e0] sm:$0xff]
    %v527 = vld [vmem:[#allocation5 + $0x5e8] sm:$0xff]
    %v528 = vld [vmem:[#allocation5 + $0x5f0] sm:$0xff]
    %v529 = vld [vmem:[#allocation5 + $0x5f8] sm:$0xff]
    %v530 = vld [vmem:[#allocation5 + $0x600] sm:$0xff]
    %v531 = vld [vmem:[#allocation5 + $0x608] sm:$0xff]
    %v532 = vld [vmem:[#allocation5 + $0x610] sm:$0xff]
    %v533 = vld [vmem:[#allocation5 + $0x618] sm:$0xff]
    %v534 = vld [vmem:[#allocation5 + $0x620] sm:$0xff]
    %v535 = vld [vmem:[#allocation5 + $0x628] sm:$0xff]
    %v536 = vld [vmem:[#allocation5 + $0x630] sm:$0xff]
    %v537 = vld [vmem:[#allocation5 + $0x638] sm:$0xff]
    %v538 = vld [vmem:[#allocation5 + $0x640] sm:$0xff]
    %v539 = vld [vmem:[#allocation5 + $0x648] sm:$0xff]
    %v540 = vld [vmem:[#allocation5 + $0x650] sm:$0xff]
    %v541 = vld [vmem:[#allocation5 + $0x658] sm:$0xff]
    %v542 = vld [vmem:[#allocation5 + $0x660] sm:$0xff]
    %v543 = vld [vmem:[#allocation5 + $0x668] sm:$0xff]
    %v544 = vld [vmem:[#allocation5 + $0x670] sm:$0xff]
    %v545 = vld [vmem:[#allocation5 + $0x678] sm:$0xff]
    %v546 = vld [vmem:[#allocation5 + $0x680] sm:$0xff]
    %v547 = vld [vmem:[#allocation5 + $0x688] sm:$0xff]
    %v548 = vld [vmem:[#allocation5 + $0x690] sm:$0xff]
    %v549 = vld [vmem:[#allocation5 + $0x698] sm:$0xff]
    %v550 = vld [vmem:[#allocation5 + $0x6a0] sm:$0xff]
    %v551 = vld [vmem:[#allocation5 + $0x6a8] sm:$0xff]
    %v552 = vld [vmem:[#allocation5 + $0x6b0] sm:$0xff]
    %v553 = vld [vmem:[#allocation5 + $0x6b8] sm:$0xff]
    %v554 = vld [vmem:[#allocation5 + $0x6c0] sm:$0xff]
    %v555 = vld [vmem:[#allocation5 + $0x6c8] sm:$0xff]
    %v556 = vld [vmem:[#allocation5 + $0x6d0] sm:$0xff]
    %v557 = vld [vmem:[#allocation5 + $0x6d8] sm:$0xff]
    %v558 = vld [vmem:[#allocation5 + $0x6e0] sm:$0xff]
    %v559 = vld [vmem:[#allocation5 + $0x6e8] sm:$0xff]
    %v560 = vld [vmem:[#allocation5 + $0x6f0] sm:$0xff]
    %v561 = vld [vmem:[#allocation5 + $0x6f8] sm:$0xff]
    %v562 = vld [vmem:[#allocation5 + $0x700] sm:$0xff]
    %v563 = vld [vmem:[#allocation5 + $0x708] sm:$0xff]
    %v564 = vld [vmem:[#allocation5 + $0x710] sm:$0xff]
    %v565 = vld [vmem:[#allocation5 + $0x718] sm:$0xff]
    %v566 = vld [vmem:[#allocation5 + $0x720] sm:$0xff]
    %v567 = vld [vmem:[#allocation5 + $0x728] sm:$0xff]
    %v568 = vld [vmem:[#allocation5 + $0x730] sm:$0xff]
    %v569 = vld [vmem:[#allocation5 + $0x738] sm:$0xff]
    %v570 = vld [vmem:[#allocation5 + $0x740] sm:$0xff]
    %v571 = vld [vmem:[#allocation5 + $0x748] sm:$0xff]
    %v572 = vld [vmem:[#allocation5 + $0x750] sm:$0xff]
    %v573 = vld [vmem:[#allocation5 + $0x758] sm:$0xff]
    %v574 = vld [vmem:[#allocation5 + $0x760] sm:$0xff]
    %v575 = vld [vmem:[#allocation5 + $0x768] sm:$0xff]
    %v576 = vld [vmem:[#allocation5 + $0x770] sm:$0xff]
    %v577 = vld [vmem:[#allocation5 + $0x778] sm:$0xff]
    %v578 = vld [vmem:[#allocation5 + $0x780] sm:$0xff]
    %v579 = vld [vmem:[#allocation5 + $0x788] sm:$0xff]
    %v580 = vld [vmem:[#allocation5 + $0x790] sm:$0xff]
    %v581 = vld [vmem:[#allocation5 + $0x798] sm:$0xff]
    %v582 = vld [vmem:[#allocation5 + $0x7a0] sm:$0xff]
    %v583 = vld [vmem:[#allocation5 + $0x7a8] sm:$0xff]
    %v584 = vld [vmem:[#allocation5 + $0x7b0] sm:$0xff]
    %v585 = vld [vmem:[#allocation5 + $0x7b8] sm:$0xff]
    %v586 = vld [vmem:[#allocation5 + $0x7c0] sm:$0xff]
    %v587 = vld [vmem:[#allocation5 + $0x7c8] sm:$0xff]
    %v588 = vld [vmem:[#allocation5 + $0x7d0] sm:$0xff]
    %v589 = vld [vmem:[#allocation5 + $0x7d8] sm:$0xff]
    %v590 = vld [vmem:[#allocation5 + $0x7e0] sm:$0xff]
    %v591 = vld [vmem:[#allocation5 + $0x7e8] sm:$0xff]
    %v592 = vld [vmem:[#allocation5 + $0x7f0] sm:$0xff]
    %v593 = vld [vmem:[#allocation5 + $0x7f8] sm:$0xff]
    %v594 = vld [vmem:[%s21] sm:$0xff]
    %v595 = vld [vmem:[%s21 + $0x8] sm:$0xff]
    %v596 = vld [vmem:[#allocation7] sm:$0xff]
    %v597 = vld [vmem:[#allocation7 + $0x8] sm:$0xff]
    %v598 = vld [vmem:[#allocation7 + $0x10] sm:$0xff]
    %v599 = vld [vmem:[#allocation7 + $0x18] sm:$0xff]
    %v600 = vld [vmem:[#allocation7 + $0x20] sm:$0xff]
    %v601 = vld [vmem:[#allocation7 + $0x28] sm:$0xff]
    %v602 = vld [vmem:[#allocation7 + $0x30] sm:$0xff]
    %v603 = vld [vmem:[#allocation7 + $0x38] sm:$0xff]
    %v604 = vld [vmem:[#allocation7 + $0x40] sm:$0xff]
    %v605 = vld [vmem:[#allocation7 + $0x48] sm:$0xff]
    %v606 = vld [vmem:[#allocation7 + $0x50] sm:$0xff]
    %v607 = vld [vmem:[#allocation7 + $0x58] sm:$0xff]
    %v608 = vld [vmem:[#allocation7 + $0x60] sm:$0xff]
    %v609 = vld [vmem:[#allocation7 + $0x68] sm:$0xff]
    %v610 = vld [vmem:[#allocation7 + $0x70] sm:$0xff]
    %v611 = vld [vmem:[#allocation7 + $0x78] sm:$0xff]
    %v612 = vld [vmem:[#allocation7 + $0x80] sm:$0xff]
    %v613 = vld [vmem:[#allocation7 + $0x88] sm:$0xff]
    %v614 = vld [vmem:[#allocation7 + $0x90] sm:$0xff]
    %v615 = vld [vmem:[#allocation7 + $0x98] sm:$0xff]
    %v616 = vld [vmem:[#allocation7 + $0xa0] sm:$0xff]
    %v617 = vld [vmem:[#allocation7 + $0xa8] sm:$0xff]
    %v618 = vld [vmem:[#allocation7 + $0xb0] sm:$0xff]
    %v619 = vld [vmem:[#allocation7 + $0xb8] sm:$0xff]
    %v620 = vld [vmem:[#allocation7 + $0xc0] sm:$0xff]
    %v621 = vld [vmem:[#allocation7 + $0xc8] sm:$0xff]
    %v622 = vld [vmem:[#allocation7 + $0xd0] sm:$0xff]
    %v623 = vld [vmem:[#allocation7 + $0xd8] sm:$0xff]
    %v624 = vld [vmem:[#allocation7 + $0xe0] sm:$0xff]
    %v625 = vld [vmem:[#allocation7 + $0xe8] sm:$0xff]
    %v626 = vld [vmem:[#allocation7 + $0xf0] sm:$0xff]
    %v627 = vld [vmem:[#allocation7 + $0xf8] sm:$0xff]
    %v628 = vld [vmem:[#allocation7 + $0x100] sm:$0xff]
    %v629 = vld [vmem:[#allocation7 + $0x108] sm:$0xff]
    %v630 = vld [vmem:[#allocation7 + $0x110] sm:$0xff]
    %v631 = vld [vmem:[#allocation7 + $0x118] sm:$0xff]
    %v632 = vld [vmem:[#allocation7 + $0x120] sm:$0xff]
    %v633 = vld [vmem:[#allocation7 + $0x128] sm:$0xff]
    %v634 = vld [vmem:[#allocation7 + $0x130] sm:$0xff]
    %v635 = vld [vmem:[#allocation7 + $0x138] sm:$0xff]
    %v636 = vld [vmem:[#allocation7 + $0x140] sm:$0xff]
    %v637 = vld [vmem:[#allocation7 + $0x148] sm:$0xff]
    %v638 = vld [vmem:[#allocation7 + $0x150] sm:$0xff]
    %v639 = vld [vmem:[#allocation7 + $0x158] sm:$0xff]
    %v640 = vld [vmem:[#allocation7 + $0x160] sm:$0xff]
    %v641 = vld [vmem:[#allocation7 + $0x168] sm:$0xff]
    %v642 = vld [vmem:[#allocation7 + $0x170] sm:$0xff]
    %v643 = vld [vmem:[#allocation7 + $0x178] sm:$0xff]
    %v644 = vld [vmem:[#allocation7 + $0x180] sm:$0xff]
    %v645 = vld [vmem:[#allocation7 + $0x188] sm:$0xff]
    %v646 = vld [vmem:[#allocation7 + $0x190] sm:$0xff]
    %v647 = vld [vmem:[#allocation7 + $0x198] sm:$0xff]
    %v648 = vld [vmem:[#allocation7 + $0x1a0] sm:$0xff]
    %v649 = vld [vmem:[#allocation7 + $0x1a8] sm:$0xff]
    %v650 = vld [vmem:[#allocation7 + $0x1b0] sm:$0xff]
    %v651 = vld [vmem:[#allocation7 + $0x1b8] sm:$0xff]
    %v652 = vld [vmem:[#allocation7 + $0x1c0] sm:$0xff]
    %v653 = vld [vmem:[#allocation7 + $0x1c8] sm:$0xff]
    %v654 = vld [vmem:[#allocation7 + $0x1d0] sm:$0xff]
    %v655 = vld [vmem:[#allocation7 + $0x1d8] sm:$0xff]
    %v656 = vld [vmem:[#allocation7 + $0x1e0] sm:$0xff]
    %v657 = vld [vmem:[#allocation7 + $0x1e8] sm:$0xff]
    %v658 = vld [vmem:[#allocation7 + $0x1f0] sm:$0xff]
    %v659 = vld [vmem:[#allocation7 + $0x1f8] sm:$0xff]
    %v660 = vld [vmem:[#allocation7 + $0x200] sm:$0xff]
    %v661 = vld [vmem:[#allocation7 + $0x208] sm:$0xff]
    %v662 = vld [vmem:[#allocation7 + $0x210] sm:$0xff]
    %v663 = vld [vmem:[#allocation7 + $0x218] sm:$0xff]
    %v664 = vld [vmem:[#allocation7 + $0x220] sm:$0xff]
    %v665 = vld [vmem:[#allocation7 + $0x228] sm:$0xff]
    %v666 = vld [vmem:[#allocation7 + $0x230] sm:$0xff]
    %v667 = vld [vmem:[#allocation7 + $0x238] sm:$0xff]
    %v668 = vld [vmem:[#allocation7 + $0x240] sm:$0xff]
    %v669 = vld [vmem:[#allocation7 + $0x248] sm:$0xff]
    %v670 = vld [vmem:[#allocation7 + $0x250] sm:$0xff]
    %v671 = vld [vmem:[#allocation7 + $0x258] sm:$0xff]
    %v672 = vld [vmem:[#allocation7 + $0x260] sm:$0xff]
    %v673 = vld [vmem:[#allocation7 + $0x268] sm:$0xff]
    %v674 = vld [vmem:[#allocation7 + $0x270] sm:$0xff]
    %v675 = vld [vmem:[#allocation7 + $0x278] sm:$0xff]
    %v676 = vld [vmem:[#allocation7 + $0x280] sm:$0xff]
    %v677 = vld [vmem:[#allocation7 + $0x288] sm:$0xff]
    %v678 = vld [vmem:[#allocation7 + $0x290] sm:$0xff]
    %v679 = vld [vmem:[#allocation7 + $0x298] sm:$0xff]
    %v680 = vld [vmem:[#allocation7 + $0x2a0] sm:$0xff]
    %v681 = vld [vmem:[#allocation7 + $0x2a8] sm:$0xff]
    %v682 = vld [vmem:[#allocation7 + $0x2b0] sm:$0xff]
    %v683 = vld [vmem:[#allocation7 + $0x2b8] sm:$0xff]
    %v684 = vld [vmem:[#allocation7 + $0x2c0] sm:$0xff]
    %v685 = vld [vmem:[#allocation7 + $0x2c8] sm:$0xff]
    %v686 = vld [vmem:[#allocation7 + $0x2d0] sm:$0xff]
    %v687 = vld [vmem:[#allocation7 + $0x2d8] sm:$0xff]
    %v688 = vld [vmem:[#allocation7 + $0x2e0] sm:$0xff]
    %v689 = vld [vmem:[#allocation7 + $0x2e8] sm:$0xff]
    %v690 = vld [vmem:[#allocation7 + $0x2f0] sm:$0xff]
    %v691 = vld [vmem:[#allocation7 + $0x2f8] sm:$0xff]
    %v692 = vld [vmem:[#allocation7 + $0x300] sm:$0xff]
    %v693 = vld [vmem:[#allocation7 + $0x308] sm:$0xff]
    %v694 = vld [vmem:[#allocation7 + $0x310] sm:$0xff]
    %v695 = vld [vmem:[#allocation7 + $0x318] sm:$0xff]
    %v696 = vld [vmem:[#allocation7 + $0x320] sm:$0xff]
    %v697 = vld [vmem:[#allocation7 + $0x328] sm:$0xff]
    %v698 = vld [vmem:[#allocation7 + $0x330] sm:$0xff]
    %v699 = vld [vmem:[#allocation7 + $0x338] sm:$0xff]
    %v700 = vld [vmem:[#allocation7 + $0x340] sm:$0xff]
    %v701 = vld [vmem:[#allocation7 + $0x348] sm:$0xff]
    %v702 = vld [vmem:[#allocation7 + $0x350] sm:$0xff]
    %v703 = vld [vmem:[#allocation7 + $0x358] sm:$0xff]
    %v704 = vld [vmem:[#allocation7 + $0x360] sm:$0xff]
    %v705 = vld [vmem:[#allocation7 + $0x368] sm:$0xff]
    %v706 = vld [vmem:[#allocation7 + $0x370] sm:$0xff]
    %v707 = vld [vmem:[#allocation7 + $0x378] sm:$0xff]
    %v708 = vld [vmem:[#allocation7 + $0x380] sm:$0xff]
    %v709 = vld [vmem:[#allocation7 + $0x388] sm:$0xff]
    %v710 = vld [vmem:[#allocation7 + $0x390] sm:$0xff]
    %v711 = vld [vmem:[#allocation7 + $0x398] sm:$0xff]
    %v712 = vld [vmem:[#allocation7 + $0x3a0] sm:$0xff]
    %v713 = vld [vmem:[#allocation7 + $0x3a8] sm:$0xff]
    %v714 = vld [vmem:[#allocation7 + $0x3b0] sm:$0xff]
    %v715 = vld [vmem:[#allocation7 + $0x3b8] sm:$0xff]
    %v716 = vld [vmem:[#allocation7 + $0x3c0] sm:$0xff]
    %v717 = vld [vmem:[#allocation7 + $0x3c8] sm:$0xff]
    %v718 = vld [vmem:[#allocation7 + $0x3d0] sm:$0xff]
    %v719 = vld [vmem:[#allocation7 + $0x3d8] sm:$0xff]
    %v720 = vld [vmem:[#allocation7 + $0x3e0] sm:$0xff]
    %v721 = vld [vmem:[#allocation7 + $0x3e8] sm:$0xff]
    %v722 = vld [vmem:[#allocation7 + $0x3f0] sm:$0xff]
    %v723 = vld [vmem:[#allocation7 + $0x3f8] sm:$0xff]
    %v724 = vld [vmem:[#allocation7 + $0x400] sm:$0xff]
    %v725 = vld [vmem:[#allocation7 + $0x408] sm:$0xff]
    %v726 = vld [vmem:[#allocation7 + $0x410] sm:$0xff]
    %v727 = vld [vmem:[#allocation7 + $0x418] sm:$0xff]
    %v728 = vld [vmem:[#allocation7 + $0x420] sm:$0xff]
    %v729 = vld [vmem:[#allocation7 + $0x428] sm:$0xff]
    %v730 = vld [vmem:[#allocation7 + $0x430] sm:$0xff]
    %v731 = vld [vmem:[#allocation7 + $0x438] sm:$0xff]
    %v732 = vld [vmem:[#allocation7 + $0x440] sm:$0xff]
    %v733 = vld [vmem:[#allocation7 + $0x448] sm:$0xff]
    %v734 = vld [vmem:[#allocation7 + $0x450] sm:$0xff]
    %v735 = vld [vmem:[#allocation7 + $0x458] sm:$0xff]
    %v736 = vld [vmem:[#allocation7 + $0x460] sm:$0xff]
    %v737 = vld [vmem:[#allocation7 + $0x468] sm:$0xff]
    %v738 = vld [vmem:[#allocation7 + $0x470] sm:$0xff]
    %v739 = vld [vmem:[#allocation7 + $0x478] sm:$0xff]
    %v740 = vld [vmem:[#allocation7 + $0x480] sm:$0xff]
    %v741 = vld [vmem:[#allocation7 + $0x488] sm:$0xff]
    %v742 = vld [vmem:[#allocation7 + $0x490] sm:$0xff]
    %v743 = vld [vmem:[#allocation7 + $0x498] sm:$0xff]
    %v744 = vld [vmem:[#allocation7 + $0x4a0] sm:$0xff]
    %v745 = vld [vmem:[#allocation7 + $0x4a8] sm:$0xff]
    %v746 = vld [vmem:[#allocation7 + $0x4b0] sm:$0xff]
    %v747 = vld [vmem:[#allocation7 + $0x4b8] sm:$0xff]
    %v748 = vld [vmem:[#allocation7 + $0x4c0] sm:$0xff]
    %v749 = vld [vmem:[#allocation7 + $0x4c8] sm:$0xff]
    %v750 = vld [vmem:[#allocation7 + $0x4d0] sm:$0xff]
    %v751 = vld [vmem:[#allocation7 + $0x4d8] sm:$0xff]
    %v752 = vld [vmem:[#allocation7 + $0x4e0] sm:$0xff]
    %v753 = vld [vmem:[#allocation7 + $0x4e8] sm:$0xff]
    %v754 = vld [vmem:[#allocation7 + $0x4f0] sm:$0xff]
    %v755 = vld [vmem:[#allocation7 + $0x4f8] sm:$0xff]
    %v756 = vld [vmem:[#allocation7 + $0x500] sm:$0xff]
    %v757 = vld [vmem:[#allocation7 + $0x508] sm:$0xff]
    %v758 = vld [vmem:[#allocation7 + $0x510] sm:$0xff]
    %v759 = vld [vmem:[#allocation7 + $0x518] sm:$0xff]
    %v760 = vld [vmem:[#allocation7 + $0x520] sm:$0xff]
    %v761 = vld [vmem:[#allocation7 + $0x528] sm:$0xff]
    %v762 = vld [vmem:[#allocation7 + $0x530] sm:$0xff]
    %v763 = vld [vmem:[#allocation7 + $0x538] sm:$0xff]
    %v764 = vld [vmem:[#allocation7 + $0x540] sm:$0xff]
    %v765 = vld [vmem:[#allocation7 + $0x548] sm:$0xff]
    %v766 = vld [vmem:[#allocation7 + $0x550] sm:$0xff]
    %v767 = vld [vmem:[#allocation7 + $0x558] sm:$0xff]
    %v768 = vld [vmem:[#allocation7 + $0x560] sm:$0xff]
    %v769 = vld [vmem:[#allocation7 + $0x568] sm:$0xff]
    %v770 = vld [vmem:[#allocation7 + $0x570] sm:$0xff]
    %v771 = vld [vmem:[#allocation7 + $0x578] sm:$0xff]
    %v772 = vld [vmem:[#allocation7 + $0x580] sm:$0xff]
    %v773 = vld [vmem:[#allocation7 + $0x588] sm:$0xff]
    %v774 = vld [vmem:[#allocation7 + $0x590] sm:$0xff]
    %v775 = vld [vmem:[#allocation7 + $0x598] sm:$0xff]
    %v776 = vld [vmem:[#allocation7 + $0x5a0] sm:$0xff]
    %v777 = vld [vmem:[#allocation7 + $0x5a8] sm:$0xff]
    %v778 = vld [vmem:[#allocation7 + $0x5b0] sm:$0xff]
    %v779 = vld [vmem:[#allocation7 + $0x5b8] sm:$0xff]
    %v780 = vld [vmem:[#allocation7 + $0x5c0] sm:$0xff]
    %v781 = vld [vmem:[#allocation7 + $0x5c8] sm:$0xff]
    %v782 = vld [vmem:[#allocation7 + $0x5d0] sm:$0xff]
    %v783 = vld [vmem:[#allocation7 + $0x5d8] sm:$0xff]
    %v784 = vld [vmem:[#allocation7 + $0x5e0] sm:$0xff]
    %v785 = vld [vmem:[#allocation7 + $0x5e8] sm:$0xff]
    %v786 = vld [vmem:[#allocation7 + $0x5f0] sm:$0xff]
    %v787 = vld [vmem:[#allocation7 + $0x5f8] sm:$0xff]
    %v788 = vld [vmem:[#allocation7 + $0x600] sm:$0xff]
    %v789 = vld [vmem:[#allocation7 + $0x608] sm:$0xff]
    %v790 = vld [vmem:[#allocation7 + $0x610] sm:$0xff]
    %v791 = vld [vmem:[#allocation7 + $0x618] sm:$0xff]
    %v792 = vld [vmem:[#allocation7 + $0x620] sm:$0xff]
    %v793 = vld [vmem:[#allocation7 + $0x628] sm:$0xff]
    %v794 = vld [vmem:[#allocation7 + $0x630] sm:$0xff]
    %v795 = vld [vmem:[#allocation7 + $0x638] sm:$0xff]
    %v796 = vld [vmem:[#allocation7 + $0x640] sm:$0xff]
    %v797 = vld [vmem:[#allocation7 + $0x648] sm:$0xff]
    %v798 = vld [vmem:[#allocation7 + $0x650] sm:$0xff]
    %v799 = vld [vmem:[#allocation7 + $0x658] sm:$0xff]
    %v800 = vld [vmem:[#allocation7 + $0x660] sm:$0xff]
    %v801 = vld [vmem:[#allocation7 + $0x668] sm:$0xff]
    %v802 = vld [vmem:[#allocation7 + $0x670] sm:$0xff]
    %v803 = vld [vmem:[#allocation7 + $0x678] sm:$0xff]
    %v804 = vld [vmem:[#allocation7 + $0x680] sm:$0xff]
    %v805 = vld [vmem:[#allocation7 + $0x688] sm:$0xff]
    %v806 = vld [vmem:[#allocation7 + $0x690] sm:$0xff]
    %v807 = vld [vmem:[#allocation7 + $0x698] sm:$0xff]
    %v808 = vld [vmem:[#allocation7 + $0x6a0] sm:$0xff]
    %v809 = vld [vmem:[#allocation7 + $0x6a8] sm:$0xff]
    %v810 = vld [vmem:[#allocation7 + $0x6b0] sm:$0xff]
    %v811 = vld [vmem:[#allocation7 + $0x6b8] sm:$0xff]
    %v812 = vld [vmem:[#allocation7 + $0x6c0] sm:$0xff]
    %v813 = vld [vmem:[#allocation7 + $0x6c8] sm:$0xff]
    %v814 = vld [vmem:[#allocation7 + $0x6d0] sm:$0xff]
    %v815 = vld [vmem:[#allocation7 + $0x6d8] sm:$0xff]
    %v816 = vld [vmem:[#allocation7 + $0x6e0] sm:$0xff]
    %v817 = vld [vmem:[#allocation7 + $0x6e8] sm:$0xff]
    %v818 = vld [vmem:[#allocation7 + $0x6f0] sm:$0xff]
    %v819 = vld [vmem:[#allocation7 + $0x6f8] sm:$0xff]
    %v820 = vld [vmem:[#allocation7 + $0x700] sm:$0xff]
    %v821 = vld [vmem:[#allocation7 + $0x708] sm:$0xff]
    %v822 = vld [vmem:[#allocation7 + $0x710] sm:$0xff]
    %v823 = vld [vmem:[#allocation7 + $0x718] sm:$0xff]
    %v824 = vld [vmem:[#allocation7 + $0x720] sm:$0xff]
    %v825 = vld [vmem:[#allocation7 + $0x728] sm:$0xff]
    %v826 = vld [vmem:[#allocation7 + $0x730] sm:$0xff]
    %v827 = vld [vmem:[#allocation7 + $0x738] sm:$0xff]
    %v828 = vld [vmem:[#allocation7 + $0x740] sm:$0xff]
    %v829 = vld [vmem:[#allocation7 + $0x748] sm:$0xff]
    %v830 = vld [vmem:[#allocation7 + $0x750] sm:$0xff]
    %v831 = vld [vmem:[#allocation7 + $0x758] sm:$0xff]
    %v832 = vld [vmem:[#allocation7 + $0x760] sm:$0xff]
    %v833 = vld [vmem:[#allocation7 + $0x768] sm:$0xff]
    %v834 = vld [vmem:[#allocation7 + $0x770] sm:$0xff]
    %v835 = vld [vmem:[#allocation7 + $0x778] sm:$0xff]
    %v836 = vld [vmem:[#allocation7 + $0x780] sm:$0xff]
    %v837 = vld [vmem:[#allocation7 + $0x788] sm:$0xff]
    %v838 = vld [vmem:[#allocation7 + $0x790] sm:$0xff]
    %v839 = vld [vmem:[#allocation7 + $0x798] sm:$0xff]
    %v840 = vld [vmem:[#allocation7 + $0x7a0] sm:$0xff]
    %v841 = vld [vmem:[#allocation7 + $0x7a8] sm:$0xff]
    %v842 = vld [vmem:[#allocation7 + $0x7b0] sm:$0xff]
    %v843 = vld [vmem:[#allocation7 + $0x7b8] sm:$0xff]
    %v844 = vld [vmem:[#allocation7 + $0x7c0] sm:$0xff]
    %v845 = vld [vmem:[#allocation7 + $0x7c8] sm:$0xff]
    %v846 = vld [vmem:[#allocation7 + $0x7d0] sm:$0xff]
    %v847 = vld [vmem:[#allocation7 + $0x7d8] sm:$0xff]
    %v848 = vld [vmem:[#allocation7 + $0x7e0] sm:$0xff]
    %v849 = vld [vmem:[#allocation7 + $0x7e8] sm:$0xff]
    %v850 = vld [vmem:[#allocation7 + $0x7f0] sm:$0xff]
    %v851 = vld [vmem:[#allocation7 + $0x7f8] sm:$0xff]
    %v852 = vld [vmem:[%s25] sm:$0x1]
    %v853 = vld [vmem:[%s27] sm:$0x1]
    %v854 = vld [vmem:[%s29] sm:$0x1]
    %v856 = vperm.slane %v318, 0
    %v857 = vperm.slane %v318, 1
    %v858 = vperm.slane %v318, 2
    %862 = vmatpush.msra.mxu0 %v315
    %863 = vmatpush.msra.mxu0 %v312
    %864 = vmatpush.msra.mxu0 %v309
    %865 = vmatpush.msra.mxu0 %v306
    %866 = vmatpush.msra.mxu0 %v303
    %867 = vmatpush.msra.mxu0 %v300
    %868 = vmatpush.msra.mxu0 %v297
    %869 = vmatpush.msra.mxu0 %v294
    %870 = vmatpush.msra.mxu0 %v291
    %871 = vmatpush.msra.mxu0 %v288
    %872 = vmatpush.msra.mxu0 %v285
    %873 = vmatpush.msra.mxu0 %v282
    %874 = vmatpush.msra.mxu0 %v279
    %875 = vmatpush.msra.mxu0 %v276
    %876 = vmatpush.msra.mxu0 %v273
    %877 = vmatpush.msra.mxu0 %v270
    %878 = vmatmul.f32.gmra.mxu0 %v265
    %v879 = vpop.f32.mrf.mxu0
    %v880 = vadd.f32 %v856, %v879
    %881 = vmatmul.f32.gmra.mxu0 %v268
    %v882 = vpop.f32.mrf.mxu0
    %v883 = vadd.f32 %v856, %v882
    %884 = vdwg.mxu0
    %885 = vmatpush.msra.mxu0 %v316
    %886 = vmatpush.msra.mxu0 %v313
    %887 = vmatpush.msra.mxu0 %v310
    %888 = vmatpush.msra.mxu0 %v307
    %889 = vmatpush.msra.mxu0 %v304
    %890 = vmatpush.msra.mxu0 %v301
    %891 = vmatpush.msra.mxu0 %v298
    %892 = vmatpush.msra.mxu0 %v295
    %893 = vmatpush.msra.mxu0 %v292
    %894 = vmatpush.msra.mxu0 %v289
    %895 = vmatpush.msra.mxu0 %v286
    %896 = vmatpush.msra.mxu0 %v283
    %897 = vmatpush.msra.mxu0 %v280
    %898 = vmatpush.msra.mxu0 %v277
    %899 = vmatpush.msra.mxu0 %v274
    %900 = vmatpush.msra.mxu0 %v271
    %901 = vmatmul.f32.gmra.mxu0 %v265
    %v902 = vpop.f32.mrf.mxu0
    %v903 = vadd.f32 %v857, %v902
    %904 = vmatmul.f32.gmra.mxu0 %v268
    %v905 = vpop.f32.mrf.mxu0
    %v906 = vadd.f32 %v857, %v905
    %907 = vdwg.mxu0
    %908 = vmatpush.msra.mxu0 %v317
    %909 = vmatpush.msra.mxu0 %v314
    %910 = vmatpush.msra.mxu0 %v311
    %911 = vmatpush.msra.mxu0 %v308
    %912 = vmatpush.msra.mxu0 %v305
    %913 = vmatpush.msra.mxu0 %v302
    %914 = vmatpush.msra.mxu0 %v299
    %915 = vmatpush.msra.mxu0 %v296
    %916 = vmatpush.msra.mxu0 %v293
    %917 = vmatpush.msra.mxu0 %v290
    %918 = vmatpush.msra.mxu0 %v287
    %919 = vmatpush.msra.mxu0 %v284
    %920 = vmatpush.msra.mxu0 %v281
    %921 = vmatpush.msra.mxu0 %v278
    %922 = vmatpush.msra.mxu0 %v275
    %923 = vmatpush.msra.mxu0 %v272
    %924 = vmatmul.f32.gmra.mxu0 %v265
    %v925 = vpop.f32.mrf.mxu0
    %v926 = vadd.f32 %v858, %v925
    %927 = vmatmul.f32.gmra.mxu0 %v268
    %v928 = vpop.f32.mrf.mxu0
    %v929 = vadd.f32 %v858, %v928
    %930 = vdwg.mxu0
    %v931 = vlaneseq
    %v932 = vshrl.u32 %v931, 7
    %v933 = vadd.s32 %v932, 8
    %vm934 = vcmp.lt.s32.totalorder %v932, 0
    %v935 = vsub.s32 0, %v932
    %v936 = vsel %vm934, %v935, %v932
    %v937 = vshrl.u32 %v936, 1
    %v938 = vand.u32 %v936, 1
    %v939 = vsub.s32 0, %v938
    %v940 = vsel %vm934, %v939, %v938
    %vm941 = vcmp.lt.s32.totalorder %v933, 0
    %v942 = vsub.s32 0, %v933
    %v943 = vsel %vm941, %v942, %v933
    %v944 = vshrl.u32 %v943, 1
    %v945 = vand.u32 %v943, 1
    %v946 = vsub.s32 0, %v945
    %v947 = vsel %vm941, %v946, %v945
    %vm948 = vcmp.ne.s32.totalorder %v940, 0
    %vm949 = vcmp.ne.s32.totalorder %v947, 0
    %vm950 = vcmp.lt.s32.totalorder %v940, 0
    %vm951 = vcmp.lt.s32.totalorder %v947, 0
    %vm952 = vmand %vm950, %vm948
    %vm953 = vmand %vm951, %vm949
    %v954 = vadd.s32 %v940, 2
    %v955 = vadd.s32 %v947, 2
    %v956 = vsel %vm952, %v954, %v940
    %v957 = vsel %vm953, %v955, %v947
    %v958 = vlaneseq
    %v959 = vand.u32 %v958, 127
    %vm960 = vcmp.lt.s32.totalorder %v959, 0
    %v961 = vsub.s32 0, %v959
    %v962 = vsel %vm960, %v961, %v959
    %v963 = vshrl.u32 %v962, 1
    %v964 = vand.u32 %v962, 1
    %v965 = vsub.s32 0, %v964
    %v966 = vsel %vm960, %v965, %v964
    %vm967 = vcmp.ne.s32.totalorder %v966, 0
    %vm968 = vcmp.lt.s32.totalorder %v966, 0
    %vm969 = vmand %vm968, %vm967
    %v970 = vadd.s32 %v966, 2
    %v971 = vsel %vm969, %v970, %v966
    %vm972 = vcmp.eq.s32.totalorder %v956, %v971
    %vm973 = vcmp.eq.s32.totalorder %v957, %v971
    %vm974 = vcmask 261120
    %v976 = vsel %vm974, %v880, 0
    %v979 = vsel %vm974, %v883, 0
    %v982 = vsel %vm974, %v903, 0
    %v985 = vsel %vm974, %v906, 0
    %987 = vmatpush.xpose.msra.mxu0 0.0
    %988 = vmatpush.xpose.msra.mxu0 0.0
    %989 = vmatpush.xpose.msra.mxu0 0.0
    %990 = vmatpush.xpose.msra.mxu0 0.0
    %991 = vmatpush.xpose.msra.mxu0 0.0
    %992 = vmatpush.xpose.msra.mxu0 0.0
    %993 = vmatpush.xpose.msra.mxu0 0.0
    %994 = vmatpush.xpose.msra.mxu0 0.0
    %995 = vmatpush.xpose.msra.mxu0 0.0
    %996 = vmatpush.xpose.msra.mxu0 0.0
    %997 = vmatpush.xpose.msra.mxu0 0.0
    %998 = vmatpush.xpose.msra.mxu0 0.0
    %999 = vmatpush.xpose.msra.mxu0 0.0
    %1000 = vmatpush.xpose.msra.mxu0 0.0
    %1001 = vmatpush.xpose.msra.mxu0 %v985
    %1002 = vmatpush.xpose.msra.mxu0 %v982
    %1003 = vmatmul.f32.gmra.mxu0 %v976
    %v1004 = vpop.f32.mrf.mxu0
    %v1005 = vadd.f32 0.0, %v1004
    %1006 = vmatmul.f32.gmra.mxu0 %v979
    %v1007 = vpop.f32.mrf.mxu0
    %v1008 = vadd.f32 0.0, %v1007
    %1009 = vdwg.mxu0
    %v1010 = vmul.f32 %v1005, 0.17677669
    %v1011 = vmul.f32 %v1008, 0.17677669
    %v1012 = vsel %vm972, %v1010, -1e+30
    %v1013 = vsel %vm973, %v1011, -1e+30
    %vm1014 = vcmask 130048
    %v1015 = vsel %vm1014, %v1012, -inf
    %1016 = vmax.xlane.f32.xlu0 %v1015
    %v1017 = vpop.xlane.xlu0 %1016
    %v1018 = vsel %vm1014, %v1013, -inf
    %1019 = vmax.xlane.f32.xlu0 %v1018
    %v1020 = vpop.xlane.xlu0 %1019
    %v1021 = vsub.f32 %v1012, %v1017
    %v1022 = vsub.f32 %v1013, %v1020
    %v1023 = vmul.f32 %v1021, 1.442695
    %v1024 = vpow.pop %v1023
    %v1025 = vmul.f32 %v1022, 1.442695
    %v1026 = vpow.pop %v1025
    %v1027 = vsel %vm1014, %v1024, 0.0
    %1028 = vadd.xlane.f32.xlu0 %v1027
    %v1029 = vpop.xlane.xlu0 %1028
    %v1030 = vsel %vm1014, %v1026, 0.0
    %1031 = vadd.xlane.f32.xlu0 %v1030
    %v1032 = vpop.xlane.xlu0 %1031
    %v1033 = vrcp.pop %v1029
    %v1034 = vrcp.pop %v1032
    %v1035 = vmul.f32 %v1024, %v1033
    %v1036 = vmul.f32 %v1026, %v1034
    %v1038 = vsel %vm1014, %v1035, 0
    %v1041 = vsel %vm1014, %v1036, 0
    %1043 = vmatpush.msra.mxu0 0.0
    %1044 = vmatpush.msra.mxu0 0.0
    %1045 = vmatpush.msra.mxu0 0.0
    %1046 = vmatpush.msra.mxu0 0.0
    %1047 = vmatpush.msra.mxu0 0.0
    %1048 = vmatpush.msra.mxu0 0.0
    %1049 = vmatpush.msra.mxu0 0.0
    %1050 = vmatpush.msra.mxu0 0.0
    %1051 = vmatpush.msra.mxu0 0.0
    %1052 = vmatpush.msra.mxu0 0.0
    %1053 = vmatpush.msra.mxu0 0.0
    %1054 = vmatpush.msra.mxu0 0.0
    %1055 = vmatpush.msra.mxu0 0.0
    %1056 = vmatpush.msra.mxu0 0.0
    %1057 = vmatpush.msra.mxu0 %v929
    %1058 = vmatpush.msra.mxu0 %v926
    %1059 = vmatmul.f32.gmra.mxu0 %v1038
    %v1060 = vpop.f32.mrf.mxu0
    %v1061 = vadd.f32 0.0, %v1060
    %1062 = vmatmul.f32.gmra.mxu0 %v1041
    %v1063 = vpop.f32.mrf.mxu0
    %v1064 = vadd.f32 0.0, %v1063
    %1065 = vdwg.mxu0
    %1066 = vrot.lane.b32.xlu0 %v880, 96
    %v1067 = vpop.permute.xlu0 %1066
    %1068 = vrot.lane.b32.xlu0 %v883, 96
    %v1069 = vpop.permute.xlu0 %1068
    %1070 = vrot.lane.b32.xlu0 %v903, 96
    %v1071 = vpop.permute.xlu0 %1070
    %1072 = vrot.lane.b32.xlu0 %v906, 96
    %v1073 = vpop.permute.xlu0 %1072
    %v1074 = vsel %vm974, %v1067, 0
    %v1076 = vsel %vm974, %v1069, 0
    %v1078 = vsel %vm974, %v1071, 0
    %v1080 = vsel %vm974, %v1073, 0
    %1082 = vmatpush.xpose.msra.mxu0 0.0
    %1083 = vmatpush.xpose.msra.mxu0 0.0
    %1084 = vmatpush.xpose.msra.mxu0 0.0
    %1085 = vmatpush.xpose.msra.mxu0 0.0
    %1086 = vmatpush.xpose.msra.mxu0 0.0
    %1087 = vmatpush.xpose.msra.mxu0 0.0
    %1088 = vmatpush.xpose.msra.mxu0 0.0
    %1089 = vmatpush.xpose.msra.mxu0 0.0
    %1090 = vmatpush.xpose.msra.mxu0 0.0
    %1091 = vmatpush.xpose.msra.mxu0 0.0
    %1092 = vmatpush.xpose.msra.mxu0 0.0
    %1093 = vmatpush.xpose.msra.mxu0 0.0
    %1094 = vmatpush.xpose.msra.mxu0 0.0
    %1095 = vmatpush.xpose.msra.mxu0 0.0
    %1096 = vmatpush.xpose.msra.mxu0 %v1080
    %1097 = vmatpush.xpose.msra.mxu0 %v1078
    %1098 = vmatmul.f32.gmra.mxu0 %v1074
    %v1099 = vpop.f32.mrf.mxu0
    %v1100 = vadd.f32 0.0, %v1099
    %1101 = vmatmul.f32.gmra.mxu0 %v1076
    %v1102 = vpop.f32.mrf.mxu0
    %v1103 = vadd.f32 0.0, %v1102
    %1104 = vdwg.mxu0
    %v1105 = vmul.f32 %v1100, 0.17677669
    %v1106 = vmul.f32 %v1103, 0.17677669
    %v1107 = vsel %vm972, %v1105, -1e+30
    %v1108 = vsel %vm973, %v1106, -1e+30
    %v1109 = vsel %vm1014, %v1107, -inf
    %1110 = vmax.xlane.f32.xlu0 %v1109
    %v1111 = vpop.xlane.xlu0 %1110
    %v1112 = vsel %vm1014, %v1108, -inf
    %1113 = vmax.xlane.f32.xlu0 %v1112
    %v1114 = vpop.xlane.xlu0 %1113
    %v1115 = vsub.f32 %v1107, %v1111
    %v1116 = vsub.f32 %v1108, %v1114
    %v1117 = vmul.f32 %v1115, 1.442695
    %v1118 = vpow.pop %v1117
    %v1119 = vmul.f32 %v1116, 1.442695
    %v1120 = vpow.pop %v1119
    %v1121 = vsel %vm1014, %v1118, 0.0
    %1122 = vadd.xlane.f32.xlu0 %v1121
    %v1123 = vpop.xlane.xlu0 %1122
    %v1124 = vsel %vm1014, %v1120, 0.0
    %1125 = vadd.xlane.f32.xlu0 %v1124
    %v1126 = vpop.xlane.xlu0 %1125
    %v1127 = vrcp.pop %v1123
    %v1128 = vrcp.pop %v1126
    %v1129 = vmul.f32 %v1118, %v1127
    %v1130 = vmul.f32 %v1120, %v1128
    %1133 = vrot.lane.b32.xlu0 %v926, 96
    %v1134 = vpop.permute.xlu0 %1133
    %1135 = vrot.lane.b32.xlu0 %v929, 96
    %v1136 = vpop.permute.xlu0 %1135
    %v1140 = vsel %vm1014, %v1129, 0
    %v1143 = vsel %vm1014, %v1130, 0
    %1145 = vmatpush.msra.mxu0 0.0
    %1146 = vmatpush.msra.mxu0 0.0
    %1147 = vmatpush.msra.mxu0 0.0
    %1148 = vmatpush.msra.mxu0 0.0
    %1149 = vmatpush.msra.mxu0 0.0
    %1150 = vmatpush.msra.mxu0 0.0
    %1151 = vmatpush.msra.mxu0 0.0
    %1152 = vmatpush.msra.mxu0 0.0
    %1153 = vmatpush.msra.mxu0 0.0
    %1154 = vmatpush.msra.mxu0 0.0
    %1155 = vmatpush.msra.mxu0 0.0
    %1156 = vmatpush.msra.mxu0 0.0
    %1157 = vmatpush.msra.mxu0 0.0
    %1158 = vmatpush.msra.mxu0 0.0
    %1159 = vmatpush.msra.mxu0 %v1136
    %1160 = vmatpush.msra.mxu0 %v1134
    %1161 = vmatmul.f32.gmra.mxu0 %v1140
    %v1162 = vpop.f32.mrf.mxu0
    %v1163 = vadd.f32 0.0, %v1162
    %1164 = vmatmul.f32.gmra.mxu0 %v1143
    %v1165 = vpop.f32.mrf.mxu0
    %v1166 = vadd.f32 0.0, %v1165
    %1167 = vdwg.mxu0
    %v1169 = vsel %vm974, %v1163, 0
    %v1172 = vsel %vm974, %v1166, 0
    %1174 = vmatpush.msra.mxu0 0.0
    %1175 = vmatpush.msra.mxu0 0.0
    %1176 = vmatpush.msra.mxu0 0.0
    %1177 = vmatpush.msra.mxu0 0.0
    %1178 = vmatpush.msra.mxu0 0.0
    %1179 = vmatpush.msra.mxu0 0.0
    %1180 = vmatpush.msra.mxu0 0.0
    %1181 = vmatpush.msra.mxu0 0.0
    %1182 = vmatpush.msra.mxu0 0.0
    %1183 = vmatpush.msra.mxu0 0.0
    %1184 = vmatpush.msra.mxu0 0.0
    %1185 = vmatpush.msra.mxu0 0.0
    %1186 = vmatpush.msra.mxu0 %v326
    %1187 = vmatpush.msra.mxu0 %v325
    %1188 = vmatpush.msra.mxu0 %v324
    %1189 = vmatpush.msra.mxu0 %v323
    %1190 = vmatmul.f32.gmra.mxu0 %v1169
    %v1191 = vpop.f32.mrf.mxu0
    %v1192 = vadd.f32 0.0, %v1191
    %1193 = vmatmul.f32.gmra.mxu0 %v1172
    %v1194 = vpop.f32.mrf.mxu0
    %v1195 = vadd.f32 0.0, %v1194
    %1196 = vdwg.mxu0
    %v1198 = vsel %vm974, %v1061, 0
    %v1201 = vsel %vm974, %v1064, 0
    %1203 = vmatpush.msra.mxu0 0.0
    %1204 = vmatpush.msra.mxu0 0.0
    %1205 = vmatpush.msra.mxu0 0.0
    %1206 = vmatpush.msra.mxu0 0.0
    %1207 = vmatpush.msra.mxu0 0.0
    %1208 = vmatpush.msra.mxu0 0.0
    %1209 = vmatpush.msra.mxu0 0.0
    %1210 = vmatpush.msra.mxu0 0.0
    %1211 = vmatpush.msra.mxu0 0.0
    %1212 = vmatpush.msra.mxu0 0.0
    %1213 = vmatpush.msra.mxu0 0.0
    %1214 = vmatpush.msra.mxu0 0.0
    %1215 = vmatpush.msra.mxu0 %v322
    %1216 = vmatpush.msra.mxu0 %v321
    %1217 = vmatpush.msra.mxu0 %v320
    %1218 = vmatpush.msra.mxu0 %v319
    %1219 = vmatmul.f32.gmra.mxu0 %v1198
    %v1220 = vpop.f32.mrf.mxu0
    %v1221 = vadd.f32 %v1192, %v1220
    %1222 = vmatmul.f32.gmra.mxu0 %v1201
    %v1223 = vpop.f32.mrf.mxu0
    %v1224 = vadd.f32 %v1195, %v1223
    %1225 = vdwg.mxu0
    %1226 = vrot.lane.b32.xlu0 %v880, 64
    %v1227 = vpop.permute.xlu0 %1226
    %1228 = vrot.lane.b32.xlu0 %v883, 64
    %v1229 = vpop.permute.xlu0 %1228
    %1230 = vrot.lane.b32.xlu0 %v903, 64
    %v1231 = vpop.permute.xlu0 %1230
    %1232 = vrot.lane.b32.xlu0 %v906, 64
    %v1233 = vpop.permute.xlu0 %1232
    %v1234 = vsel %vm974, %v1227, 0
    %v1236 = vsel %vm974, %v1229, 0
    %v1238 = vsel %vm974, %v1231, 0
    %v1240 = vsel %vm974, %v1233, 0
    %1242 = vmatpush.xpose.msra.mxu0 0.0
    %1243 = vmatpush.xpose.msra.mxu0 0.0
    %1244 = vmatpush.xpose.msra.mxu0 0.0
    %1245 = vmatpush.xpose.msra.mxu0 0.0
    %1246 = vmatpush.xpose.msra.mxu0 0.0
    %1247 = vmatpush.xpose.msra.mxu0 0.0
    %1248 = vmatpush.xpose.msra.mxu0 0.0
    %1249 = vmatpush.xpose.msra.mxu0 0.0
    %1250 = vmatpush.xpose.msra.mxu0 0.0
    %1251 = vmatpush.xpose.msra.mxu0 0.0
    %1252 = vmatpush.xpose.msra.mxu0 0.0
    %1253 = vmatpush.xpose.msra.mxu0 0.0
    %1254 = vmatpush.xpose.msra.mxu0 0.0
    %1255 = vmatpush.xpose.msra.mxu0 0.0
    %1256 = vmatpush.xpose.msra.mxu0 %v1240
    %1257 = vmatpush.xpose.msra.mxu0 %v1238
    %1258 = vmatmul.f32.gmra.mxu0 %v1234
    %v1259 = vpop.f32.mrf.mxu0
    %v1260 = vadd.f32 0.0, %v1259
    %1261 = vmatmul.f32.gmra.mxu0 %v1236
    %v1262 = vpop.f32.mrf.mxu0
    %v1263 = vadd.f32 0.0, %v1262
    %1264 = vdwg.mxu0
    %v1265 = vmul.f32 %v1260, 0.17677669
    %v1266 = vmul.f32 %v1263, 0.17677669
    %v1267 = vsel %vm972, %v1265, -1e+30
    %v1268 = vsel %vm973, %v1266, -1e+30
    %v1269 = vsel %vm1014, %v1267, -inf
    %1270 = vmax.xlane.f32.xlu0 %v1269
    %v1271 = vpop.xlane.xlu0 %1270
    %v1272 = vsel %vm1014, %v1268, -inf
    %1273 = vmax.xlane.f32.xlu0 %v1272
    %v1274 = vpop.xlane.xlu0 %1273
    %v1275 = vsub.f32 %v1267, %v1271
    %v1276 = vsub.f32 %v1268, %v1274
    %v1277 = vmul.f32 %v1275, 1.442695
    %v1278 = vpow.pop %v1277
    %v1279 = vmul.f32 %v1276, 1.442695
    %v1280 = vpow.pop %v1279
    %v1281 = vsel %vm1014, %v1278, 0.0
    %1282 = vadd.xlane.f32.xlu0 %v1281
    %v1283 = vpop.xlane.xlu0 %1282
    %v1284 = vsel %vm1014, %v1280, 0.0
    %1285 = vadd.xlane.f32.xlu0 %v1284
    %v1286 = vpop.xlane.xlu0 %1285
    %v1287 = vrcp.pop %v1283
    %v1288 = vrcp.pop %v1286
    %v1289 = vmul.f32 %v1278, %v1287
    %v1290 = vmul.f32 %v1280, %v1288
    %1291 = vrot.lane.b32.xlu0 %v926, 64
    %v1292 = vpop.permute.xlu0 %1291
    %1293 = vrot.lane.b32.xlu0 %v929, 64
    %v1294 = vpop.permute.xlu0 %1293
    %v1298 = vsel %vm1014, %v1289, 0
    %v1301 = vsel %vm1014, %v1290, 0
    %1303 = vmatpush.msra.mxu0 0.0
    %1304 = vmatpush.msra.mxu0 0.0
    %1305 = vmatpush.msra.mxu0 0.0
    %1306 = vmatpush.msra.mxu0 0.0
    %1307 = vmatpush.msra.mxu0 0.0
    %1308 = vmatpush.msra.mxu0 0.0
    %1309 = vmatpush.msra.mxu0 0.0
    %1310 = vmatpush.msra.mxu0 0.0
    %1311 = vmatpush.msra.mxu0 0.0
    %1312 = vmatpush.msra.mxu0 0.0
    %1313 = vmatpush.msra.mxu0 0.0
    %1314 = vmatpush.msra.mxu0 0.0
    %1315 = vmatpush.msra.mxu0 0.0
    %1316 = vmatpush.msra.mxu0 0.0
    %1317 = vmatpush.msra.mxu0 %v1294
    %1318 = vmatpush.msra.mxu0 %v1292
    %1319 = vmatmul.f32.gmra.mxu0 %v1298
    %v1320 = vpop.f32.mrf.mxu0
    %v1321 = vadd.f32 0.0, %v1320
    %1322 = vmatmul.f32.gmra.mxu0 %v1301
    %v1323 = vpop.f32.mrf.mxu0
    %v1324 = vadd.f32 0.0, %v1323
    %1325 = vdwg.mxu0
    %v1327 = vsel %vm974, %v1321, 0
    %v1330 = vsel %vm974, %v1324, 0
    %1332 = vmatpush.msra.mxu0 0.0
    %1333 = vmatpush.msra.mxu0 0.0
    %1334 = vmatpush.msra.mxu0 0.0
    %1335 = vmatpush.msra.mxu0 0.0
    %1336 = vmatpush.msra.mxu0 0.0
    %1337 = vmatpush.msra.mxu0 0.0
    %1338 = vmatpush.msra.mxu0 0.0
    %1339 = vmatpush.msra.mxu0 0.0
    %1340 = vmatpush.msra.mxu0 0.0
    %1341 = vmatpush.msra.mxu0 0.0
    %1342 = vmatpush.msra.mxu0 0.0
    %1343 = vmatpush.msra.mxu0 0.0
    %1344 = vmatpush.msra.mxu0 %v330
    %1345 = vmatpush.msra.mxu0 %v329
    %1346 = vmatpush.msra.mxu0 %v328
    %1347 = vmatpush.msra.mxu0 %v327
    %1348 = vmatmul.f32.gmra.mxu0 %v1327
    %v1349 = vpop.f32.mrf.mxu0
    %v1350 = vadd.f32 0.0, %v1349
    %1351 = vmatmul.f32.gmra.mxu0 %v1330
    %v1352 = vpop.f32.mrf.mxu0
    %v1353 = vadd.f32 0.0, %v1352
    %1354 = vdwg.mxu0
    %v1355 = vadd.f32 %v1221, %v1350
    %v1356 = vadd.f32 %v1224, %v1353
    %1357 = vrot.lane.b32.xlu0 %v880, 32
    %v1358 = vpop.permute.xlu0 %1357
    %1359 = vrot.lane.b32.xlu0 %v883, 32
    %v1360 = vpop.permute.xlu0 %1359
    %1361 = vrot.lane.b32.xlu0 %v903, 32
    %v1362 = vpop.permute.xlu0 %1361
    %1363 = vrot.lane.b32.xlu0 %v906, 32
    %v1364 = vpop.permute.xlu0 %1363
    %v1365 = vsel %vm974, %v1358, 0
    %v1367 = vsel %vm974, %v1360, 0
    %v1369 = vsel %vm974, %v1362, 0
    %v1371 = vsel %vm974, %v1364, 0
    %1373 = vmatpush.xpose.msra.mxu0 0.0
    %1374 = vmatpush.xpose.msra.mxu0 0.0
    %1375 = vmatpush.xpose.msra.mxu0 0.0
    %1376 = vmatpush.xpose.msra.mxu0 0.0
    %1377 = vmatpush.xpose.msra.mxu0 0.0
    %1378 = vmatpush.xpose.msra.mxu0 0.0
    %1379 = vmatpush.xpose.msra.mxu0 0.0
    %1380 = vmatpush.xpose.msra.mxu0 0.0
    %1381 = vmatpush.xpose.msra.mxu0 0.0
    %1382 = vmatpush.xpose.msra.mxu0 0.0
    %1383 = vmatpush.xpose.msra.mxu0 0.0
    %1384 = vmatpush.xpose.msra.mxu0 0.0
    %1385 = vmatpush.xpose.msra.mxu0 0.0
    %1386 = vmatpush.xpose.msra.mxu0 0.0
    %1387 = vmatpush.xpose.msra.mxu0 %v1371
    %1388 = vmatpush.xpose.msra.mxu0 %v1369
    %1389 = vmatmul.f32.gmra.mxu0 %v1365
    %v1390 = vpop.f32.mrf.mxu0
    %v1391 = vadd.f32 0.0, %v1390
    %1392 = vmatmul.f32.gmra.mxu0 %v1367
    %v1393 = vpop.f32.mrf.mxu0
    %v1394 = vadd.f32 0.0, %v1393
    %1395 = vdwg.mxu0
    %v1396 = vmul.f32 %v1391, 0.17677669
    %v1397 = vmul.f32 %v1394, 0.17677669
    %v1398 = vsel %vm972, %v1396, -1e+30
    %v1399 = vsel %vm973, %v1397, -1e+30
    %v1400 = vsel %vm1014, %v1398, -inf
    %1401 = vmax.xlane.f32.xlu0 %v1400
    %v1402 = vpop.xlane.xlu0 %1401
    %v1403 = vsel %vm1014, %v1399, -inf
    %1404 = vmax.xlane.f32.xlu0 %v1403
    %v1405 = vpop.xlane.xlu0 %1404
    %v1406 = vsub.f32 %v1398, %v1402
    %v1407 = vsub.f32 %v1399, %v1405
    %v1408 = vmul.f32 %v1406, 1.442695
    %v1409 = vpow.pop %v1408
    %v1410 = vmul.f32 %v1407, 1.442695
    %v1411 = vpow.pop %v1410
    %v1412 = vsel %vm1014, %v1409, 0.0
    %1413 = vadd.xlane.f32.xlu0 %v1412
    %v1414 = vpop.xlane.xlu0 %1413
    %v1415 = vsel %vm1014, %v1411, 0.0
    %1416 = vadd.xlane.f32.xlu0 %v1415
    %v1417 = vpop.xlane.xlu0 %1416
    %v1418 = vrcp.pop %v1414
    %v1419 = vrcp.pop %v1417
    %v1420 = vmul.f32 %v1409, %v1418
    %v1421 = vmul.f32 %v1411, %v1419
    %1422 = vrot.lane.b32.xlu0 %v926, 32
    %v1423 = vpop.permute.xlu0 %1422
    %1424 = vrot.lane.b32.xlu0 %v929, 32
    %v1425 = vpop.permute.xlu0 %1424
    %v1429 = vsel %vm1014, %v1420, 0
    %v1432 = vsel %vm1014, %v1421, 0
    %1434 = vmatpush.msra.mxu0 0.0
    %1435 = vmatpush.msra.mxu0 0.0
    %1436 = vmatpush.msra.mxu0 0.0
    %1437 = vmatpush.msra.mxu0 0.0
    %1438 = vmatpush.msra.mxu0 0.0
    %1439 = vmatpush.msra.mxu0 0.0
    %1440 = vmatpush.msra.mxu0 0.0
    %1441 = vmatpush.msra.mxu0 0.0
    %1442 = vmatpush.msra.mxu0 0.0
    %1443 = vmatpush.msra.mxu0 0.0
    %1444 = vmatpush.msra.mxu0 0.0
    %1445 = vmatpush.msra.mxu0 0.0
    %1446 = vmatpush.msra.mxu0 0.0
    %1447 = vmatpush.msra.mxu0 0.0
    %1448 = vmatpush.msra.mxu0 %v1425
    %1449 = vmatpush.msra.mxu0 %v1423
    %1450 = vmatmul.f32.gmra.mxu0 %v1429
    %v1451 = vpop.f32.mrf.mxu0
    %v1452 = vadd.f32 0.0, %v1451
    %1453 = vmatmul.f32.gmra.mxu0 %v1432
    %v1454 = vpop.f32.mrf.mxu0
    %v1455 = vadd.f32 0.0, %v1454
    %1456 = vdwg.mxu0
    %v1458 = vsel %vm974, %v1452, 0
    %v1461 = vsel %vm974, %v1455, 0
    %1463 = vmatpush.msra.mxu0 0.0
    %1464 = vmatpush.msra.mxu0 0.0
    %1465 = vmatpush.msra.mxu0 0.0
    %1466 = vmatpush.msra.mxu0 0.0
    %1467 = vmatpush.msra.mxu0 0.0
    %1468 = vmatpush.msra.mxu0 0.0
    %1469 = vmatpush.msra.mxu0 0.0
    %1470 = vmatpush.msra.mxu0 0.0
    %1471 = vmatpush.msra.mxu0 0.0
    %1472 = vmatpush.msra.mxu0 0.0
    %1473 = vmatpush.msra.mxu0 0.0
    %1474 = vmatpush.msra.mxu0 0.0
    %1475 = vmatpush.msra.mxu0 %v334
    %1476 = vmatpush.msra.mxu0 %v333
    %1477 = vmatpush.msra.mxu0 %v332
    %1478 = vmatpush.msra.mxu0 %v331
    %1479 = vmatmul.f32.gmra.mxu0 %v1458
    %v1480 = vpop.f32.mrf.mxu0
    %v1481 = vadd.f32 0.0, %v1480
    %1482 = vmatmul.f32.gmra.mxu0 %v1461
    %v1483 = vpop.f32.mrf.mxu0
    %v1484 = vadd.f32 0.0, %v1483
    %1485 = vdwg.mxu0
    %v1486 = vadd.f32 %v1355, %v1481
    %v1487 = vadd.f32 %v1356, %v1484
    %v1489 = vperm.slane %v335, 0
    %v1491 = vadd.f32 %v1486, %v1489
    %v1492 = vadd.f32 %v1487, %v1489
    %v1493 = vadd.f32 %v265, %v1491
    %v1494 = vadd.f32 %v268, %v1492
    %1495 = vadd.xlane.f32.xlu0 %v1493
    %v1496 = vpop.xlane.xlu0 %1495
    %1497 = vadd.xlane.f32.xlu0 %v1494
    %v1498 = vpop.xlane.xlu0 %1497
    %v1499 = vrcp.pop 128.0
    %v1500 = vmul.f32 128.0, %v1499
    %v1501 = vsub.f32 1.0, %v1500
    %v1502 = vmul.f32 %v1499, %v1501
    %v1503 = vadd.f32 %v1499, %v1502
    %vm1504 = vweird.f32 %v1499
    %v1505 = vsel %vm1504, %v1499, %v1503
    %v1506 = vmul.f32 %v1496, %v1505
    %v1507 = vmul.f32 %v1498, %v1505
    %v1508 = vsub.f32 %v1493, %v1506
    %v1509 = vsub.f32 %v1494, %v1507
    %v1510 = vmul.f32 %v1508, %v1508
    %v1511 = vmul.f32 %v1509, %v1509
    %1512 = vadd.xlane.f32.xlu0 %v1510
    %v1513 = vpop.xlane.xlu0 %1512
    %1514 = vadd.xlane.f32.xlu0 %v1511
    %v1515 = vpop.xlane.xlu0 %1514
    %v1516 = vmul.f32 %v1513, %v1505
    %v1517 = vmul.f32 %v1515, %v1505
    %v1518 = vadd.f32 %v1516, 1e-05
    %v1519 = vadd.f32 %v1517, 1e-05
    %v1520 = vrsqrt.pop %v1518
    %v1521 = vmul.f32 %v1520, %v1518
    %v1522 = vmul.f32 %v1521, %v1520
    %v1523 = vmul.f32 0.5, %v1522
    %v1524 = vsub.f32 1.5, %v1523
    %v1525 = vmul.f32 %v1520, %v1524
    %vm1526 = vweird.f32 %v1518
    %vm1527 = vweird.f32 %v1520
    %vm1528 = vmor %vm1526, %vm1527
    %v1529 = vsel %vm1528, %v1520, %v1525
    %v1530 = vrsqrt.pop %v1519
    %v1531 = vmul.f32 %v1530, %v1519
    %v1532 = vmul.f32 %v1531, %v1530
    %v1533 = vmul.f32 0.5, %v1532
    %v1534 = vsub.f32 1.5, %v1533
    %v1535 = vmul.f32 %v1530, %v1534
    %vm1536 = vweird.f32 %v1519
    %vm1537 = vweird.f32 %v1530
    %vm1538 = vmor %vm1536, %vm1537
    %v1539 = vsel %vm1538, %v1530, %v1535
    %v1540 = vmul.f32 %v1508, %v1529
    %v1541 = vmul.f32 %v1509, %v1539
    %v1543 = vperm.slane %v336, 0
    %v1545 = vmul.f32 %v1540, %v1543
    %v1546 = vmul.f32 %v1541, %v1543
    %v1548 = vperm.slane %v337, 0
    %v1550 = vadd.f32 %v1545, %v1548
    %v1551 = vadd.f32 %v1546, %v1548
    %v1554 = vperm.slane %v594, 0
    %v1555 = vperm.slane %v594, 1
    %v1556 = vperm.slane %v594, 2
    %v1557 = vperm.slane %v594, 3
    %v1558 = vperm.slane %v594, 4
    %v1559 = vperm.slane %v594, 5
    %v1560 = vperm.slane %v594, 6
    %v1561 = vperm.slane %v594, 7
    %v1562 = vperm.slane %v595, 0
    %v1563 = vperm.slane %v595, 1
    %v1564 = vperm.slane %v595, 2
    %v1565 = vperm.slane %v595, 3
    %v1566 = vperm.slane %v595, 4
    %v1567 = vperm.slane %v595, 5
    %v1568 = vperm.slane %v595, 6
    %v1569 = vperm.slane %v595, 7
    %1586 = vmatpush.msra.mxu0 %v578
    %1587 = vmatpush.msra.mxu0 %v562
    %1588 = vmatpush.msra.mxu0 %v546
    %1589 = vmatpush.msra.mxu0 %v530
    %1590 = vmatpush.msra.mxu0 %v514
    %1591 = vmatpush.msra.mxu0 %v498
    %1592 = vmatpush.msra.mxu0 %v482
    %1593 = vmatpush.msra.mxu0 %v466
    %1594 = vmatpush.msra.mxu0 %v450
    %1595 = vmatpush.msra.mxu0 %v434
    %1596 = vmatpush.msra.mxu0 %v418
    %1597 = vmatpush.msra.mxu0 %v402
    %1598 = vmatpush.msra.mxu0 %v386
    %1599 = vmatpush.msra.mxu0 %v370
    %1600 = vmatpush.msra.mxu0 %v354
    %1601 = vmatpush.msra.mxu0 %v338
    %1602 = vmatmul.f32.gmra.mxu0 %v1550
    %v1603 = vpop.f32.mrf.mxu0
    %v1604 = vadd.f32 %v1554, %v1603
    %1605 = vmatmul.f32.gmra.mxu0 %v1551
    %v1606 = vpop.f32.mrf.mxu0
    %v1607 = vadd.f32 %v1554, %v1606
    %1608 = vdwg.mxu0
    %1609 = vmatpush.msra.mxu0 %v579
    %1610 = vmatpush.msra.mxu0 %v563
    %1611 = vmatpush.msra.mxu0 %v547
    %1612 = vmatpush.msra.mxu0 %v531
    %1613 = vmatpush.msra.mxu0 %v515
    %1614 = vmatpush.msra.mxu0 %v499
    %1615 = vmatpush.msra.mxu0 %v483
    %1616 = vmatpush.msra.mxu0 %v467
    %1617 = vmatpush.msra.mxu0 %v451
    %1618 = vmatpush.msra.mxu0 %v435
    %1619 = vmatpush.msra.mxu0 %v419
    %1620 = vmatpush.msra.mxu0 %v403
    %1621 = vmatpush.msra.mxu0 %v387
    %1622 = vmatpush.msra.mxu0 %v371
    %1623 = vmatpush.msra.mxu0 %v355
    %1624 = vmatpush.msra.mxu0 %v339
    %1625 = vmatmul.f32.gmra.mxu0 %v1550
    %v1626 = vpop.f32.mrf.mxu0
    %v1627 = vadd.f32 %v1555, %v1626
    %1628 = vmatmul.f32.gmra.mxu0 %v1551
    %v1629 = vpop.f32.mrf.mxu0
    %v1630 = vadd.f32 %v1555, %v1629
    %1631 = vdwg.mxu0
    %1632 = vmatpush.msra.mxu0 %v580
    %1633 = vmatpush.msra.mxu0 %v564
    %1634 = vmatpush.msra.mxu0 %v548
    %1635 = vmatpush.msra.mxu0 %v532
    %1636 = vmatpush.msra.mxu0 %v516
    %1637 = vmatpush.msra.mxu0 %v500
    %1638 = vmatpush.msra.mxu0 %v484
    %1639 = vmatpush.msra.mxu0 %v468
    %1640 = vmatpush.msra.mxu0 %v452
    %1641 = vmatpush.msra.mxu0 %v436
    %1642 = vmatpush.msra.mxu0 %v420
    %1643 = vmatpush.msra.mxu0 %v404
    %1644 = vmatpush.msra.mxu0 %v388
    %1645 = vmatpush.msra.mxu0 %v372
    %1646 = vmatpush.msra.mxu0 %v356
    %1647 = vmatpush.msra.mxu0 %v340
    %1648 = vmatmul.f32.gmra.mxu0 %v1550
    %v1649 = vpop.f32.mrf.mxu0
    %v1650 = vadd.f32 %v1556, %v1649
    %1651 = vmatmul.f32.gmra.mxu0 %v1551
    %v1652 = vpop.f32.mrf.mxu0
    %v1653 = vadd.f32 %v1556, %v1652
    %1654 = vdwg.mxu0
    %1655 = vmatpush.msra.mxu0 %v581
    %1656 = vmatpush.msra.mxu0 %v565
    %1657 = vmatpush.msra.mxu0 %v549
    %1658 = vmatpush.msra.mxu0 %v533
    %1659 = vmatpush.msra.mxu0 %v517
    %1660 = vmatpush.msra.mxu0 %v501
    %1661 = vmatpush.msra.mxu0 %v485
    %1662 = vmatpush.msra.mxu0 %v469
    %1663 = vmatpush.msra.mxu0 %v453
    %1664 = vmatpush.msra.mxu0 %v437
    %1665 = vmatpush.msra.mxu0 %v421
    %1666 = vmatpush.msra.mxu0 %v405
    %1667 = vmatpush.msra.mxu0 %v389
    %1668 = vmatpush.msra.mxu0 %v373
    %1669 = vmatpush.msra.mxu0 %v357
    %1670 = vmatpush.msra.mxu0 %v341
    %1671 = vmatmul.f32.gmra.mxu0 %v1550
    %v1672 = vpop.f32.mrf.mxu0
    %v1673 = vadd.f32 %v1557, %v1672
    %1674 = vmatmul.f32.gmra.mxu0 %v1551
    %v1675 = vpop.f32.mrf.mxu0
    %v1676 = vadd.f32 %v1557, %v1675
    %1677 = vdwg.mxu0
    %1678 = vmatpush.msra.mxu0 %v582
    %1679 = vmatpush.msra.mxu0 %v566
    %1680 = vmatpush.msra.mxu0 %v550
    %1681 = vmatpush.msra.mxu0 %v534
    %1682 = vmatpush.msra.mxu0 %v518
    %1683 = vmatpush.msra.mxu0 %v502
    %1684 = vmatpush.msra.mxu0 %v486
    %1685 = vmatpush.msra.mxu0 %v470
    %1686 = vmatpush.msra.mxu0 %v454
    %1687 = vmatpush.msra.mxu0 %v438
    %1688 = vmatpush.msra.mxu0 %v422
    %1689 = vmatpush.msra.mxu0 %v406
    %1690 = vmatpush.msra.mxu0 %v390
    %1691 = vmatpush.msra.mxu0 %v374
    %1692 = vmatpush.msra.mxu0 %v358
    %1693 = vmatpush.msra.mxu0 %v342
    %1694 = vmatmul.f32.gmra.mxu0 %v1550
    %v1695 = vpop.f32.mrf.mxu0
    %v1696 = vadd.f32 %v1558, %v1695
    %1697 = vmatmul.f32.gmra.mxu0 %v1551
    %v1698 = vpop.f32.mrf.mxu0
    %v1699 = vadd.f32 %v1558, %v1698
    %1700 = vdwg.mxu0
    %1701 = vmatpush.msra.mxu0 %v583
    %1702 = vmatpush.msra.mxu0 %v567
    %1703 = vmatpush.msra.mxu0 %v551
    %1704 = vmatpush.msra.mxu0 %v535
    %1705 = vmatpush.msra.mxu0 %v519
    %1706 = vmatpush.msra.mxu0 %v503
    %1707 = vmatpush.msra.mxu0 %v487
    %1708 = vmatpush.msra.mxu0 %v471
    %1709 = vmatpush.msra.mxu0 %v455
    %1710 = vmatpush.msra.mxu0 %v439
    %1711 = vmatpush.msra.mxu0 %v423
    %1712 = vmatpush.msra.mxu0 %v407
    %1713 = vmatpush.msra.mxu0 %v391
    %1714 = vmatpush.msra.mxu0 %v375
    %1715 = vmatpush.msra.mxu0 %v359
    %1716 = vmatpush.msra.mxu0 %v343
    %1717 = vmatmul.f32.gmra.mxu0 %v1550
    %v1718 = vpop.f32.mrf.mxu0
    %v1719 = vadd.f32 %v1559, %v1718
    %1720 = vmatmul.f32.gmra.mxu0 %v1551
    %v1721 = vpop.f32.mrf.mxu0
    %v1722 = vadd.f32 %v1559, %v1721
    %1723 = vdwg.mxu0
    %1724 = vmatpush.msra.mxu0 %v584
    %1725 = vmatpush.msra.mxu0 %v568
    %1726 = vmatpush.msra.mxu0 %v552
    %1727 = vmatpush.msra.mxu0 %v536
    %1728 = vmatpush.msra.mxu0 %v520
    %1729 = vmatpush.msra.mxu0 %v504
    %1730 = vmatpush.msra.mxu0 %v488
    %1731 = vmatpush.msra.mxu0 %v472
    %1732 = vmatpush.msra.mxu0 %v456
    %1733 = vmatpush.msra.mxu0 %v440
    %1734 = vmatpush.msra.mxu0 %v424
    %1735 = vmatpush.msra.mxu0 %v408
    %1736 = vmatpush.msra.mxu0 %v392
    %1737 = vmatpush.msra.mxu0 %v376
    %1738 = vmatpush.msra.mxu0 %v360
    %1739 = vmatpush.msra.mxu0 %v344
    %1740 = vmatmul.f32.gmra.mxu0 %v1550
    %v1741 = vpop.f32.mrf.mxu0
    %v1742 = vadd.f32 %v1560, %v1741
    %1743 = vmatmul.f32.gmra.mxu0 %v1551
    %v1744 = vpop.f32.mrf.mxu0
    %v1745 = vadd.f32 %v1560, %v1744
    %1746 = vdwg.mxu0
    %1747 = vmatpush.msra.mxu0 %v585
    %1748 = vmatpush.msra.mxu0 %v569
    %1749 = vmatpush.msra.mxu0 %v553
    %1750 = vmatpush.msra.mxu0 %v537
    %1751 = vmatpush.msra.mxu0 %v521
    %1752 = vmatpush.msra.mxu0 %v505
    %1753 = vmatpush.msra.mxu0 %v489
    %1754 = vmatpush.msra.mxu0 %v473
    %1755 = vmatpush.msra.mxu0 %v457
    %1756 = vmatpush.msra.mxu0 %v441
    %1757 = vmatpush.msra.mxu0 %v425
    %1758 = vmatpush.msra.mxu0 %v409
    %1759 = vmatpush.msra.mxu0 %v393
    %1760 = vmatpush.msra.mxu0 %v377
    %1761 = vmatpush.msra.mxu0 %v361
    %1762 = vmatpush.msra.mxu0 %v345
    %1763 = vmatmul.f32.gmra.mxu0 %v1550
    %v1764 = vpop.f32.mrf.mxu0
    %v1765 = vadd.f32 %v1561, %v1764
    %1766 = vmatmul.f32.gmra.mxu0 %v1551
    %v1767 = vpop.f32.mrf.mxu0
    %v1768 = vadd.f32 %v1561, %v1767
    %1769 = vdwg.mxu0
    %1770 = vmatpush.msra.mxu0 %v586
    %1771 = vmatpush.msra.mxu0 %v570
    %1772 = vmatpush.msra.mxu0 %v554
    %1773 = vmatpush.msra.mxu0 %v538
    %1774 = vmatpush.msra.mxu0 %v522
    %1775 = vmatpush.msra.mxu0 %v506
    %1776 = vmatpush.msra.mxu0 %v490
    %1777 = vmatpush.msra.mxu0 %v474
    %1778 = vmatpush.msra.mxu0 %v458
    %1779 = vmatpush.msra.mxu0 %v442
    %1780 = vmatpush.msra.mxu0 %v426
    %1781 = vmatpush.msra.mxu0 %v410
    %1782 = vmatpush.msra.mxu0 %v394
    %1783 = vmatpush.msra.mxu0 %v378
    %1784 = vmatpush.msra.mxu0 %v362
    %1785 = vmatpush.msra.mxu0 %v346
    %1786 = vmatmul.f32.gmra.mxu0 %v1550
    %v1787 = vpop.f32.mrf.mxu0
    %v1788 = vadd.f32 %v1562, %v1787
    %1789 = vmatmul.f32.gmra.mxu0 %v1551
    %v1790 = vpop.f32.mrf.mxu0
    %v1791 = vadd.f32 %v1562, %v1790
    %1792 = vdwg.mxu0
    %1793 = vmatpush.msra.mxu0 %v587
    %1794 = vmatpush.msra.mxu0 %v571
    %1795 = vmatpush.msra.mxu0 %v555
    %1796 = vmatpush.msra.mxu0 %v539
    %1797 = vmatpush.msra.mxu0 %v523
    %1798 = vmatpush.msra.mxu0 %v507
    %1799 = vmatpush.msra.mxu0 %v491
    %1800 = vmatpush.msra.mxu0 %v475
    %1801 = vmatpush.msra.mxu0 %v459
    %1802 = vmatpush.msra.mxu0 %v443
    %1803 = vmatpush.msra.mxu0 %v427
    %1804 = vmatpush.msra.mxu0 %v411
    %1805 = vmatpush.msra.mxu0 %v395
    %1806 = vmatpush.msra.mxu0 %v379
    %1807 = vmatpush.msra.mxu0 %v363
    %1808 = vmatpush.msra.mxu0 %v347
    %1809 = vmatmul.f32.gmra.mxu0 %v1550
    %v1810 = vpop.f32.mrf.mxu0
    %v1811 = vadd.f32 %v1563, %v1810
    %1812 = vmatmul.f32.gmra.mxu0 %v1551
    %v1813 = vpop.f32.mrf.mxu0
    %v1814 = vadd.f32 %v1563, %v1813
    %1815 = vdwg.mxu0
    %1816 = vmatpush.msra.mxu0 %v588
    %1817 = vmatpush.msra.mxu0 %v572
    %1818 = vmatpush.msra.mxu0 %v556
    %1819 = vmatpush.msra.mxu0 %v540
    %1820 = vmatpush.msra.mxu0 %v524
    %1821 = vmatpush.msra.mxu0 %v508
    %1822 = vmatpush.msra.mxu0 %v492
    %1823 = vmatpush.msra.mxu0 %v476
    %1824 = vmatpush.msra.mxu0 %v460
    %1825 = vmatpush.msra.mxu0 %v444
    %1826 = vmatpush.msra.mxu0 %v428
    %1827 = vmatpush.msra.mxu0 %v412
    %1828 = vmatpush.msra.mxu0 %v396
    %1829 = vmatpush.msra.mxu0 %v380
    %1830 = vmatpush.msra.mxu0 %v364
    %1831 = vmatpush.msra.mxu0 %v348
    %1832 = vmatmul.f32.gmra.mxu0 %v1550
    %v1833 = vpop.f32.mrf.mxu0
    %v1834 = vadd.f32 %v1564, %v1833
    %1835 = vmatmul.f32.gmra.mxu0 %v1551
    %v1836 = vpop.f32.mrf.mxu0
    %v1837 = vadd.f32 %v1564, %v1836
    %1838 = vdwg.mxu0
    %1839 = vmatpush.msra.mxu0 %v589
    %1840 = vmatpush.msra.mxu0 %v573
    %1841 = vmatpush.msra.mxu0 %v557
    %1842 = vmatpush.msra.mxu0 %v541
    %1843 = vmatpush.msra.mxu0 %v525
    %1844 = vmatpush.msra.mxu0 %v509
    %1845 = vmatpush.msra.mxu0 %v493
    %1846 = vmatpush.msra.mxu0 %v477
    %1847 = vmatpush.msra.mxu0 %v461
    %1848 = vmatpush.msra.mxu0 %v445
    %1849 = vmatpush.msra.mxu0 %v429
    %1850 = vmatpush.msra.mxu0 %v413
    %1851 = vmatpush.msra.mxu0 %v397
    %1852 = vmatpush.msra.mxu0 %v381
    %1853 = vmatpush.msra.mxu0 %v365
    %1854 = vmatpush.msra.mxu0 %v349
    %1855 = vmatmul.f32.gmra.mxu0 %v1550
    %v1856 = vpop.f32.mrf.mxu0
    %v1857 = vadd.f32 %v1565, %v1856
    %1858 = vmatmul.f32.gmra.mxu0 %v1551
    %v1859 = vpop.f32.mrf.mxu0
    %v1860 = vadd.f32 %v1565, %v1859
    %1861 = vdwg.mxu0
    %1862 = vmatpush.msra.mxu0 %v590
    %1863 = vmatpush.msra.mxu0 %v574
    %1864 = vmatpush.msra.mxu0 %v558
    %1865 = vmatpush.msra.mxu0 %v542
    %1866 = vmatpush.msra.mxu0 %v526
    %1867 = vmatpush.msra.mxu0 %v510
    %1868 = vmatpush.msra.mxu0 %v494
    %1869 = vmatpush.msra.mxu0 %v478
    %1870 = vmatpush.msra.mxu0 %v462
    %1871 = vmatpush.msra.mxu0 %v446
    %1872 = vmatpush.msra.mxu0 %v430
    %1873 = vmatpush.msra.mxu0 %v414
    %1874 = vmatpush.msra.mxu0 %v398
    %1875 = vmatpush.msra.mxu0 %v382
    %1876 = vmatpush.msra.mxu0 %v366
    %1877 = vmatpush.msra.mxu0 %v350
    %1878 = vmatmul.f32.gmra.mxu0 %v1550
    %v1879 = vpop.f32.mrf.mxu0
    %v1880 = vadd.f32 %v1566, %v1879
    %1881 = vmatmul.f32.gmra.mxu0 %v1551
    %v1882 = vpop.f32.mrf.mxu0
    %v1883 = vadd.f32 %v1566, %v1882
    %1884 = vdwg.mxu0
    %1885 = vmatpush.msra.mxu0 %v591
    %1886 = vmatpush.msra.mxu0 %v575
    %1887 = vmatpush.msra.mxu0 %v559
    %1888 = vmatpush.msra.mxu0 %v543
    %1889 = vmatpush.msra.mxu0 %v527
    %1890 = vmatpush.msra.mxu0 %v511
    %1891 = vmatpush.msra.mxu0 %v495
    %1892 = vmatpush.msra.mxu0 %v479
    %1893 = vmatpush.msra.mxu0 %v463
    %1894 = vmatpush.msra.mxu0 %v447
    %1895 = vmatpush.msra.mxu0 %v431
    %1896 = vmatpush.msra.mxu0 %v415
    %1897 = vmatpush.msra.mxu0 %v399
    %1898 = vmatpush.msra.mxu0 %v383
    %1899 = vmatpush.msra.mxu0 %v367
    %1900 = vmatpush.msra.mxu0 %v351
    %1901 = vmatmul.f32.gmra.mxu0 %v1550
    %v1902 = vpop.f32.mrf.mxu0
    %v1903 = vadd.f32 %v1567, %v1902
    %1904 = vmatmul.f32.gmra.mxu0 %v1551
    %v1905 = vpop.f32.mrf.mxu0
    %v1906 = vadd.f32 %v1567, %v1905
    %1907 = vdwg.mxu0
    %1908 = vmatpush.msra.mxu0 %v592
    %1909 = vmatpush.msra.mxu0 %v576
    %1910 = vmatpush.msra.mxu0 %v560
    %1911 = vmatpush.msra.mxu0 %v544
    %1912 = vmatpush.msra.mxu0 %v528
    %1913 = vmatpush.msra.mxu0 %v512
    %1914 = vmatpush.msra.mxu0 %v496
    %1915 = vmatpush.msra.mxu0 %v480
    %1916 = vmatpush.msra.mxu0 %v464
    %1917 = vmatpush.msra.mxu0 %v448
    %1918 = vmatpush.msra.mxu0 %v432
    %1919 = vmatpush.msra.mxu0 %v416
    %1920 = vmatpush.msra.mxu0 %v400
    %1921 = vmatpush.msra.mxu0 %v384
    %1922 = vmatpush.msra.mxu0 %v368
    %1923 = vmatpush.msra.mxu0 %v352
    %1924 = vmatmul.f32.gmra.mxu0 %v1550
    %v1925 = vpop.f32.mrf.mxu0
    %v1926 = vadd.f32 %v1568, %v1925
    %1927 = vmatmul.f32.gmra.mxu0 %v1551
    %v1928 = vpop.f32.mrf.mxu0
    %v1929 = vadd.f32 %v1568, %v1928
    %1930 = vdwg.mxu0
    %1931 = vmatpush.msra.mxu0 %v593
    %1932 = vmatpush.msra.mxu0 %v577
    %1933 = vmatpush.msra.mxu0 %v561
    %1934 = vmatpush.msra.mxu0 %v545
    %1935 = vmatpush.msra.mxu0 %v529
    %1936 = vmatpush.msra.mxu0 %v513
    %1937 = vmatpush.msra.mxu0 %v497
    %1938 = vmatpush.msra.mxu0 %v481
    %1939 = vmatpush.msra.mxu0 %v465
    %1940 = vmatpush.msra.mxu0 %v449
    %1941 = vmatpush.msra.mxu0 %v433
    %1942 = vmatpush.msra.mxu0 %v417
    %1943 = vmatpush.msra.mxu0 %v401
    %1944 = vmatpush.msra.mxu0 %v385
    %1945 = vmatpush.msra.mxu0 %v369
    %1946 = vmatpush.msra.mxu0 %v353
    %1947 = vmatmul.f32.gmra.mxu0 %v1550
    %v1948 = vpop.f32.mrf.mxu0
    %v1949 = vadd.f32 %v1569, %v1948
    %1950 = vmatmul.f32.gmra.mxu0 %v1551
    %v1951 = vpop.f32.mrf.mxu0
    %v1952 = vadd.f32 %v1569, %v1951
    %1953 = vdwg.mxu0
    %v1954 = vmax.f32 %v1604, 0.0
    %v1955 = vmax.f32 %v1627, 0.0
    %v1956 = vmax.f32 %v1650, 0.0
    %v1957 = vmax.f32 %v1673, 0.0
    %v1958 = vmax.f32 %v1696, 0.0
    %v1959 = vmax.f32 %v1719, 0.0
    %v1960 = vmax.f32 %v1742, 0.0
    %v1961 = vmax.f32 %v1765, 0.0
    %v1962 = vmax.f32 %v1788, 0.0
    %v1963 = vmax.f32 %v1811, 0.0
    %v1964 = vmax.f32 %v1834, 0.0
    %v1965 = vmax.f32 %v1857, 0.0
    %v1966 = vmax.f32 %v1880, 0.0
    %v1967 = vmax.f32 %v1903, 0.0
    %v1968 = vmax.f32 %v1926, 0.0
    %v1969 = vmax.f32 %v1949, 0.0
    %v1970 = vmax.f32 %v1607, 0.0
    %v1971 = vmax.f32 %v1630, 0.0
    %v1972 = vmax.f32 %v1653, 0.0
    %v1973 = vmax.f32 %v1676, 0.0
    %v1974 = vmax.f32 %v1699, 0.0
    %v1975 = vmax.f32 %v1722, 0.0
    %v1976 = vmax.f32 %v1745, 0.0
    %v1977 = vmax.f32 %v1768, 0.0
    %v1978 = vmax.f32 %v1791, 0.0
    %v1979 = vmax.f32 %v1814, 0.0
    %v1980 = vmax.f32 %v1837, 0.0
    %v1981 = vmax.f32 %v1860, 0.0
    %v1982 = vmax.f32 %v1883, 0.0
    %v1983 = vmax.f32 %v1906, 0.0
    %v1984 = vmax.f32 %v1929, 0.0
    %v1985 = vmax.f32 %v1952, 0.0
    %v1987 = vperm.slane %v852, 0
    %1989 = vmatpush.msra.mxu0 %v611
    %1990 = vmatpush.msra.mxu0 %v610
    %1991 = vmatpush.msra.mxu0 %v609
    %1992 = vmatpush.msra.mxu0 %v608
    %1993 = vmatpush.msra.mxu0 %v607
    %1994 = vmatpush.msra.mxu0 %v606
    %1995 = vmatpush.msra.mxu0 %v605
    %1996 = vmatpush.msra.mxu0 %v604
    %1997 = vmatpush.msra.mxu0 %v603
    %1998 = vmatpush.msra.mxu0 %v602
    %1999 = vmatpush.msra.mxu0 %v601
    %2000 = vmatpush.msra.mxu0 %v600
    %2001 = vmatpush.msra.mxu0 %v599
    %2002 = vmatpush.msra.mxu0 %v598
    %2003 = vmatpush.msra.mxu0 %v597
    %2004 = vmatpush.msra.mxu0 %v596
    %2005 = vmatmul.f32.gmra.mxu0 %v1954
    %v2006 = vpop.f32.mrf.mxu0
    %v2007 = vadd.f32 %v1987, %v2006
    %2008 = vmatmul.f32.gmra.mxu0 %v1970
    %v2009 = vpop.f32.mrf.mxu0
    %v2010 = vadd.f32 %v1987, %v2009
    %2011 = vdwg.mxu0
    %2012 = vmatpush.msra.mxu0 %v627
    %2013 = vmatpush.msra.mxu0 %v626
    %2014 = vmatpush.msra.mxu0 %v625
    %2015 = vmatpush.msra.mxu0 %v624
    %2016 = vmatpush.msra.mxu0 %v623
    %2017 = vmatpush.msra.mxu0 %v622
    %2018 = vmatpush.msra.mxu0 %v621
    %2019 = vmatpush.msra.mxu0 %v620
    %2020 = vmatpush.msra.mxu0 %v619
    %2021 = vmatpush.msra.mxu0 %v618
    %2022 = vmatpush.msra.mxu0 %v617
    %2023 = vmatpush.msra.mxu0 %v616
    %2024 = vmatpush.msra.mxu0 %v615
    %2025 = vmatpush.msra.mxu0 %v614
    %2026 = vmatpush.msra.mxu0 %v613
    %2027 = vmatpush.msra.mxu0 %v612
    %2028 = vmatmul.f32.gmra.mxu0 %v1955
    %v2029 = vpop.f32.mrf.mxu0
    %v2030 = vadd.f32 %v2007, %v2029
    %2031 = vmatmul.f32.gmra.mxu0 %v1971
    %v2032 = vpop.f32.mrf.mxu0
    %v2033 = vadd.f32 %v2010, %v2032
    %2034 = vdwg.mxu0
    %2035 = vmatpush.msra.mxu0 %v643
    %2036 = vmatpush.msra.mxu0 %v642
    %2037 = vmatpush.msra.mxu0 %v641
    %2038 = vmatpush.msra.mxu0 %v640
    %2039 = vmatpush.msra.mxu0 %v639
    %2040 = vmatpush.msra.mxu0 %v638
    %2041 = vmatpush.msra.mxu0 %v637
    %2042 = vmatpush.msra.mxu0 %v636
    %2043 = vmatpush.msra.mxu0 %v635
    %2044 = vmatpush.msra.mxu0 %v634
    %2045 = vmatpush.msra.mxu0 %v633
    %2046 = vmatpush.msra.mxu0 %v632
    %2047 = vmatpush.msra.mxu0 %v631
    %2048 = vmatpush.msra.mxu0 %v630
    %2049 = vmatpush.msra.mxu0 %v629
    %2050 = vmatpush.msra.mxu0 %v628
    %2051 = vmatmul.f32.gmra.mxu0 %v1956
    %v2052 = vpop.f32.mrf.mxu0
    %v2053 = vadd.f32 %v2030, %v2052
    %2054 = vmatmul.f32.gmra.mxu0 %v1972
    %v2055 = vpop.f32.mrf.mxu0
    %v2056 = vadd.f32 %v2033, %v2055
    %2057 = vdwg.mxu0
    %2058 = vmatpush.msra.mxu0 %v659
    %2059 = vmatpush.msra.mxu0 %v658
    %2060 = vmatpush.msra.mxu0 %v657
    %2061 = vmatpush.msra.mxu0 %v656
    %2062 = vmatpush.msra.mxu0 %v655
    %2063 = vmatpush.msra.mxu0 %v654
    %2064 = vmatpush.msra.mxu0 %v653
    %2065 = vmatpush.msra.mxu0 %v652
    %2066 = vmatpush.msra.mxu0 %v651
    %2067 = vmatpush.msra.mxu0 %v650
    %2068 = vmatpush.msra.mxu0 %v649
    %2069 = vmatpush.msra.mxu0 %v648
    %2070 = vmatpush.msra.mxu0 %v647
    %2071 = vmatpush.msra.mxu0 %v646
    %2072 = vmatpush.msra.mxu0 %v645
    %2073 = vmatpush.msra.mxu0 %v644
    %2074 = vmatmul.f32.gmra.mxu0 %v1957
    %v2075 = vpop.f32.mrf.mxu0
    %v2076 = vadd.f32 %v2053, %v2075
    %2077 = vmatmul.f32.gmra.mxu0 %v1973
    %v2078 = vpop.f32.mrf.mxu0
    %v2079 = vadd.f32 %v2056, %v2078
    %2080 = vdwg.mxu0
    %2081 = vmatpush.msra.mxu0 %v675
    %2082 = vmatpush.msra.mxu0 %v674
    %2083 = vmatpush.msra.mxu0 %v673
    %2084 = vmatpush.msra.mxu0 %v672
    %2085 = vmatpush.msra.mxu0 %v671
    %2086 = vmatpush.msra.mxu0 %v670
    %2087 = vmatpush.msra.mxu0 %v669
    %2088 = vmatpush.msra.mxu0 %v668
    %2089 = vmatpush.msra.mxu0 %v667
    %2090 = vmatpush.msra.mxu0 %v666
    %2091 = vmatpush.msra.mxu0 %v665
    %2092 = vmatpush.msra.mxu0 %v664
    %2093 = vmatpush.msra.mxu0 %v663
    %2094 = vmatpush.msra.mxu0 %v662
    %2095 = vmatpush.msra.mxu0 %v661
    %2096 = vmatpush.msra.mxu0 %v660
    %2097 = vmatmul.f32.gmra.mxu0 %v1958
    %v2098 = vpop.f32.mrf.mxu0
    %v2099 = vadd.f32 %v2076, %v2098
    %2100 = vmatmul.f32.gmra.mxu0 %v1974
    %v2101 = vpop.f32.mrf.mxu0
    %v2102 = vadd.f32 %v2079, %v2101
    %2103 = vdwg.mxu0
    %2104 = vmatpush.msra.mxu0 %v691
    %2105 = vmatpush.msra.mxu0 %v690
    %2106 = vmatpush.msra.mxu0 %v689
    %2107 = vmatpush.msra.mxu0 %v688
    %2108 = vmatpush.msra.mxu0 %v687
    %2109 = vmatpush.msra.mxu0 %v686
    %2110 = vmatpush.msra.mxu0 %v685
    %2111 = vmatpush.msra.mxu0 %v684
    %2112 = vmatpush.msra.mxu0 %v683
    %2113 = vmatpush.msra.mxu0 %v682
    %2114 = vmatpush.msra.mxu0 %v681
    %2115 = vmatpush.msra.mxu0 %v680
    %2116 = vmatpush.msra.mxu0 %v679
    %2117 = vmatpush.msra.mxu0 %v678
    %2118 = vmatpush.msra.mxu0 %v677
    %2119 = vmatpush.msra.mxu0 %v676
    %2120 = vmatmul.f32.gmra.mxu0 %v1959
    %v2121 = vpop.f32.mrf.mxu0
    %v2122 = vadd.f32 %v2099, %v2121
    %2123 = vmatmul.f32.gmra.mxu0 %v1975
    %v2124 = vpop.f32.mrf.mxu0
    %v2125 = vadd.f32 %v2102, %v2124
    %2126 = vdwg.mxu0
    %2127 = vmatpush.msra.mxu0 %v707
    %2128 = vmatpush.msra.mxu0 %v706
    %2129 = vmatpush.msra.mxu0 %v705
    %2130 = vmatpush.msra.mxu0 %v704
    %2131 = vmatpush.msra.mxu0 %v703
    %2132 = vmatpush.msra.mxu0 %v702
    %2133 = vmatpush.msra.mxu0 %v701
    %2134 = vmatpush.msra.mxu0 %v700
    %2135 = vmatpush.msra.mxu0 %v699
    %2136 = vmatpush.msra.mxu0 %v698
    %2137 = vmatpush.msra.mxu0 %v697
    %2138 = vmatpush.msra.mxu0 %v696
    %2139 = vmatpush.msra.mxu0 %v695
    %2140 = vmatpush.msra.mxu0 %v694
    %2141 = vmatpush.msra.mxu0 %v693
    %2142 = vmatpush.msra.mxu0 %v692
    %2143 = vmatmul.f32.gmra.mxu0 %v1960
    %v2144 = vpop.f32.mrf.mxu0
    %v2145 = vadd.f32 %v2122, %v2144
    %2146 = vmatmul.f32.gmra.mxu0 %v1976
    %v2147 = vpop.f32.mrf.mxu0
    %v2148 = vadd.f32 %v2125, %v2147
    %2149 = vdwg.mxu0
    %2150 = vmatpush.msra.mxu0 %v723
    %2151 = vmatpush.msra.mxu0 %v722
    %2152 = vmatpush.msra.mxu0 %v721
    %2153 = vmatpush.msra.mxu0 %v720
    %2154 = vmatpush.msra.mxu0 %v719
    %2155 = vmatpush.msra.mxu0 %v718
    %2156 = vmatpush.msra.mxu0 %v717
    %2157 = vmatpush.msra.mxu0 %v716
    %2158 = vmatpush.msra.mxu0 %v715
    %2159 = vmatpush.msra.mxu0 %v714
    %2160 = vmatpush.msra.mxu0 %v713
    %2161 = vmatpush.msra.mxu0 %v712
    %2162 = vmatpush.msra.mxu0 %v711
    %2163 = vmatpush.msra.mxu0 %v710
    %2164 = vmatpush.msra.mxu0 %v709
    %2165 = vmatpush.msra.mxu0 %v708
    %2166 = vmatmul.f32.gmra.mxu0 %v1961
    %v2167 = vpop.f32.mrf.mxu0
    %v2168 = vadd.f32 %v2145, %v2167
    %2169 = vmatmul.f32.gmra.mxu0 %v1977
    %v2170 = vpop.f32.mrf.mxu0
    %v2171 = vadd.f32 %v2148, %v2170
    %2172 = vdwg.mxu0
    %2173 = vmatpush.msra.mxu0 %v739
    %2174 = vmatpush.msra.mxu0 %v738
    %2175 = vmatpush.msra.mxu0 %v737
    %2176 = vmatpush.msra.mxu0 %v736
    %2177 = vmatpush.msra.mxu0 %v735
    %2178 = vmatpush.msra.mxu0 %v734
    %2179 = vmatpush.msra.mxu0 %v733
    %2180 = vmatpush.msra.mxu0 %v732
    %2181 = vmatpush.msra.mxu0 %v731
    %2182 = vmatpush.msra.mxu0 %v730
    %2183 = vmatpush.msra.mxu0 %v729
    %2184 = vmatpush.msra.mxu0 %v728
    %2185 = vmatpush.msra.mxu0 %v727
    %2186 = vmatpush.msra.mxu0 %v726
    %2187 = vmatpush.msra.mxu0 %v725
    %2188 = vmatpush.msra.mxu0 %v724
    %2189 = vmatmul.f32.gmra.mxu0 %v1962
    %v2190 = vpop.f32.mrf.mxu0
    %v2191 = vadd.f32 %v2168, %v2190
    %2192 = vmatmul.f32.gmra.mxu0 %v1978
    %v2193 = vpop.f32.mrf.mxu0
    %v2194 = vadd.f32 %v2171, %v2193
    %2195 = vdwg.mxu0
    %2196 = vmatpush.msra.mxu0 %v755
    %2197 = vmatpush.msra.mxu0 %v754
    %2198 = vmatpush.msra.mxu0 %v753
    %2199 = vmatpush.msra.mxu0 %v752
    %2200 = vmatpush.msra.mxu0 %v751
    %2201 = vmatpush.msra.mxu0 %v750
    %2202 = vmatpush.msra.mxu0 %v749
    %2203 = vmatpush.msra.mxu0 %v748
    %2204 = vmatpush.msra.mxu0 %v747
    %2205 = vmatpush.msra.mxu0 %v746
    %2206 = vmatpush.msra.mxu0 %v745
    %2207 = vmatpush.msra.mxu0 %v744
    %2208 = vmatpush.msra.mxu0 %v743
    %2209 = vmatpush.msra.mxu0 %v742
    %2210 = vmatpush.msra.mxu0 %v741
    %2211 = vmatpush.msra.mxu0 %v740
    %2212 = vmatmul.f32.gmra.mxu0 %v1963
    %v2213 = vpop.f32.mrf.mxu0
    %v2214 = vadd.f32 %v2191, %v2213
    %2215 = vmatmul.f32.gmra.mxu0 %v1979
    %v2216 = vpop.f32.mrf.mxu0
    %v2217 = vadd.f32 %v2194, %v2216
    %2218 = vdwg.mxu0
    %2219 = vmatpush.msra.mxu0 %v771
    %2220 = vmatpush.msra.mxu0 %v770
    %2221 = vmatpush.msra.mxu0 %v769
    %2222 = vmatpush.msra.mxu0 %v768
    %2223 = vmatpush.msra.mxu0 %v767
    %2224 = vmatpush.msra.mxu0 %v766
    %2225 = vmatpush.msra.mxu0 %v765
    %2226 = vmatpush.msra.mxu0 %v764
    %2227 = vmatpush.msra.mxu0 %v763
    %2228 = vmatpush.msra.mxu0 %v762
    %2229 = vmatpush.msra.mxu0 %v761
    %2230 = vmatpush.msra.mxu0 %v760
    %2231 = vmatpush.msra.mxu0 %v759
    %2232 = vmatpush.msra.mxu0 %v758
    %2233 = vmatpush.msra.mxu0 %v757
    %2234 = vmatpush.msra.mxu0 %v756
    %2235 = vmatmul.f32.gmra.mxu0 %v1964
    %v2236 = vpop.f32.mrf.mxu0
    %v2237 = vadd.f32 %v2214, %v2236
    %2238 = vmatmul.f32.gmra.mxu0 %v1980
    %v2239 = vpop.f32.mrf.mxu0
    %v2240 = vadd.f32 %v2217, %v2239
    %2241 = vdwg.mxu0
    %2242 = vmatpush.msra.mxu0 %v787
    %2243 = vmatpush.msra.mxu0 %v786
    %2244 = vmatpush.msra.mxu0 %v785
    %2245 = vmatpush.msra.mxu0 %v784
    %2246 = vmatpush.msra.mxu0 %v783
    %2247 = vmatpush.msra.mxu0 %v782
    %2248 = vmatpush.msra.mxu0 %v781
    %2249 = vmatpush.msra.mxu0 %v780
    %2250 = vmatpush.msra.mxu0 %v779
    %2251 = vmatpush.msra.mxu0 %v778
    %2252 = vmatpush.msra.mxu0 %v777
    %2253 = vmatpush.msra.mxu0 %v776
    %2254 = vmatpush.msra.mxu0 %v775
    %2255 = vmatpush.msra.mxu0 %v774
    %2256 = vmatpush.msra.mxu0 %v773
    %2257 = vmatpush.msra.mxu0 %v772
    %2258 = vmatmul.f32.gmra.mxu0 %v1965
    %v2259 = vpop.f32.mrf.mxu0
    %v2260 = vadd.f32 %v2237, %v2259
    %2261 = vmatmul.f32.gmra.mxu0 %v1981
    %v2262 = vpop.f32.mrf.mxu0
    %v2263 = vadd.f32 %v2240, %v2262
    %2264 = vdwg.mxu0
    %2265 = vmatpush.msra.mxu0 %v803
    %2266 = vmatpush.msra.mxu0 %v802
    %2267 = vmatpush.msra.mxu0 %v801
    %2268 = vmatpush.msra.mxu0 %v800
    %2269 = vmatpush.msra.mxu0 %v799
    %2270 = vmatpush.msra.mxu0 %v798
    %2271 = vmatpush.msra.mxu0 %v797
    %2272 = vmatpush.msra.mxu0 %v796
    %2273 = vmatpush.msra.mxu0 %v795
    %2274 = vmatpush.msra.mxu0 %v794
    %2275 = vmatpush.msra.mxu0 %v793
    %2276 = vmatpush.msra.mxu0 %v792
    %2277 = vmatpush.msra.mxu0 %v791
    %2278 = vmatpush.msra.mxu0 %v790
    %2279 = vmatpush.msra.mxu0 %v789
    %2280 = vmatpush.msra.mxu0 %v788
    %2281 = vmatmul.f32.gmra.mxu0 %v1966
    %v2282 = vpop.f32.mrf.mxu0
    %v2283 = vadd.f32 %v2260, %v2282
    %2284 = vmatmul.f32.gmra.mxu0 %v1982
    %v2285 = vpop.f32.mrf.mxu0
    %v2286 = vadd.f32 %v2263, %v2285
    %2287 = vdwg.mxu0
    %2288 = vmatpush.msra.mxu0 %v819
    %2289 = vmatpush.msra.mxu0 %v818
    %2290 = vmatpush.msra.mxu0 %v817
    %2291 = vmatpush.msra.mxu0 %v816
    %2292 = vmatpush.msra.mxu0 %v815
    %2293 = vmatpush.msra.mxu0 %v814
    %2294 = vmatpush.msra.mxu0 %v813
    %2295 = vmatpush.msra.mxu0 %v812
    %2296 = vmatpush.msra.mxu0 %v811
    %2297 = vmatpush.msra.mxu0 %v810
    %2298 = vmatpush.msra.mxu0 %v809
    %2299 = vmatpush.msra.mxu0 %v808
    %2300 = vmatpush.msra.mxu0 %v807
    %2301 = vmatpush.msra.mxu0 %v806
    %2302 = vmatpush.msra.mxu0 %v805
    %2303 = vmatpush.msra.mxu0 %v804
    %2304 = vmatmul.f32.gmra.mxu0 %v1967
    %v2305 = vpop.f32.mrf.mxu0
    %v2306 = vadd.f32 %v2283, %v2305
    %2307 = vmatmul.f32.gmra.mxu0 %v1983
    %v2308 = vpop.f32.mrf.mxu0
    %v2309 = vadd.f32 %v2286, %v2308
    %2310 = vdwg.mxu0
    %2311 = vmatpush.msra.mxu0 %v835
    %2312 = vmatpush.msra.mxu0 %v834
    %2313 = vmatpush.msra.mxu0 %v833
    %2314 = vmatpush.msra.mxu0 %v832
    %2315 = vmatpush.msra.mxu0 %v831
    %2316 = vmatpush.msra.mxu0 %v830
    %2317 = vmatpush.msra.mxu0 %v829
    %2318 = vmatpush.msra.mxu0 %v828
    %2319 = vmatpush.msra.mxu0 %v827
    %2320 = vmatpush.msra.mxu0 %v826
    %2321 = vmatpush.msra.mxu0 %v825
    %2322 = vmatpush.msra.mxu0 %v824
    %2323 = vmatpush.msra.mxu0 %v823
    %2324 = vmatpush.msra.mxu0 %v822
    %2325 = vmatpush.msra.mxu0 %v821
    %2326 = vmatpush.msra.mxu0 %v820
    %2327 = vmatmul.f32.gmra.mxu0 %v1968
    %v2328 = vpop.f32.mrf.mxu0
    %v2329 = vadd.f32 %v2306, %v2328
    %2330 = vmatmul.f32.gmra.mxu0 %v1984
    %v2331 = vpop.f32.mrf.mxu0
    %v2332 = vadd.f32 %v2309, %v2331
    %2333 = vdwg.mxu0
    %2334 = vmatpush.msra.mxu0 %v851
    %2335 = vmatpush.msra.mxu0 %v850
    %2336 = vmatpush.msra.mxu0 %v849
    %2337 = vmatpush.msra.mxu0 %v848
    %2338 = vmatpush.msra.mxu0 %v847
    %2339 = vmatpush.msra.mxu0 %v846
    %2340 = vmatpush.msra.mxu0 %v845
    %2341 = vmatpush.msra.mxu0 %v844
    %2342 = vmatpush.msra.mxu0 %v843
    %2343 = vmatpush.msra.mxu0 %v842
    %2344 = vmatpush.msra.mxu0 %v841
    %2345 = vmatpush.msra.mxu0 %v840
    %2346 = vmatpush.msra.mxu0 %v839
    %2347 = vmatpush.msra.mxu0 %v838
    %2348 = vmatpush.msra.mxu0 %v837
    %2349 = vmatpush.msra.mxu0 %v836
    %2350 = vmatmul.f32.gmra.mxu0 %v1969
    %v2351 = vpop.f32.mrf.mxu0
    %v2352 = vadd.f32 %v2329, %v2351
    %2353 = vmatmul.f32.gmra.mxu0 %v1985
    %v2354 = vpop.f32.mrf.mxu0
    %v2355 = vadd.f32 %v2332, %v2354
    %2356 = vdwg.mxu0
    %v2357 = vadd.f32 %v1550, %v2352
    %v2358 = vadd.f32 %v1551, %v2355
    %2359 = vadd.xlane.f32.xlu0 %v2357
    %v2360 = vpop.xlane.xlu0 %2359
    %2361 = vadd.xlane.f32.xlu0 %v2358
    %v2362 = vpop.xlane.xlu0 %2361
    %v2363 = vmul.f32 %v2360, %v1505
    %v2364 = vmul.f32 %v2362, %v1505
    %v2365 = vsub.f32 %v2357, %v2363
    %v2366 = vsub.f32 %v2358, %v2364
    %v2367 = vmul.f32 %v2365, %v2365
    %v2368 = vmul.f32 %v2366, %v2366
    %2369 = vadd.xlane.f32.xlu0 %v2367
    %v2370 = vpop.xlane.xlu0 %2369
    %2371 = vadd.xlane.f32.xlu0 %v2368
    %v2372 = vpop.xlane.xlu0 %2371
    %v2373 = vmul.f32 %v2370, %v1505
    %v2374 = vmul.f32 %v2372, %v1505
    %v2375 = vadd.f32 %v2373, 1e-05
    %v2376 = vadd.f32 %v2374, 1e-05
    %v2377 = vrsqrt.pop %v2375
    %v2378 = vmul.f32 %v2377, %v2375
    %v2379 = vmul.f32 %v2378, %v2377
    %v2380 = vmul.f32 0.5, %v2379
    %v2381 = vsub.f32 1.5, %v2380
    %v2382 = vmul.f32 %v2377, %v2381
    %vm2383 = vweird.f32 %v2375
    %vm2384 = vweird.f32 %v2377
    %vm2385 = vmor %vm2383, %vm2384
    %v2386 = vsel %vm2385, %v2377, %v2382
    %v2387 = vrsqrt.pop %v2376
    %v2388 = vmul.f32 %v2387, %v2376
    %v2389 = vmul.f32 %v2388, %v2387
    %v2390 = vmul.f32 0.5, %v2389
    %v2391 = vsub.f32 1.5, %v2390
    %v2392 = vmul.f32 %v2387, %v2391
    %vm2393 = vweird.f32 %v2376
    %vm2394 = vweird.f32 %v2387
    %vm2395 = vmor %vm2393, %vm2394
    %v2396 = vsel %vm2395, %v2387, %v2392
    %v2397 = vmul.f32 %v2365, %v2386
    %v2398 = vmul.f32 %v2366, %v2396
    %v2400 = vperm.slane %v853, 0
    %v2402 = vmul.f32 %v2397, %v2400
    %v2403 = vmul.f32 %v2398, %v2400
    %v2405 = vperm.slane %v854, 0
    %v2407 = vadd.f32 %v2402, %v2405
    %v2408 = vadd.f32 %v2403, %v2405
    %v2409 = vld [vmem:[#allocation8] sm:$0xff]
    %v2410 = vld [vmem:[#allocation8 + $0x8] sm:$0xff]
    %v2411 = vld [vmem:[#allocation8 + $0x10] sm:$0xff]
    %v2412 = vld [vmem:[#allocation8 + $0x18] sm:$0xff]
    %v2413 = vld [vmem:[#allocation8 + $0x20] sm:$0xff]
    %v2414 = vld [vmem:[#allocation8 + $0x28] sm:$0xff]
    %v2415 = vld [vmem:[#allocation8 + $0x30] sm:$0xff]
    %v2416 = vld [vmem:[#allocation8 + $0x38] sm:$0xff]
    %v2417 = vld [vmem:[#allocation8 + $0x40] sm:$0xff]
    %v2418 = vld [vmem:[#allocation8 + $0x48] sm:$0xff]
    %v2419 = vld [vmem:[#allocation8 + $0x50] sm:$0xff]
    %v2420 = vld [vmem:[#allocation8 + $0x58] sm:$0xff]
    %v2421 = vld [vmem:[#allocation8 + $0x60] sm:$0xff]
    %v2422 = vld [vmem:[#allocation8 + $0x68] sm:$0xff]
    %v2423 = vld [vmem:[#allocation8 + $0x70] sm:$0xff]
    %v2424 = vld [vmem:[#allocation8 + $0x78] sm:$0xff]
    %v2425 = vld [vmem:[#allocation8 + $0x80] sm:$0xff]
    %v2426 = vld [vmem:[#allocation8 + $0x88] sm:$0xff]
    %v2427 = vld [vmem:[#allocation8 + $0x90] sm:$0xff]
    %v2428 = vld [vmem:[#allocation8 + $0x98] sm:$0xff]
    %v2429 = vld [vmem:[#allocation8 + $0xa0] sm:$0xff]
    %v2430 = vld [vmem:[#allocation8 + $0xa8] sm:$0xff]
    %v2431 = vld [vmem:[#allocation8 + $0xb0] sm:$0xff]
    %v2432 = vld [vmem:[#allocation8 + $0xb8] sm:$0xff]
    %v2433 = vld [vmem:[#allocation8 + $0xc0] sm:$0xff]
    %v2434 = vld [vmem:[#allocation8 + $0xc8] sm:$0xff]
    %v2435 = vld [vmem:[#allocation8 + $0xd0] sm:$0xff]
    %v2436 = vld [vmem:[#allocation8 + $0xd8] sm:$0xff]
    %v2437 = vld [vmem:[#allocation8 + $0xe0] sm:$0xff]
    %v2438 = vld [vmem:[#allocation8 + $0xe8] sm:$0xff]
    %v2439 = vld [vmem:[#allocation8 + $0xf0] sm:$0xff]
    %v2440 = vld [vmem:[#allocation8 + $0xf8] sm:$0xff]
    %v2441 = vld [vmem:[#allocation8 + $0x100] sm:$0xff]
    %v2442 = vld [vmem:[#allocation8 + $0x108] sm:$0xff]
    %v2443 = vld [vmem:[#allocation8 + $0x110] sm:$0xff]
    %v2444 = vld [vmem:[#allocation8 + $0x118] sm:$0xff]
    %v2445 = vld [vmem:[#allocation8 + $0x120] sm:$0xff]
    %v2446 = vld [vmem:[#allocation8 + $0x128] sm:$0xff]
    %v2447 = vld [vmem:[#allocation8 + $0x130] sm:$0xff]
    %v2448 = vld [vmem:[#allocation8 + $0x138] sm:$0xff]
    %v2449 = vld [vmem:[#allocation8 + $0x140] sm:$0xff]
    %v2450 = vld [vmem:[#allocation8 + $0x148] sm:$0xff]
    %v2451 = vld [vmem:[#allocation8 + $0x150] sm:$0xff]
    %v2452 = vld [vmem:[#allocation8 + $0x158] sm:$0xff]
    %v2453 = vld [vmem:[#allocation8 + $0x160] sm:$0xff]
    %v2454 = vld [vmem:[#allocation8 + $0x168] sm:$0xff]
    %v2455 = vld [vmem:[#allocation8 + $0x170] sm:$0xff]
    %v2456 = vld [vmem:[#allocation8 + $0x178] sm:$0xff]
    %v2457 = vld [vmem:[%s33] sm:$0x7]
    %v2458 = vld [vmem:[#allocation10] sm:$0xff]
    %v2459 = vld [vmem:[#allocation10 + $0x8] sm:$0xff]
    %v2460 = vld [vmem:[#allocation10 + $0x10] sm:$0xff]
    %v2461 = vld [vmem:[#allocation10 + $0x18] sm:$0xff]
    %v2462 = vld [vmem:[#allocation10 + $0x20] sm:$0xff]
    %v2463 = vld [vmem:[#allocation10 + $0x28] sm:$0xff]
    %v2464 = vld [vmem:[#allocation10 + $0x30] sm:$0xff]
    %v2465 = vld [vmem:[#allocation10 + $0x38] sm:$0xff]
    %v2466 = vld [vmem:[#allocation10 + $0x40] sm:$0xff]
    %v2467 = vld [vmem:[#allocation10 + $0x48] sm:$0xff]
    %v2468 = vld [vmem:[#allocation10 + $0x50] sm:$0xff]
    %v2469 = vld [vmem:[#allocation10 + $0x58] sm:$0xff]
    %v2470 = vld [vmem:[#allocation10 + $0x60] sm:$0xff]
    %v2471 = vld [vmem:[#allocation10 + $0x68] sm:$0xff]
    %v2472 = vld [vmem:[#allocation10 + $0x70] sm:$0xff]
    %v2473 = vld [vmem:[#allocation10 + $0x78] sm:$0xff]
    %v2474 = vld [vmem:[%s37] sm:$0x1]
    %v2475 = vld [vmem:[%s39] sm:$0x1]
    %v2476 = vld [vmem:[%s41] sm:$0x1]
    %v2477 = vld [vmem:[#allocation11] sm:$0xff]
    %v2478 = vld [vmem:[#allocation11 + $0x8] sm:$0xff]
    %v2479 = vld [vmem:[#allocation11 + $0x10] sm:$0xff]
    %v2480 = vld [vmem:[#allocation11 + $0x18] sm:$0xff]
    %v2481 = vld [vmem:[#allocation11 + $0x20] sm:$0xff]
    %v2482 = vld [vmem:[#allocation11 + $0x28] sm:$0xff]
    %v2483 = vld [vmem:[#allocation11 + $0x30] sm:$0xff]
    %v2484 = vld [vmem:[#allocation11 + $0x38] sm:$0xff]
    %v2485 = vld [vmem:[#allocation11 + $0x40] sm:$0xff]
    %v2486 = vld [vmem:[#allocation11 + $0x48] sm:$0xff]
    %v2487 = vld [vmem:[#allocation11 + $0x50] sm:$0xff]
    %v2488 = vld [vmem:[#allocation11 + $0x58] sm:$0xff]
    %v2489 = vld [vmem:[#allocation11 + $0x60] sm:$0xff]
    %v2490 = vld [vmem:[#allocation11 + $0x68] sm:$0xff]
    %v2491 = vld [vmem:[#allocation11 + $0x70] sm:$0xff]
    %v2492 = vld [vmem:[#allocation11 + $0x78] sm:$0xff]
    %v2493 = vld [vmem:[#allocation11 + $0x80] sm:$0xff]
    %v2494 = vld [vmem:[#allocation11 + $0x88] sm:$0xff]
    %v2495 = vld [vmem:[#allocation11 + $0x90] sm:$0xff]
    %v2496 = vld [vmem:[#allocation11 + $0x98] sm:$0xff]
    %v2497 = vld [vmem:[#allocation11 + $0xa0] sm:$0xff]
    %v2498 = vld [vmem:[#allocation11 + $0xa8] sm:$0xff]
    %v2499 = vld [vmem:[#allocation11 + $0xb0] sm:$0xff]
    %v2500 = vld [vmem:[#allocation11 + $0xb8] sm:$0xff]
    %v2501 = vld [vmem:[#allocation11 + $0xc0] sm:$0xff]
    %v2502 = vld [vmem:[#allocation11 + $0xc8] sm:$0xff]
    %v2503 = vld [vmem:[#allocation11 + $0xd0] sm:$0xff]
    %v2504 = vld [vmem:[#allocation11 + $0xd8] sm:$0xff]
    %v2505 = vld [vmem:[#allocation11 + $0xe0] sm:$0xff]
    %v2506 = vld [vmem:[#allocation11 + $0xe8] sm:$0xff]
    %v2507 = vld [vmem:[#allocation11 + $0xf0] sm:$0xff]
    %v2508 = vld [vmem:[#allocation11 + $0xf8] sm:$0xff]
    %v2509 = vld [vmem:[#allocation11 + $0x100] sm:$0xff]
    %v2510 = vld [vmem:[#allocation11 + $0x108] sm:$0xff]
    %v2511 = vld [vmem:[#allocation11 + $0x110] sm:$0xff]
    %v2512 = vld [vmem:[#allocation11 + $0x118] sm:$0xff]
    %v2513 = vld [vmem:[#allocation11 + $0x120] sm:$0xff]
    %v2514 = vld [vmem:[#allocation11 + $0x128] sm:$0xff]
    %v2515 = vld [vmem:[#allocation11 + $0x130] sm:$0xff]
    %v2516 = vld [vmem:[#allocation11 + $0x138] sm:$0xff]
    %v2517 = vld [vmem:[#allocation11 + $0x140] sm:$0xff]
    %v2518 = vld [vmem:[#allocation11 + $0x148] sm:$0xff]
    %v2519 = vld [vmem:[#allocation11 + $0x150] sm:$0xff]
    %v2520 = vld [vmem:[#allocation11 + $0x158] sm:$0xff]
    %v2521 = vld [vmem:[#allocation11 + $0x160] sm:$0xff]
    %v2522 = vld [vmem:[#allocation11 + $0x168] sm:$0xff]
    %v2523 = vld [vmem:[#allocation11 + $0x170] sm:$0xff]
    %v2524 = vld [vmem:[#allocation11 + $0x178] sm:$0xff]
    %v2525 = vld [vmem:[#allocation11 + $0x180] sm:$0xff]
    %v2526 = vld [vmem:[#allocation11 + $0x188] sm:$0xff]
    %v2527 = vld [vmem:[#allocation11 + $0x190] sm:$0xff]
    %v2528 = vld [vmem:[#allocation11 + $0x198] sm:$0xff]
    %v2529 = vld [vmem:[#allocation11 + $0x1a0] sm:$0xff]
    %v2530 = vld [vmem:[#allocation11 + $0x1a8] sm:$0xff]
    %v2531 = vld [vmem:[#allocation11 + $0x1b0] sm:$0xff]
    %v2532 = vld [vmem:[#allocation11 + $0x1b8] sm:$0xff]
    %v2533 = vld [vmem:[#allocation11 + $0x1c0] sm:$0xff]
    %v2534 = vld [vmem:[#allocation11 + $0x1c8] sm:$0xff]
    %v2535 = vld [vmem:[#allocation11 + $0x1d0] sm:$0xff]
    %v2536 = vld [vmem:[#allocation11 + $0x1d8] sm:$0xff]
    %v2537 = vld [vmem:[#allocation11 + $0x1e0] sm:$0xff]
    %v2538 = vld [vmem:[#allocation11 + $0x1e8] sm:$0xff]
    %v2539 = vld [vmem:[#allocation11 + $0x1f0] sm:$0xff]
    %v2540 = vld [vmem:[#allocation11 + $0x1f8] sm:$0xff]
    %v2541 = vld [vmem:[#allocation11 + $0x200] sm:$0xff]
    %v2542 = vld [vmem:[#allocation11 + $0x208] sm:$0xff]
    %v2543 = vld [vmem:[#allocation11 + $0x210] sm:$0xff]
    %v2544 = vld [vmem:[#allocation11 + $0x218] sm:$0xff]
    %v2545 = vld [vmem:[#allocation11 + $0x220] sm:$0xff]
    %v2546 = vld [vmem:[#allocation11 + $0x228] sm:$0xff]
    %v2547 = vld [vmem:[#allocation11 + $0x230] sm:$0xff]
    %v2548 = vld [vmem:[#allocation11 + $0x238] sm:$0xff]
    %v2549 = vld [vmem:[#allocation11 + $0x240] sm:$0xff]
    %v2550 = vld [vmem:[#allocation11 + $0x248] sm:$0xff]
    %v2551 = vld [vmem:[#allocation11 + $0x250] sm:$0xff]
    %v2552 = vld [vmem:[#allocation11 + $0x258] sm:$0xff]
    %v2553 = vld [vmem:[#allocation11 + $0x260] sm:$0xff]
    %v2554 = vld [vmem:[#allocation11 + $0x268] sm:$0xff]
    %v2555 = vld [vmem:[#allocation11 + $0x270] sm:$0xff]
    %v2556 = vld [vmem:[#allocation11 + $0x278] sm:$0xff]
    %v2557 = vld [vmem:[#allocation11 + $0x280] sm:$0xff]
    %v2558 = vld [vmem:[#allocation11 + $0x288] sm:$0xff]
    %v2559 = vld [vmem:[#allocation11 + $0x290] sm:$0xff]
    %v2560 = vld [vmem:[#allocation11 + $0x298] sm:$0xff]
    %v2561 = vld [vmem:[#allocation11 + $0x2a0] sm:$0xff]
    %v2562 = vld [vmem:[#allocation11 + $0x2a8] sm:$0xff]
    %v2563 = vld [vmem:[#allocation11 + $0x2b0] sm:$0xff]
    %v2564 = vld [vmem:[#allocation11 + $0x2b8] sm:$0xff]
    %v2565 = vld [vmem:[#allocation11 + $0x2c0] sm:$0xff]
    %v2566 = vld [vmem:[#allocation11 + $0x2c8] sm:$0xff]
    %v2567 = vld [vmem:[#allocation11 + $0x2d0] sm:$0xff]
    %v2568 = vld [vmem:[#allocation11 + $0x2d8] sm:$0xff]
    %v2569 = vld [vmem:[#allocation11 + $0x2e0] sm:$0xff]
    %v2570 = vld [vmem:[#allocation11 + $0x2e8] sm:$0xff]
    %v2571 = vld [vmem:[#allocation11 + $0x2f0] sm:$0xff]
    %v2572 = vld [vmem:[#allocation11 + $0x2f8] sm:$0xff]
    %v2573 = vld [vmem:[#allocation11 + $0x300] sm:$0xff]
    %v2574 = vld [vmem:[#allocation11 + $0x308] sm:$0xff]
    %v2575 = vld [vmem:[#allocation11 + $0x310] sm:$0xff]
    %v2576 = vld [vmem:[#allocation11 + $0x318] sm:$0xff]
    %v2577 = vld [vmem:[#allocation11 + $0x320] sm:$0xff]
    %v2578 = vld [vmem:[#allocation11 + $0x328] sm:$0xff]
    %v2579 = vld [vmem:[#allocation11 + $0x330] sm:$0xff]
    %v2580 = vld [vmem:[#allocation11 + $0x338] sm:$0xff]
    %v2581 = vld [vmem:[#allocation11 + $0x340] sm:$0xff]
    %v2582 = vld [vmem:[#allocation11 + $0x348] sm:$0xff]
    %v2583 = vld [vmem:[#allocation11 + $0x350] sm:$0xff]
    %v2584 = vld [vmem:[#allocation11 + $0x358] sm:$0xff]
    %v2585 = vld [vmem:[#allocation11 + $0x360] sm:$0xff]
    %v2586 = vld [vmem:[#allocation11 + $0x368] sm:$0xff]
    %v2587 = vld [vmem:[#allocation11 + $0x370] sm:$0xff]
    %v2588 = vld [vmem:[#allocation11 + $0x378] sm:$0xff]
    %v2589 = vld [vmem:[#allocation11 + $0x380] sm:$0xff]
    %v2590 = vld [vmem:[#allocation11 + $0x388] sm:$0xff]
    %v2591 = vld [vmem:[#allocation11 + $0x390] sm:$0xff]
    %v2592 = vld [vmem:[#allocation11 + $0x398] sm:$0xff]
    %v2593 = vld [vmem:[#allocation11 + $0x3a0] sm:$0xff]
    %v2594 = vld [vmem:[#allocation11 + $0x3a8] sm:$0xff]
    %v2595 = vld [vmem:[#allocation11 + $0x3b0] sm:$0xff]
    %v2596 = vld [vmem:[#allocation11 + $0x3b8] sm:$0xff]
    %v2597 = vld [vmem:[#allocation11 + $0x3c0] sm:$0xff]
    %v2598 = vld [vmem:[#allocation11 + $0x3c8] sm:$0xff]
    %v2599 = vld [vmem:[#allocation11 + $0x3d0] sm:$0xff]
    %v2600 = vld [vmem:[#allocation11 + $0x3d8] sm:$0xff]
    %v2601 = vld [vmem:[#allocation11 + $0x3e0] sm:$0xff]
    %v2602 = vld [vmem:[#allocation11 + $0x3e8] sm:$0xff]
    %v2603 = vld [vmem:[#allocation11 + $0x3f0] sm:$0xff]
    %v2604 = vld [vmem:[#allocation11 + $0x3f8] sm:$0xff]
    %v2605 = vld [vmem:[#allocation11 + $0x400] sm:$0xff]
    %v2606 = vld [vmem:[#allocation11 + $0x408] sm:$0xff]
    %v2607 = vld [vmem:[#allocation11 + $0x410] sm:$0xff]
    %v2608 = vld [vmem:[#allocation11 + $0x418] sm:$0xff]
    %v2609 = vld [vmem:[#allocation11 + $0x420] sm:$0xff]
    %v2610 = vld [vmem:[#allocation11 + $0x428] sm:$0xff]
    %v2611 = vld [vmem:[#allocation11 + $0x430] sm:$0xff]
    %v2612 = vld [vmem:[#allocation11 + $0x438] sm:$0xff]
    %v2613 = vld [vmem:[#allocation11 + $0x440] sm:$0xff]
    %v2614 = vld [vmem:[#allocation11 + $0x448] sm:$0xff]
    %v2615 = vld [vmem:[#allocation11 + $0x450] sm:$0xff]
    %v2616 = vld [vmem:[#allocation11 + $0x458] sm:$0xff]
    %v2617 = vld [vmem:[#allocation11 + $0x460] sm:$0xff]
    %v2618 = vld [vmem:[#allocation11 + $0x468] sm:$0xff]
    %v2619 = vld [vmem:[#allocation11 + $0x470] sm:$0xff]
    %v2620 = vld [vmem:[#allocation11 + $0x478] sm:$0xff]
    %v2621 = vld [vmem:[#allocation11 + $0x480] sm:$0xff]
    %v2622 = vld [vmem:[#allocation11 + $0x488] sm:$0xff]
    %v2623 = vld [vmem:[#allocation11 + $0x490] sm:$0xff]
    %v2624 = vld [vmem:[#allocation11 + $0x498] sm:$0xff]
    %v2625 = vld [vmem:[#allocation11 + $0x4a0] sm:$0xff]
    %v2626 = vld [vmem:[#allocation11 + $0x4a8] sm:$0xff]
    %v2627 = vld [vmem:[#allocation11 + $0x4b0] sm:$0xff]
    %v2628 = vld [vmem:[#allocation11 + $0x4b8] sm:$0xff]
    %v2629 = vld [vmem:[#allocation11 + $0x4c0] sm:$0xff]
    %v2630 = vld [vmem:[#allocation11 + $0x4c8] sm:$0xff]
    %v2631 = vld [vmem:[#allocation11 + $0x4d0] sm:$0xff]
    %v2632 = vld [vmem:[#allocation11 + $0x4d8] sm:$0xff]
    %v2633 = vld [vmem:[#allocation11 + $0x4e0] sm:$0xff]
    %v2634 = vld [vmem:[#allocation11 + $0x4e8] sm:$0xff]
    %v2635 = vld [vmem:[#allocation11 + $0x4f0] sm:$0xff]
    %v2636 = vld [vmem:[#allocation11 + $0x4f8] sm:$0xff]
    %v2637 = vld [vmem:[#allocation11 + $0x500] sm:$0xff]
    %v2638 = vld [vmem:[#allocation11 + $0x508] sm:$0xff]
    %v2639 = vld [vmem:[#allocation11 + $0x510] sm:$0xff]
    %v2640 = vld [vmem:[#allocation11 + $0x518] sm:$0xff]
    %v2641 = vld [vmem:[#allocation11 + $0x520] sm:$0xff]
    %v2642 = vld [vmem:[#allocation11 + $0x528] sm:$0xff]
    %v2643 = vld [vmem:[#allocation11 + $0x530] sm:$0xff]
    %v2644 = vld [vmem:[#allocation11 + $0x538] sm:$0xff]
    %v2645 = vld [vmem:[#allocation11 + $0x540] sm:$0xff]
    %v2646 = vld [vmem:[#allocation11 + $0x548] sm:$0xff]
    %v2647 = vld [vmem:[#allocation11 + $0x550] sm:$0xff]
    %v2648 = vld [vmem:[#allocation11 + $0x558] sm:$0xff]
    %v2649 = vld [vmem:[#allocation11 + $0x560] sm:$0xff]
    %v2650 = vld [vmem:[#allocation11 + $0x568] sm:$0xff]
    %v2651 = vld [vmem:[#allocation11 + $0x570] sm:$0xff]
    %v2652 = vld [vmem:[#allocation11 + $0x578] sm:$0xff]
    %v2653 = vld [vmem:[#allocation11 + $0x580] sm:$0xff]
    %v2654 = vld [vmem:[#allocation11 + $0x588] sm:$0xff]
    %v2655 = vld [vmem:[#allocation11 + $0x590] sm:$0xff]
    %v2656 = vld [vmem:[#allocation11 + $0x598] sm:$0xff]
    %v2657 = vld [vmem:[#allocation11 + $0x5a0] sm:$0xff]
    %v2658 = vld [vmem:[#allocation11 + $0x5a8] sm:$0xff]
    %v2659 = vld [vmem:[#allocation11 + $0x5b0] sm:$0xff]
    %v2660 = vld [vmem:[#allocation11 + $0x5b8] sm:$0xff]
    %v2661 = vld [vmem:[#allocation11 + $0x5c0] sm:$0xff]
    %v2662 = vld [vmem:[#allocation11 + $0x5c8] sm:$0xff]
    %v2663 = vld [vmem:[#allocation11 + $0x5d0] sm:$0xff]
    %v2664 = vld [vmem:[#allocation11 + $0x5d8] sm:$0xff]
    %v2665 = vld [vmem:[#allocation11 + $0x5e0] sm:$0xff]
    %v2666 = vld [vmem:[#allocation11 + $0x5e8] sm:$0xff]
    %v2667 = vld [vmem:[#allocation11 + $0x5f0] sm:$0xff]
    %v2668 = vld [vmem:[#allocation11 + $0x5f8] sm:$0xff]
    %v2669 = vld [vmem:[#allocation11 + $0x600] sm:$0xff]
    %v2670 = vld [vmem:[#allocation11 + $0x608] sm:$0xff]
    %v2671 = vld [vmem:[#allocation11 + $0x610] sm:$0xff]
    %v2672 = vld [vmem:[#allocation11 + $0x618] sm:$0xff]
    %v2673 = vld [vmem:[#allocation11 + $0x620] sm:$0xff]
    %v2674 = vld [vmem:[#allocation11 + $0x628] sm:$0xff]
    %v2675 = vld [vmem:[#allocation11 + $0x630] sm:$0xff]
    %v2676 = vld [vmem:[#allocation11 + $0x638] sm:$0xff]
    %v2677 = vld [vmem:[#allocation11 + $0x640] sm:$0xff]
    %v2678 = vld [vmem:[#allocation11 + $0x648] sm:$0xff]
    %v2679 = vld [vmem:[#allocation11 + $0x650] sm:$0xff]
    %v2680 = vld [vmem:[#allocation11 + $0x658] sm:$0xff]
    %v2681 = vld [vmem:[#allocation11 + $0x660] sm:$0xff]
    %v2682 = vld [vmem:[#allocation11 + $0x668] sm:$0xff]
    %v2683 = vld [vmem:[#allocation11 + $0x670] sm:$0xff]
    %v2684 = vld [vmem:[#allocation11 + $0x678] sm:$0xff]
    %v2685 = vld [vmem:[#allocation11 + $0x680] sm:$0xff]
    %v2686 = vld [vmem:[#allocation11 + $0x688] sm:$0xff]
    %v2687 = vld [vmem:[#allocation11 + $0x690] sm:$0xff]
    %v2688 = vld [vmem:[#allocation11 + $0x698] sm:$0xff]
    %v2689 = vld [vmem:[#allocation11 + $0x6a0] sm:$0xff]
    %v2690 = vld [vmem:[#allocation11 + $0x6a8] sm:$0xff]
    %v2691 = vld [vmem:[#allocation11 + $0x6b0] sm:$0xff]
    %v2692 = vld [vmem:[#allocation11 + $0x6b8] sm:$0xff]
    %v2693 = vld [vmem:[#allocation11 + $0x6c0] sm:$0xff]
    %v2694 = vld [vmem:[#allocation11 + $0x6c8] sm:$0xff]
    %v2695 = vld [vmem:[#allocation11 + $0x6d0] sm:$0xff]
    %v2696 = vld [vmem:[#allocation11 + $0x6d8] sm:$0xff]
    %v2697 = vld [vmem:[#allocation11 + $0x6e0] sm:$0xff]
    %v2698 = vld [vmem:[#allocation11 + $0x6e8] sm:$0xff]
    %v2699 = vld [vmem:[#allocation11 + $0x6f0] sm:$0xff]
    %v2700 = vld [vmem:[#allocation11 + $0x6f8] sm:$0xff]
    %v2701 = vld [vmem:[#allocation11 + $0x700] sm:$0xff]
    %v2702 = vld [vmem:[#allocation11 + $0x708] sm:$0xff]
    %v2703 = vld [vmem:[#allocation11 + $0x710] sm:$0xff]
    %v2704 = vld [vmem:[#allocation11 + $0x718] sm:$0xff]
    %v2705 = vld [vmem:[#allocation11 + $0x720] sm:$0xff]
    %v2706 = vld [vmem:[#allocation11 + $0x728] sm:$0xff]
    %v2707 = vld [vmem:[#allocation11 + $0x730] sm:$0xff]
    %v2708 = vld [vmem:[#allocation11 + $0x738] sm:$0xff]
    %v2709 = vld [vmem:[#allocation11 + $0x740] sm:$0xff]
    %v2710 = vld [vmem:[#allocation11 + $0x748] sm:$0xff]
    %v2711 = vld [vmem:[#allocation11 + $0x750] sm:$0xff]
    %v2712 = vld [vmem:[#allocation11 + $0x758] sm:$0xff]
    %v2713 = vld [vmem:[#allocation11 + $0x760] sm:$0xff]
    %v2714 = vld [vmem:[#allocation11 + $0x768] sm:$0xff]
    %v2715 = vld [vmem:[#allocation11 + $0x770] sm:$0xff]
    %v2716 = vld [vmem:[#allocation11 + $0x778] sm:$0xff]
    %v2717 = vld [vmem:[#allocation11 + $0x780] sm:$0xff]
    %v2718 = vld [vmem:[#allocation11 + $0x788] sm:$0xff]
    %v2719 = vld [vmem:[#allocation11 + $0x790] sm:$0xff]
    %v2720 = vld [vmem:[#allocation11 + $0x798] sm:$0xff]
    %v2721 = vld [vmem:[#allocation11 + $0x7a0] sm:$0xff]
    %v2722 = vld [vmem:[#allocation11 + $0x7a8] sm:$0xff]
    %v2723 = vld [vmem:[#allocation11 + $0x7b0] sm:$0xff]
    %v2724 = vld [vmem:[#allocation11 + $0x7b8] sm:$0xff]
    %v2725 = vld [vmem:[#allocation11 + $0x7c0] sm:$0xff]
    %v2726 = vld [vmem:[#allocation11 + $0x7c8] sm:$0xff]
    %v2727 = vld [vmem:[#allocation11 + $0x7d0] sm:$0xff]
    %v2728 = vld [vmem:[#allocation11 + $0x7d8] sm:$0xff]
    %v2729 = vld [vmem:[#allocation11 + $0x7e0] sm:$0xff]
    %v2730 = vld [vmem:[#allocation11 + $0x7e8] sm:$0xff]
    %v2731 = vld [vmem:[#allocation11 + $0x7f0] sm:$0xff]
    %v2732 = vld [vmem:[#allocation11 + $0x7f8] sm:$0xff]
    %v2733 = vld [vmem:[%s45] sm:$0xff]
    %v2734 = vld [vmem:[%s45 + $0x8] sm:$0xff]
    %v2735 = vld [vmem:[#allocation13] sm:$0xff]
    %v2736 = vld [vmem:[#allocation13 + $0x8] sm:$0xff]
    %v2737 = vld [vmem:[#allocation13 + $0x10] sm:$0xff]
    %v2738 = vld [vmem:[#allocation13 + $0x18] sm:$0xff]
    %v2739 = vld [vmem:[#allocation13 + $0x20] sm:$0xff]
    %v2740 = vld [vmem:[#allocation13 + $0x28] sm:$0xff]
    %v2741 = vld [vmem:[#allocation13 + $0x30] sm:$0xff]
    %v2742 = vld [vmem:[#allocation13 + $0x38] sm:$0xff]
    %v2743 = vld [vmem:[#allocation13 + $0x40] sm:$0xff]
    %v2744 = vld [vmem:[#allocation13 + $0x48] sm:$0xff]
    %v2745 = vld [vmem:[#allocation13 + $0x50] sm:$0xff]
    %v2746 = vld [vmem:[#allocation13 + $0x58] sm:$0xff]
    %v2747 = vld [vmem:[#allocation13 + $0x60] sm:$0xff]
    %v2748 = vld [vmem:[#allocation13 + $0x68] sm:$0xff]
    %v2749 = vld [vmem:[#allocation13 + $0x70] sm:$0xff]
    %v2750 = vld [vmem:[#allocation13 + $0x78] sm:$0xff]
    %v2751 = vld [vmem:[#allocation13 + $0x80] sm:$0xff]
    %v2752 = vld [vmem:[#allocation13 + $0x88] sm:$0xff]
    %v2753 = vld [vmem:[#allocation13 + $0x90] sm:$0xff]
    %v2754 = vld [vmem:[#allocation13 + $0x98] sm:$0xff]
    %v2755 = vld [vmem:[#allocation13 + $0xa0] sm:$0xff]
    %v2756 = vld [vmem:[#allocation13 + $0xa8] sm:$0xff]
    %v2757 = vld [vmem:[#allocation13 + $0xb0] sm:$0xff]
    %v2758 = vld [vmem:[#allocation13 + $0xb8] sm:$0xff]
    %v2759 = vld [vmem:[#allocation13 + $0xc0] sm:$0xff]
    %v2760 = vld [vmem:[#allocation13 + $0xc8] sm:$0xff]
    %v2761 = vld [vmem:[#allocation13 + $0xd0] sm:$0xff]
    %v2762 = vld [vmem:[#allocation13 + $0xd8] sm:$0xff]
    %v2763 = vld [vmem:[#allocation13 + $0xe0] sm:$0xff]
    %v2764 = vld [vmem:[#allocation13 + $0xe8] sm:$0xff]
    %v2765 = vld [vmem:[#allocation13 + $0xf0] sm:$0xff]
    %v2766 = vld [vmem:[#allocation13 + $0xf8] sm:$0xff]
    %v2767 = vld [vmem:[#allocation13 + $0x100] sm:$0xff]
    %v2768 = vld [vmem:[#allocation13 + $0x108] sm:$0xff]
    %v2769 = vld [vmem:[#allocation13 + $0x110] sm:$0xff]
    %v2770 = vld [vmem:[#allocation13 + $0x118] sm:$0xff]
    %v2771 = vld [vmem:[#allocation13 + $0x120] sm:$0xff]
    %v2772 = vld [vmem:[#allocation13 + $0x128] sm:$0xff]
    %v2773 = vld [vmem:[#allocation13 + $0x130] sm:$0xff]
    %v2774 = vld [vmem:[#allocation13 + $0x138] sm:$0xff]
    %v2775 = vld [vmem:[#allocation13 + $0x140] sm:$0xff]
    %v2776 = vld [vmem:[#allocation13 + $0x148] sm:$0xff]
    %v2777 = vld [vmem:[#allocation13 + $0x150] sm:$0xff]
    %v2778 = vld [vmem:[#allocation13 + $0x158] sm:$0xff]
    %v2779 = vld [vmem:[#allocation13 + $0x160] sm:$0xff]
    %v2780 = vld [vmem:[#allocation13 + $0x168] sm:$0xff]
    %v2781 = vld [vmem:[#allocation13 + $0x170] sm:$0xff]
    %v2782 = vld [vmem:[#allocation13 + $0x178] sm:$0xff]
    %v2783 = vld [vmem:[#allocation13 + $0x180] sm:$0xff]
    %v2784 = vld [vmem:[#allocation13 + $0x188] sm:$0xff]
    %v2785 = vld [vmem:[#allocation13 + $0x190] sm:$0xff]
    %v2786 = vld [vmem:[#allocation13 + $0x198] sm:$0xff]
    %v2787 = vld [vmem:[#allocation13 + $0x1a0] sm:$0xff]
    %v2788 = vld [vmem:[#allocation13 + $0x1a8] sm:$0xff]
    %v2789 = vld [vmem:[#allocation13 + $0x1b0] sm:$0xff]
    %v2790 = vld [vmem:[#allocation13 + $0x1b8] sm:$0xff]
    %v2791 = vld [vmem:[#allocation13 + $0x1c0] sm:$0xff]
    %v2792 = vld [vmem:[#allocation13 + $0x1c8] sm:$0xff]
    %v2793 = vld [vmem:[#allocation13 + $0x1d0] sm:$0xff]
    %v2794 = vld [vmem:[#allocation13 + $0x1d8] sm:$0xff]
    %v2795 = vld [vmem:[#allocation13 + $0x1e0] sm:$0xff]
    %v2796 = vld [vmem:[#allocation13 + $0x1e8] sm:$0xff]
    %v2797 = vld [vmem:[#allocation13 + $0x1f0] sm:$0xff]
    %v2798 = vld [vmem:[#allocation13 + $0x1f8] sm:$0xff]
    %v2799 = vld [vmem:[#allocation13 + $0x200] sm:$0xff]
    %v2800 = vld [vmem:[#allocation13 + $0x208] sm:$0xff]
    %v2801 = vld [vmem:[#allocation13 + $0x210] sm:$0xff]
    %v2802 = vld [vmem:[#allocation13 + $0x218] sm:$0xff]
    %v2803 = vld [vmem:[#allocation13 + $0x220] sm:$0xff]
    %v2804 = vld [vmem:[#allocation13 + $0x228] sm:$0xff]
    %v2805 = vld [vmem:[#allocation13 + $0x230] sm:$0xff]
    %v2806 = vld [vmem:[#allocation13 + $0x238] sm:$0xff]
    %v2807 = vld [vmem:[#allocation13 + $0x240] sm:$0xff]
    %v2808 = vld [vmem:[#allocation13 + $0x248] sm:$0xff]
    %v2809 = vld [vmem:[#allocation13 + $0x250] sm:$0xff]
    %v2810 = vld [vmem:[#allocation13 + $0x258] sm:$0xff]
    %v2811 = vld [vmem:[#allocation13 + $0x260] sm:$0xff]
    %v2812 = vld [vmem:[#allocation13 + $0x268] sm:$0xff]
    %v2813 = vld [vmem:[#allocation13 + $0x270] sm:$0xff]
    %v2814 = vld [vmem:[#allocation13 + $0x278] sm:$0xff]
    %v2815 = vld [vmem:[#allocation13 + $0x280] sm:$0xff]
    %v2816 = vld [vmem:[#allocation13 + $0x288] sm:$0xff]
    %v2817 = vld [vmem:[#allocation13 + $0x290] sm:$0xff]
    %v2818 = vld [vmem:[#allocation13 + $0x298] sm:$0xff]
    %v2819 = vld [vmem:[#allocation13 + $0x2a0] sm:$0xff]
    %v2820 = vld [vmem:[#allocation13 + $0x2a8] sm:$0xff]
    %v2821 = vld [vmem:[#allocation13 + $0x2b0] sm:$0xff]
    %v2822 = vld [vmem:[#allocation13 + $0x2b8] sm:$0xff]
    %v2823 = vld [vmem:[#allocation13 + $0x2c0] sm:$0xff]
    %v2824 = vld [vmem:[#allocation13 + $0x2c8] sm:$0xff]
    %v2825 = vld [vmem:[#allocation13 + $0x2d0] sm:$0xff]
    %v2826 = vld [vmem:[#allocation13 + $0x2d8] sm:$0xff]
    %v2827 = vld [vmem:[#allocation13 + $0x2e0] sm:$0xff]
    %v2828 = vld [vmem:[#allocation13 + $0x2e8] sm:$0xff]
    %v2829 = vld [vmem:[#allocation13 + $0x2f0] sm:$0xff]
    %v2830 = vld [vmem:[#allocation13 + $0x2f8] sm:$0xff]
    %v2831 = vld [vmem:[#allocation13 + $0x300] sm:$0xff]
    %v2832 = vld [vmem:[#allocation13 + $0x308] sm:$0xff]
    %v2833 = vld [vmem:[#allocation13 + $0x310] sm:$0xff]
    %v2834 = vld [vmem:[#allocation13 + $0x318] sm:$0xff]
    %v2835 = vld [vmem:[#allocation13 + $0x320] sm:$0xff]
    %v2836 = vld [vmem:[#allocation13 + $0x328] sm:$0xff]
    %v2837 = vld [vmem:[#allocation13 + $0x330] sm:$0xff]
    %v2838 = vld [vmem:[#allocation13 + $0x338] sm:$0xff]
    %v2839 = vld [vmem:[#allocation13 + $0x340] sm:$0xff]
    %v2840 = vld [vmem:[#allocation13 + $0x348] sm:$0xff]
    %v2841 = vld [vmem:[#allocation13 + $0x350] sm:$0xff]
    %v2842 = vld [vmem:[#allocation13 + $0x358] sm:$0xff]
    %v2843 = vld [vmem:[#allocation13 + $0x360] sm:$0xff]
    %v2844 = vld [vmem:[#allocation13 + $0x368] sm:$0xff]
    %v2845 = vld [vmem:[#allocation13 + $0x370] sm:$0xff]
    %v2846 = vld [vmem:[#allocation13 + $0x378] sm:$0xff]
    %v2847 = vld [vmem:[#allocation13 + $0x380] sm:$0xff]
    %v2848 = vld [vmem:[#allocation13 + $0x388] sm:$0xff]
    %v2849 = vld [vmem:[#allocation13 + $0x390] sm:$0xff]
    %v2850 = vld [vmem:[#allocation13 + $0x398] sm:$0xff]
    %v2851 = vld [vmem:[#allocation13 + $0x3a0] sm:$0xff]
    %v2852 = vld [vmem:[#allocation13 + $0x3a8] sm:$0xff]
    %v2853 = vld [vmem:[#allocation13 + $0x3b0] sm:$0xff]
    %v2854 = vld [vmem:[#allocation13 + $0x3b8] sm:$0xff]
    %v2855 = vld [vmem:[#allocation13 + $0x3c0] sm:$0xff]
    %v2856 = vld [vmem:[#allocation13 + $0x3c8] sm:$0xff]
    %v2857 = vld [vmem:[#allocation13 + $0x3d0] sm:$0xff]
    %v2858 = vld [vmem:[#allocation13 + $0x3d8] sm:$0xff]
    %v2859 = vld [vmem:[#allocation13 + $0x3e0] sm:$0xff]
    %v2860 = vld [vmem:[#allocation13 + $0x3e8] sm:$0xff]
    %v2861 = vld [vmem:[#allocation13 + $0x3f0] sm:$0xff]
    %v2862 = vld [vmem:[#allocation13 + $0x3f8] sm:$0xff]
    %v2863 = vld [vmem:[#allocation13 + $0x400] sm:$0xff]
    %v2864 = vld [vmem:[#allocation13 + $0x408] sm:$0xff]
    %v2865 = vld [vmem:[#allocation13 + $0x410] sm:$0xff]
    %v2866 = vld [vmem:[#allocation13 + $0x418] sm:$0xff]
    %v2867 = vld [vmem:[#allocation13 + $0x420] sm:$0xff]
    %v2868 = vld [vmem:[#allocation13 + $0x428] sm:$0xff]
    %v2869 = vld [vmem:[#allocation13 + $0x430] sm:$0xff]
    %v2870 = vld [vmem:[#allocation13 + $0x438] sm:$0xff]
    %v2871 = vld [vmem:[#allocation13 + $0x440] sm:$0xff]
    %v2872 = vld [vmem:[#allocation13 + $0x448] sm:$0xff]
    %v2873 = vld [vmem:[#allocation13 + $0x450] sm:$0xff]
    %v2874 = vld [vmem:[#allocation13 + $0x458] sm:$0xff]
    %v2875 = vld [vmem:[#allocation13 + $0x460] sm:$0xff]
    %v2876 = vld [vmem:[#allocation13 + $0x468] sm:$0xff]
    %v2877 = vld [vmem:[#allocation13 + $0x470] sm:$0xff]
    %v2878 = vld [vmem:[#allocation13 + $0x478] sm:$0xff]
    %v2879 = vld [vmem:[#allocation13 + $0x480] sm:$0xff]
    %v2880 = vld [vmem:[#allocation13 + $0x488] sm:$0xff]
    %v2881 = vld [vmem:[#allocation13 + $0x490] sm:$0xff]
    %v2882 = vld [vmem:[#allocation13 + $0x498] sm:$0xff]
    %v2883 = vld [vmem:[#allocation13 + $0x4a0] sm:$0xff]
    %v2884 = vld [vmem:[#allocation13 + $0x4a8] sm:$0xff]
    %v2885 = vld [vmem:[#allocation13 + $0x4b0] sm:$0xff]
    %v2886 = vld [vmem:[#allocation13 + $0x4b8] sm:$0xff]
    %v2887 = vld [vmem:[#allocation13 + $0x4c0] sm:$0xff]
    %v2888 = vld [vmem:[#allocation13 + $0x4c8] sm:$0xff]
    %v2889 = vld [vmem:[#allocation13 + $0x4d0] sm:$0xff]
    %v2890 = vld [vmem:[#allocation13 + $0x4d8] sm:$0xff]
    %v2891 = vld [vmem:[#allocation13 + $0x4e0] sm:$0xff]
    %v2892 = vld [vmem:[#allocation13 + $0x4e8] sm:$0xff]
    %v2893 = vld [vmem:[#allocation13 + $0x4f0] sm:$0xff]
    %v2894 = vld [vmem:[#allocation13 + $0x4f8] sm:$0xff]
    %v2895 = vld [vmem:[#allocation13 + $0x500] sm:$0xff]
    %v2896 = vld [vmem:[#allocation13 + $0x508] sm:$0xff]
    %v2897 = vld [vmem:[#allocation13 + $0x510] sm:$0xff]
    %v2898 = vld [vmem:[#allocation13 + $0x518] sm:$0xff]
    %v2899 = vld [vmem:[#allocation13 + $0x520] sm:$0xff]
    %v2900 = vld [vmem:[#allocation13 + $0x528] sm:$0xff]
    %v2901 = vld [vmem:[#allocation13 + $0x530] sm:$0xff]
    %v2902 = vld [vmem:[#allocation13 + $0x538] sm:$0xff]
    %v2903 = vld [vmem:[#allocation13 + $0x540] sm:$0xff]
    %v2904 = vld [vmem:[#allocation13 + $0x548] sm:$0xff]
    %v2905 = vld [vmem:[#allocation13 + $0x550] sm:$0xff]
    %v2906 = vld [vmem:[#allocation13 + $0x558] sm:$0xff]
    %v2907 = vld [vmem:[#allocation13 + $0x560] sm:$0xff]
    %v2908 = vld [vmem:[#allocation13 + $0x568] sm:$0xff]
    %v2909 = vld [vmem:[#allocation13 + $0x570] sm:$0xff]
    %v2910 = vld [vmem:[#allocation13 + $0x578] sm:$0xff]
    %v2911 = vld [vmem:[#allocation13 + $0x580] sm:$0xff]
    %v2912 = vld [vmem:[#allocation13 + $0x588] sm:$0xff]
    %v2913 = vld [vmem:[#allocation13 + $0x590] sm:$0xff]
    %v2914 = vld [vmem:[#allocation13 + $0x598] sm:$0xff]
    %v2915 = vld [vmem:[#allocation13 + $0x5a0] sm:$0xff]
    %v2916 = vld [vmem:[#allocation13 + $0x5a8] sm:$0xff]
    %v2917 = vld [vmem:[#allocation13 + $0x5b0] sm:$0xff]
    %v2918 = vld [vmem:[#allocation13 + $0x5b8] sm:$0xff]
    %v2919 = vld [vmem:[#allocation13 + $0x5c0] sm:$0xff]
    %v2920 = vld [vmem:[#allocation13 + $0x5c8] sm:$0xff]
    %v2921 = vld [vmem:[#allocation13 + $0x5d0] sm:$0xff]
    %v2922 = vld [vmem:[#allocation13 + $0x5d8] sm:$0xff]
    %v2923 = vld [vmem:[#allocation13 + $0x5e0] sm:$0xff]
    %v2924 = vld [vmem:[#allocation13 + $0x5e8] sm:$0xff]
    %v2925 = vld [vmem:[#allocation13 + $0x5f0] sm:$0xff]
    %v2926 = vld [vmem:[#allocation13 + $0x5f8] sm:$0xff]
    %v2927 = vld [vmem:[#allocation13 + $0x600] sm:$0xff]
    %v2928 = vld [vmem:[#allocation13 + $0x608] sm:$0xff]
    %v2929 = vld [vmem:[#allocation13 + $0x610] sm:$0xff]
    %v2930 = vld [vmem:[#allocation13 + $0x618] sm:$0xff]
    %v2931 = vld [vmem:[#allocation13 + $0x620] sm:$0xff]
    %v2932 = vld [vmem:[#allocation13 + $0x628] sm:$0xff]
    %v2933 = vld [vmem:[#allocation13 + $0x630] sm:$0xff]
    %v2934 = vld [vmem:[#allocation13 + $0x638] sm:$0xff]
    %v2935 = vld [vmem:[#allocation13 + $0x640] sm:$0xff]
    %v2936 = vld [vmem:[#allocation13 + $0x648] sm:$0xff]
    %v2937 = vld [vmem:[#allocation13 + $0x650] sm:$0xff]
    %v2938 = vld [vmem:[#allocation13 + $0x658] sm:$0xff]
    %v2939 = vld [vmem:[#allocation13 + $0x660] sm:$0xff]
    %v2940 = vld [vmem:[#allocation13 + $0x668] sm:$0xff]
    %v2941 = vld [vmem:[#allocation13 + $0x670] sm:$0xff]
    %v2942 = vld [vmem:[#allocation13 + $0x678] sm:$0xff]
    %v2943 = vld [vmem:[#allocation13 + $0x680] sm:$0xff]
    %v2944 = vld [vmem:[#allocation13 + $0x688] sm:$0xff]
    %v2945 = vld [vmem:[#allocation13 + $0x690] sm:$0xff]
    %v2946 = vld [vmem:[#allocation13 + $0x698] sm:$0xff]
    %v2947 = vld [vmem:[#allocation13 + $0x6a0] sm:$0xff]
    %v2948 = vld [vmem:[#allocation13 + $0x6a8] sm:$0xff]
    %v2949 = vld [vmem:[#allocation13 + $0x6b0] sm:$0xff]
    %v2950 = vld [vmem:[#allocation13 + $0x6b8] sm:$0xff]
    %v2951 = vld [vmem:[#allocation13 + $0x6c0] sm:$0xff]
    %v2952 = vld [vmem:[#allocation13 + $0x6c8] sm:$0xff]
    %v2953 = vld [vmem:[#allocation13 + $0x6d0] sm:$0xff]
    %v2954 = vld [vmem:[#allocation13 + $0x6d8] sm:$0xff]
    %v2955 = vld [vmem:[#allocation13 + $0x6e0] sm:$0xff]
    %v2956 = vld [vmem:[#allocation13 + $0x6e8] sm:$0xff]
    %v2957 = vld [vmem:[#allocation13 + $0x6f0] sm:$0xff]
    %v2958 = vld [vmem:[#allocation13 + $0x6f8] sm:$0xff]
    %v2959 = vld [vmem:[#allocation13 + $0x700] sm:$0xff]
    %v2960 = vld [vmem:[#allocation13 + $0x708] sm:$0xff]
    %v2961 = vld [vmem:[#allocation13 + $0x710] sm:$0xff]
    %v2962 = vld [vmem:[#allocation13 + $0x718] sm:$0xff]
    %v2963 = vld [vmem:[#allocation13 + $0x720] sm:$0xff]
    %v2964 = vld [vmem:[#allocation13 + $0x728] sm:$0xff]
    %v2965 = vld [vmem:[#allocation13 + $0x730] sm:$0xff]
    %v2966 = vld [vmem:[#allocation13 + $0x738] sm:$0xff]
    %v2967 = vld [vmem:[#allocation13 + $0x740] sm:$0xff]
    %v2968 = vld [vmem:[#allocation13 + $0x748] sm:$0xff]
    %v2969 = vld [vmem:[#allocation13 + $0x750] sm:$0xff]
    %v2970 = vld [vmem:[#allocation13 + $0x758] sm:$0xff]
    %v2971 = vld [vmem:[#allocation13 + $0x760] sm:$0xff]
    %v2972 = vld [vmem:[#allocation13 + $0x768] sm:$0xff]
    %v2973 = vld [vmem:[#allocation13 + $0x770] sm:$0xff]
    %v2974 = vld [vmem:[#allocation13 + $0x778] sm:$0xff]
    %v2975 = vld [vmem:[#allocation13 + $0x780] sm:$0xff]
    %v2976 = vld [vmem:[#allocation13 + $0x788] sm:$0xff]
    %v2977 = vld [vmem:[#allocation13 + $0x790] sm:$0xff]
    %v2978 = vld [vmem:[#allocation13 + $0x798] sm:$0xff]
    %v2979 = vld [vmem:[#allocation13 + $0x7a0] sm:$0xff]
    %v2980 = vld [vmem:[#allocation13 + $0x7a8] sm:$0xff]
    %v2981 = vld [vmem:[#allocation13 + $0x7b0] sm:$0xff]
    %v2982 = vld [vmem:[#allocation13 + $0x7b8] sm:$0xff]
    %v2983 = vld [vmem:[#allocation13 + $0x7c0] sm:$0xff]
    %v2984 = vld [vmem:[#allocation13 + $0x7c8] sm:$0xff]
    %v2985 = vld [vmem:[#allocation13 + $0x7d0] sm:$0xff]
    %v2986 = vld [vmem:[#allocation13 + $0x7d8] sm:$0xff]
    %v2987 = vld [vmem:[#allocation13 + $0x7e0] sm:$0xff]
    %v2988 = vld [vmem:[#allocation13 + $0x7e8] sm:$0xff]
    %v2989 = vld [vmem:[#allocation13 + $0x7f0] sm:$0xff]
    %v2990 = vld [vmem:[#allocation13 + $0x7f8] sm:$0xff]
    %v2991 = vld [vmem:[%s49] sm:$0x1]
    %v2992 = vld [vmem:[%s51] sm:$0x1]
    %v2993 = vld [vmem:[%s53] sm:$0x1]
    %v2995 = vperm.slane %v2457, 0
    %v2996 = vperm.slane %v2457, 1
    %v2997 = vperm.slane %v2457, 2
    %3001 = vmatpush.msra.mxu0 %v2454
    %3002 = vmatpush.msra.mxu0 %v2451
    %3003 = vmatpush.msra.mxu0 %v2448
    %3004 = vmatpush.msra.mxu0 %v2445
    %3005 = vmatpush.msra.mxu0 %v2442
    %3006 = vmatpush.msra.mxu0 %v2439
    %3007 = vmatpush.msra.mxu0 %v2436
    %3008 = vmatpush.msra.mxu0 %v2433
    %3009 = vmatpush.msra.mxu0 %v2430
    %3010 = vmatpush.msra.mxu0 %v2427
    %3011 = vmatpush.msra.mxu0 %v2424
    %3012 = vmatpush.msra.mxu0 %v2421
    %3013 = vmatpush.msra.mxu0 %v2418
    %3014 = vmatpush.msra.mxu0 %v2415
    %3015 = vmatpush.msra.mxu0 %v2412
    %3016 = vmatpush.msra.mxu0 %v2409
    %3017 = vmatmul.f32.gmra.mxu0 %v2407
    %v3018 = vpop.f32.mrf.mxu0
    %v3019 = vadd.f32 %v2995, %v3018
    %3020 = vmatmul.f32.gmra.mxu0 %v2408
    %v3021 = vpop.f32.mrf.mxu0
    %3022 = vdwg.mxu0
    %3023 = vmatpush.msra.mxu0 %v2455
    %3024 = vmatpush.msra.mxu0 %v2452
    %3025 = vmatpush.msra.mxu0 %v2449
    %3026 = vmatpush.msra.mxu0 %v2446
    %3027 = vmatpush.msra.mxu0 %v2443
    %3028 = vmatpush.msra.mxu0 %v2440
    %3029 = vmatpush.msra.mxu0 %v2437
    %3030 = vmatpush.msra.mxu0 %v2434
    %3031 = vmatpush.msra.mxu0 %v2431
    %3032 = vmatpush.msra.mxu0 %v2428
    %3033 = vmatpush.msra.mxu0 %v2425
    %3034 = vmatpush.msra.mxu0 %v2422
    %3035 = vmatpush.msra.mxu0 %v2419
    %3036 = vmatpush.msra.mxu0 %v2416
    %3037 = vmatpush.msra.mxu0 %v2413
    %3038 = vmatpush.msra.mxu0 %v2410
    %3039 = vmatmul.f32.gmra.mxu0 %v2407
    %v3040 = vpop.f32.mrf.mxu0
    %v3041 = vadd.f32 %v2996, %v3040
    %3042 = vmatmul.f32.gmra.mxu0 %v2408
    %v3043 = vpop.f32.mrf.mxu0
    %v3044 = vadd.f32 %v2996, %v3043
    %3045 = vdwg.mxu0
    %3046 = vmatpush.msra.mxu0 %v2456
    %3047 = vmatpush.msra.mxu0 %v2453
    %3048 = vmatpush.msra.mxu0 %v2450
    %3049 = vmatpush.msra.mxu0 %v2447
    %3050 = vmatpush.msra.mxu0 %v2444
    %3051 = vmatpush.msra.mxu0 %v2441
    %3052 = vmatpush.msra.mxu0 %v2438
    %3053 = vmatpush.msra.mxu0 %v2435
    %3054 = vmatpush.msra.mxu0 %v2432
    %3055 = vmatpush.msra.mxu0 %v2429
    %3056 = vmatpush.msra.mxu0 %v2426
    %3057 = vmatpush.msra.mxu0 %v2423
    %3058 = vmatpush.msra.mxu0 %v2420
    %3059 = vmatpush.msra.mxu0 %v2417
    %3060 = vmatpush.msra.mxu0 %v2414
    %3061 = vmatpush.msra.mxu0 %v2411
    %3062 = vmatmul.f32.gmra.mxu0 %v2407
    %v3063 = vpop.f32.mrf.mxu0
    %v3064 = vadd.f32 %v2997, %v3063
    %3065 = vmatmul.f32.gmra.mxu0 %v2408
    %v3066 = vpop.f32.mrf.mxu0
    %v3067 = vadd.f32 %v2997, %v3066
    %3068 = vdwg.mxu0
    %v3070 = vsel %vm974, %v3019, 0
    %v3073 = vsel %vm974, %v3041, 0
    %v3076 = vsel %vm974, %v3044, 0
    %3078 = vmatpush.xpose.msra.mxu0 0.0
    %3079 = vmatpush.xpose.msra.mxu0 0.0
    %3080 = vmatpush.xpose.msra.mxu0 0.0
    %3081 = vmatpush.xpose.msra.mxu0 0.0
    %3082 = vmatpush.xpose.msra.mxu0 0.0
    %3083 = vmatpush.xpose.msra.mxu0 0.0
    %3084 = vmatpush.xpose.msra.mxu0 0.0
    %3085 = vmatpush.xpose.msra.mxu0 0.0
    %3086 = vmatpush.xpose.msra.mxu0 0.0
    %3087 = vmatpush.xpose.msra.mxu0 0.0
    %3088 = vmatpush.xpose.msra.mxu0 0.0
    %3089 = vmatpush.xpose.msra.mxu0 0.0
    %3090 = vmatpush.xpose.msra.mxu0 0.0
    %3091 = vmatpush.xpose.msra.mxu0 0.0
    %3092 = vmatpush.xpose.msra.mxu0 %v3076
    %3093 = vmatpush.xpose.msra.mxu0 %v3073
    %3094 = vmatmul.f32.gmra.mxu0 %v3070
    %v3095 = vpop.f32.mrf.mxu0
    %v3096 = vadd.f32 0.0, %v3095
    %3097 = vdwg.mxu0
    %v3098 = vmul.f32 %v3096, 0.17677669
    %v3099 = vsel %vm972, %v3098, -1e+30
    %vm3100 = vcmask 123904
    %v3101 = vsel %vm3100, %v3099, -inf
    %3102 = vmax.xlane.f32.xlu0 %v3101
    %v3103 = vpop.xlane.xlu0 %3102
    %v3104 = vsub.f32 %v3099, %v3103
    %v3105 = vmul.f32 %v3104, 1.442695
    %v3106 = vpow.pop %v3105
    %v3107 = vsel %vm3100, %v3106, 0.0
    %3108 = vadd.xlane.f32.xlu0 %v3107
    %v3109 = vpop.xlane.xlu0 %3108
    %v3110 = vrcp.pop %v3109
    %v3111 = vmul.f32 %v3106, %v3110
    %v3113 = vsel %vm1014, %v3111, 0
    %3115 = vmatpush.msra.mxu0 0.0
    %3116 = vmatpush.msra.mxu0 0.0
    %3117 = vmatpush.msra.mxu0 0.0
    %3118 = vmatpush.msra.mxu0 0.0
    %3119 = vmatpush.msra.mxu0 0.0
    %3120 = vmatpush.msra.mxu0 0.0
    %3121 = vmatpush.msra.mxu0 0.0
    %3122 = vmatpush.msra.mxu0 0.0
    %3123 = vmatpush.msra.mxu0 0.0
    %3124 = vmatpush.msra.mxu0 0.0
    %3125 = vmatpush.msra.mxu0 0.0
    %3126 = vmatpush.msra.mxu0 0.0
    %3127 = vmatpush.msra.mxu0 0.0
    %3128 = vmatpush.msra.mxu0 0.0
    %3129 = vmatpush.msra.mxu0 %v3067
    %3130 = vmatpush.msra.mxu0 %v3064
    %3131 = vmatmul.f32.gmra.mxu0 %v3113
    %v3132 = vpop.f32.mrf.mxu0
    %v3133 = vadd.f32 0.0, %v3132
    %3134 = vdwg.mxu0
    %3135 = vrot.lane.b32.xlu0 %v3019, 96
    %v3136 = vpop.permute.xlu0 %3135
    %3137 = vrot.lane.b32.xlu0 %v3041, 96
    %v3138 = vpop.permute.xlu0 %3137
    %3139 = vrot.lane.b32.xlu0 %v3044, 96
    %v3140 = vpop.permute.xlu0 %3139
    %v3141 = vsel %vm974, %v3136, 0
    %v3143 = vsel %vm974, %v3138, 0
    %v3145 = vsel %vm974, %v3140, 0
    %3147 = vmatpush.xpose.msra.mxu0 0.0
    %3148 = vmatpush.xpose.msra.mxu0 0.0
    %3149 = vmatpush.xpose.msra.mxu0 0.0
    %3150 = vmatpush.xpose.msra.mxu0 0.0
    %3151 = vmatpush.xpose.msra.mxu0 0.0
    %3152 = vmatpush.xpose.msra.mxu0 0.0
    %3153 = vmatpush.xpose.msra.mxu0 0.0
    %3154 = vmatpush.xpose.msra.mxu0 0.0
    %3155 = vmatpush.xpose.msra.mxu0 0.0
    %3156 = vmatpush.xpose.msra.mxu0 0.0
    %3157 = vmatpush.xpose.msra.mxu0 0.0
    %3158 = vmatpush.xpose.msra.mxu0 0.0
    %3159 = vmatpush.xpose.msra.mxu0 0.0
    %3160 = vmatpush.xpose.msra.mxu0 0.0
    %3161 = vmatpush.xpose.msra.mxu0 %v3145
    %3162 = vmatpush.xpose.msra.mxu0 %v3143
    %3163 = vmatmul.f32.gmra.mxu0 %v3141
    %v3164 = vpop.f32.mrf.mxu0
    %v3165 = vadd.f32 0.0, %v3164
    %3166 = vdwg.mxu0
    %v3167 = vmul.f32 %v3165, 0.17677669
    %v3168 = vsel %vm972, %v3167, -1e+30
    %v3169 = vsel %vm3100, %v3168, -inf
    %3170 = vmax.xlane.f32.xlu0 %v3169
    %v3171 = vpop.xlane.xlu0 %3170
    %v3172 = vsub.f32 %v3168, %v3171
    %v3173 = vmul.f32 %v3172, 1.442695
    %v3174 = vpow.pop %v3173
    %v3175 = vsel %vm3100, %v3174, 0.0
    %3176 = vadd.xlane.f32.xlu0 %v3175
    %v3177 = vpop.xlane.xlu0 %3176
    %v3178 = vrcp.pop %v3177
    %v3179 = vmul.f32 %v3174, %v3178
    %3182 = vrot.lane.b32.xlu0 %v3064, 96
    %v3183 = vpop.permute.xlu0 %3182
    %3184 = vrot.lane.b32.xlu0 %v3067, 96
    %v3185 = vpop.permute.xlu0 %3184
    %v3189 = vsel %vm1014, %v3179, 0
    %3191 = vmatpush.msra.mxu0 0.0
    %3192 = vmatpush.msra.mxu0 0.0
    %3193 = vmatpush.msra.mxu0 0.0
    %3194 = vmatpush.msra.mxu0 0.0
    %3195 = vmatpush.msra.mxu0 0.0
    %3196 = vmatpush.msra.mxu0 0.0
    %3197 = vmatpush.msra.mxu0 0.0
    %3198 = vmatpush.msra.mxu0 0.0
    %3199 = vmatpush.msra.mxu0 0.0
    %3200 = vmatpush.msra.mxu0 0.0
    %3201 = vmatpush.msra.mxu0 0.0
    %3202 = vmatpush.msra.mxu0 0.0
    %3203 = vmatpush.msra.mxu0 0.0
    %3204 = vmatpush.msra.mxu0 0.0
    %3205 = vmatpush.msra.mxu0 %v3185
    %3206 = vmatpush.msra.mxu0 %v3183
    %3207 = vmatmul.f32.gmra.mxu0 %v3189
    %v3208 = vpop.f32.mrf.mxu0
    %v3209 = vadd.f32 0.0, %v3208
    %3210 = vdwg.mxu0
    %v3212 = vsel %vm974, %v3209, 0
    %3214 = vmatpush.msra.mxu0 0.0
    %3215 = vmatpush.msra.mxu0 0.0
    %3216 = vmatpush.msra.mxu0 0.0
    %3217 = vmatpush.msra.mxu0 0.0
    %3218 = vmatpush.msra.mxu0 0.0
    %3219 = vmatpush.msra.mxu0 0.0
    %3220 = vmatpush.msra.mxu0 0.0
    %3221 = vmatpush.msra.mxu0 0.0
    %3222 = vmatpush.msra.mxu0 0.0
    %3223 = vmatpush.msra.mxu0 0.0
    %3224 = vmatpush.msra.mxu0 0.0
    %3225 = vmatpush.msra.mxu0 0.0
    %3226 = vmatpush.msra.mxu0 %v2465
    %3227 = vmatpush.msra.mxu0 %v2464
    %3228 = vmatpush.msra.mxu0 %v2463
    %3229 = vmatpush.msra.mxu0 %v2462
    %3230 = vmatmul.f32.gmra.mxu0 %v3212
    %v3231 = vpop.f32.mrf.mxu0
    %v3232 = vadd.f32 0.0, %v3231
    %3233 = vdwg.mxu0
    %v3235 = vsel %vm974, %v3133, 0
    %3237 = vmatpush.msra.mxu0 0.0
    %3238 = vmatpush.msra.mxu0 0.0
    %3239 = vmatpush.msra.mxu0 0.0
    %3240 = vmatpush.msra.mxu0 0.0
    %3241 = vmatpush.msra.mxu0 0.0
    %3242 = vmatpush.msra.mxu0 0.0
    %3243 = vmatpush.msra.mxu0 0.0
    %3244 = vmatpush.msra.mxu0 0.0
    %3245 = vmatpush.msra.mxu0 0.0
    %3246 = vmatpush.msra.mxu0 0.0
    %3247 = vmatpush.msra.mxu0 0.0
    %3248 = vmatpush.msra.mxu0 0.0
    %3249 = vmatpush.msra.mxu0 %v2461
    %3250 = vmatpush.msra.mxu0 %v2460
    %3251 = vmatpush.msra.mxu0 %v2459
    %3252 = vmatpush.msra.mxu0 %v2458
    %3253 = vmatmul.f32.gmra.mxu0 %v3235
    %v3254 = vpop.f32.mrf.mxu0
    %v3255 = vadd.f32 %v3232, %v3254
    %3256 = vdwg.mxu0
    %3257 = vrot.lane.b32.xlu0 %v3019, 64
    %v3258 = vpop.permute.xlu0 %3257
    %3259 = vrot.lane.b32.xlu0 %v3041, 64
    %v3260 = vpop.permute.xlu0 %3259
    %3261 = vrot.lane.b32.xlu0 %v3044, 64
    %v3262 = vpop.permute.xlu0 %3261
    %v3263 = vsel %vm974, %v3258, 0
    %v3265 = vsel %vm974, %v3260, 0
    %v3267 = vsel %vm974, %v3262, 0
    %3269 = vmatpush.xpose.msra.mxu0 0.0
    %3270 = vmatpush.xpose.msra.mxu0 0.0
    %3271 = vmatpush.xpose.msra.mxu0 0.0
    %3272 = vmatpush.xpose.msra.mxu0 0.0
    %3273 = vmatpush.xpose.msra.mxu0 0.0
    %3274 = vmatpush.xpose.msra.mxu0 0.0
    %3275 = vmatpush.xpose.msra.mxu0 0.0
    %3276 = vmatpush.xpose.msra.mxu0 0.0
    %3277 = vmatpush.xpose.msra.mxu0 0.0
    %3278 = vmatpush.xpose.msra.mxu0 0.0
    %3279 = vmatpush.xpose.msra.mxu0 0.0
    %3280 = vmatpush.xpose.msra.mxu0 0.0
    %3281 = vmatpush.xpose.msra.mxu0 0.0
    %3282 = vmatpush.xpose.msra.mxu0 0.0
    %3283 = vmatpush.xpose.msra.mxu0 %v3267
    %3284 = vmatpush.xpose.msra.mxu0 %v3265
    %3285 = vmatmul.f32.gmra.mxu0 %v3263
    %v3286 = vpop.f32.mrf.mxu0
    %v3287 = vadd.f32 0.0, %v3286
    %3288 = vdwg.mxu0
    %v3289 = vmul.f32 %v3287, 0.17677669
    %v3290 = vsel %vm972, %v3289, -1e+30
    %v3291 = vsel %vm3100, %v3290, -inf
    %3292 = vmax.xlane.f32.xlu0 %v3291
    %v3293 = vpop.xlane.xlu0 %3292
    %v3294 = vsub.f32 %v3290, %v3293
    %v3295 = vmul.f32 %v3294, 1.442695
    %v3296 = vpow.pop %v3295
    %v3297 = vsel %vm3100, %v3296, 0.0
    %3298 = vadd.xlane.f32.xlu0 %v3297
    %v3299 = vpop.xlane.xlu0 %3298
    %v3300 = vrcp.pop %v3299
    %v3301 = vmul.f32 %v3296, %v3300
    %3302 = vrot.lane.b32.xlu0 %v3064, 64
    %v3303 = vpop.permute.xlu0 %3302
    %3304 = vrot.lane.b32.xlu0 %v3067, 64
    %v3305 = vpop.permute.xlu0 %3304
    %v3309 = vsel %vm1014, %v3301, 0
    %3311 = vmatpush.msra.mxu0 0.0
    %3312 = vmatpush.msra.mxu0 0.0
    %3313 = vmatpush.msra.mxu0 0.0
    %3314 = vmatpush.msra.mxu0 0.0
    %3315 = vmatpush.msra.mxu0 0.0
    %3316 = vmatpush.msra.mxu0 0.0
    %3317 = vmatpush.msra.mxu0 0.0
    %3318 = vmatpush.msra.mxu0 0.0
    %3319 = vmatpush.msra.mxu0 0.0
    %3320 = vmatpush.msra.mxu0 0.0
    %3321 = vmatpush.msra.mxu0 0.0
    %3322 = vmatpush.msra.mxu0 0.0
    %3323 = vmatpush.msra.mxu0 0.0
    %3324 = vmatpush.msra.mxu0 0.0
    %3325 = vmatpush.msra.mxu0 %v3305
    %3326 = vmatpush.msra.mxu0 %v3303
    %3327 = vmatmul.f32.gmra.mxu0 %v3309
    %v3328 = vpop.f32.mrf.mxu0
    %v3329 = vadd.f32 0.0, %v3328
    %3330 = vdwg.mxu0
    %v3332 = vsel %vm974, %v3329, 0
    %3334 = vmatpush.msra.mxu0 0.0
    %3335 = vmatpush.msra.mxu0 0.0
    %3336 = vmatpush.msra.mxu0 0.0
    %3337 = vmatpush.msra.mxu0 0.0
    %3338 = vmatpush.msra.mxu0 0.0
    %3339 = vmatpush.msra.mxu0 0.0
    %3340 = vmatpush.msra.mxu0 0.0
    %3341 = vmatpush.msra.mxu0 0.0
    %3342 = vmatpush.msra.mxu0 0.0
    %3343 = vmatpush.msra.mxu0 0.0
    %3344 = vmatpush.msra.mxu0 0.0
    %3345 = vmatpush.msra.mxu0 0.0
    %3346 = vmatpush.msra.mxu0 %v2469
    %3347 = vmatpush.msra.mxu0 %v2468
    %3348 = vmatpush.msra.mxu0 %v2467
    %3349 = vmatpush.msra.mxu0 %v2466
    %3350 = vmatmul.f32.gmra.mxu0 %v3332
    %v3351 = vpop.f32.mrf.mxu0
    %v3352 = vadd.f32 0.0, %v3351
    %3353 = vdwg.mxu0
    %v3354 = vadd.f32 %v3255, %v3352
    %3355 = vrot.lane.b32.xlu0 %v3019, 32
    %v3356 = vpop.permute.xlu0 %3355
    %3357 = vrot.lane.b32.xlu0 %v3041, 32
    %v3358 = vpop.permute.xlu0 %3357
    %3359 = vrot.lane.b32.xlu0 %v3044, 32
    %v3360 = vpop.permute.xlu0 %3359
    %v3361 = vsel %vm974, %v3356, 0
    %v3363 = vsel %vm974, %v3358, 0
    %v3365 = vsel %vm974, %v3360, 0
    %3367 = vmatpush.xpose.msra.mxu0 0.0
    %3368 = vmatpush.xpose.msra.mxu0 0.0
    %3369 = vmatpush.xpose.msra.mxu0 0.0
    %3370 = vmatpush.xpose.msra.mxu0 0.0
    %3371 = vmatpush.xpose.msra.mxu0 0.0
    %3372 = vmatpush.xpose.msra.mxu0 0.0
    %3373 = vmatpush.xpose.msra.mxu0 0.0
    %3374 = vmatpush.xpose.msra.mxu0 0.0
    %3375 = vmatpush.xpose.msra.mxu0 0.0
    %3376 = vmatpush.xpose.msra.mxu0 0.0
    %3377 = vmatpush.xpose.msra.mxu0 0.0
    %3378 = vmatpush.xpose.msra.mxu0 0.0
    %3379 = vmatpush.xpose.msra.mxu0 0.0
    %3380 = vmatpush.xpose.msra.mxu0 0.0
    %3381 = vmatpush.xpose.msra.mxu0 %v3365
    %3382 = vmatpush.xpose.msra.mxu0 %v3363
    %3383 = vmatmul.f32.gmra.mxu0 %v3361
    %v3384 = vpop.f32.mrf.mxu0
    %v3385 = vadd.f32 0.0, %v3384
    %3386 = vdwg.mxu0
    %v3387 = vmul.f32 %v3385, 0.17677669
    %v3388 = vsel %vm972, %v3387, -1e+30
    %v3389 = vsel %vm3100, %v3388, -inf
    %3390 = vmax.xlane.f32.xlu0 %v3389
    %v3391 = vpop.xlane.xlu0 %3390
    %v3392 = vsub.f32 %v3388, %v3391
    %v3393 = vmul.f32 %v3392, 1.442695
    %v3394 = vpow.pop %v3393
    %v3395 = vsel %vm3100, %v3394, 0.0
    %3396 = vadd.xlane.f32.xlu0 %v3395
    %v3397 = vpop.xlane.xlu0 %3396
    %v3398 = vrcp.pop %v3397
    %v3399 = vmul.f32 %v3394, %v3398
    %3400 = vrot.lane.b32.xlu0 %v3064, 32
    %v3401 = vpop.permute.xlu0 %3400
    %3402 = vrot.lane.b32.xlu0 %v3067, 32
    %v3403 = vpop.permute.xlu0 %3402
    %v3407 = vsel %vm1014, %v3399, 0
    %3409 = vmatpush.msra.mxu0 0.0
    %3410 = vmatpush.msra.mxu0 0.0
    %3411 = vmatpush.msra.mxu0 0.0
    %3412 = vmatpush.msra.mxu0 0.0
    %3413 = vmatpush.msra.mxu0 0.0
    %3414 = vmatpush.msra.mxu0 0.0
    %3415 = vmatpush.msra.mxu0 0.0
    %3416 = vmatpush.msra.mxu0 0.0
    %3417 = vmatpush.msra.mxu0 0.0
    %3418 = vmatpush.msra.mxu0 0.0
    %3419 = vmatpush.msra.mxu0 0.0
    %3420 = vmatpush.msra.mxu0 0.0
    %3421 = vmatpush.msra.mxu0 0.0
    %3422 = vmatpush.msra.mxu0 0.0
    %3423 = vmatpush.msra.mxu0 %v3403
    %3424 = vmatpush.msra.mxu0 %v3401
    %3425 = vmatmul.f32.gmra.mxu0 %v3407
    %v3426 = vpop.f32.mrf.mxu0
    %v3427 = vadd.f32 0.0, %v3426
    %3428 = vdwg.mxu0
    %v3430 = vsel %vm974, %v3427, 0
    %3432 = vmatpush.msra.mxu0 0.0
    %3433 = vmatpush.msra.mxu0 0.0
    %3434 = vmatpush.msra.mxu0 0.0
    %3435 = vmatpush.msra.mxu0 0.0
    %3436 = vmatpush.msra.mxu0 0.0
    %3437 = vmatpush.msra.mxu0 0.0
    %3438 = vmatpush.msra.mxu0 0.0
    %3439 = vmatpush.msra.mxu0 0.0
    %3440 = vmatpush.msra.mxu0 0.0
    %3441 = vmatpush.msra.mxu0 0.0
    %3442 = vmatpush.msra.mxu0 0.0
    %3443 = vmatpush.msra.mxu0 0.0
    %3444 = vmatpush.msra.mxu0 %v2473
    %3445 = vmatpush.msra.mxu0 %v2472
    %3446 = vmatpush.msra.mxu0 %v2471
    %3447 = vmatpush.msra.mxu0 %v2470
    %3448 = vmatmul.f32.gmra.mxu0 %v3430
    %v3449 = vpop.f32.mrf.mxu0
    %v3450 = vadd.f32 0.0, %v3449
    %3451 = vdwg.mxu0
    %v3452 = vadd.f32 %v3354, %v3450
    %v3454 = vperm.slane %v2474, 0
    %v3456 = vadd.f32 %v3452, %v3454
    %v3457 = vadd.f32 %v2407, %v3456
    %vm3458 = vcmask 1041408
    %v3459 = vsel %vm3458, %v3457, 0.0
    %3460 = vadd.xlane.f32.xlu0 %v3459
    %v3461 = vpop.xlane.xlu0 %3460
    %v3462 = vmul.f32 %v3461, %v1505
    %v3463 = vsub.f32 %v3457, %v3462
    %v3464 = vmul.f32 %v3463, %v3463
    %v3465 = vsel %vm3458, %v3464, 0.0
    %3466 = vadd.xlane.f32.xlu0 %v3465
    %v3467 = vpop.xlane.xlu0 %3466
    %v3468 = vmul.f32 %v3467, %v1505
    %v3469 = vadd.f32 %v3468, 1e-05
    %v3470 = vrsqrt.pop %v3469
    %v3471 = vmul.f32 %v3470, %v3469
    %v3472 = vmul.f32 %v3471, %v3470
    %v3473 = vmul.f32 0.5, %v3472
    %v3474 = vsub.f32 1.5, %v3473
    %v3475 = vmul.f32 %v3470, %v3474
    %vm3476 = vweird.f32 %v3469
    %vm3477 = vweird.f32 %v3470
    %vm3478 = vmor %vm3476, %vm3477
    %v3479 = vsel %vm3478, %v3470, %v3475
    %v3480 = vmul.f32 %v3463, %v3479
    %v3482 = vperm.slane %v2475, 0
    %v3484 = vmul.f32 %v3480, %v3482
    %v3486 = vperm.slane %v2476, 0
    %v3488 = vadd.f32 %v3484, %v3486
    %v3491 = vperm.slane %v2733, 0
    %v3492 = vperm.slane %v2733, 1
    %v3493 = vperm.slane %v2733, 2
    %v3494 = vperm.slane %v2733, 3
    %v3495 = vperm.slane %v2733, 4
    %v3496 = vperm.slane %v2733, 5
    %v3497 = vperm.slane %v2733, 6
    %v3498 = vperm.slane %v2733, 7
    %v3499 = vperm.slane %v2734, 0
    %v3500 = vperm.slane %v2734, 1
    %v3501 = vperm.slane %v2734, 2
    %v3502 = vperm.slane %v2734, 3
    %v3503 = vperm.slane %v2734, 4
    %v3504 = vperm.slane %v2734, 5
    %v3505 = vperm.slane %v2734, 6
    %v3506 = vperm.slane %v2734, 7
    %3523 = vmatpush.msra.mxu0 %v2717
    %3524 = vmatpush.msra.mxu0 %v2701
    %3525 = vmatpush.msra.mxu0 %v2685
    %3526 = vmatpush.msra.mxu0 %v2669
    %3527 = vmatpush.msra.mxu0 %v2653
    %3528 = vmatpush.msra.mxu0 %v2637
    %3529 = vmatpush.msra.mxu0 %v2621
    %3530 = vmatpush.msra.mxu0 %v2605
    %3531 = vmatpush.msra.mxu0 %v2589
    %3532 = vmatpush.msra.mxu0 %v2573
    %3533 = vmatpush.msra.mxu0 %v2557
    %3534 = vmatpush.msra.mxu0 %v2541
    %3535 = vmatpush.msra.mxu0 %v2525
    %3536 = vmatpush.msra.mxu0 %v2509
    %3537 = vmatpush.msra.mxu0 %v2493
    %3538 = vmatpush.msra.mxu0 %v2477
    %3539 = vmatmul.f32.gmra.mxu0 %v3488
    %v3540 = vpop.f32.mrf.mxu0
    %v3541 = vadd.f32 %v3491, %v3540
    %3542 = vdwg.mxu0
    %3543 = vmatpush.msra.mxu0 %v2718
    %3544 = vmatpush.msra.mxu0 %v2702
    %3545 = vmatpush.msra.mxu0 %v2686
    %3546 = vmatpush.msra.mxu0 %v2670
    %3547 = vmatpush.msra.mxu0 %v2654
    %3548 = vmatpush.msra.mxu0 %v2638
    %3549 = vmatpush.msra.mxu0 %v2622
    %3550 = vmatpush.msra.mxu0 %v2606
    %3551 = vmatpush.msra.mxu0 %v2590
    %3552 = vmatpush.msra.mxu0 %v2574
    %3553 = vmatpush.msra.mxu0 %v2558
    %3554 = vmatpush.msra.mxu0 %v2542
    %3555 = vmatpush.msra.mxu0 %v2526
    %3556 = vmatpush.msra.mxu0 %v2510
    %3557 = vmatpush.msra.mxu0 %v2494
    %3558 = vmatpush.msra.mxu0 %v2478
    %3559 = vmatmul.f32.gmra.mxu0 %v3488
    %v3560 = vpop.f32.mrf.mxu0
    %v3561 = vadd.f32 %v3492, %v3560
    %3562 = vdwg.mxu0
    %3563 = vmatpush.msra.mxu0 %v2719
    %3564 = vmatpush.msra.mxu0 %v2703
    %3565 = vmatpush.msra.mxu0 %v2687
    %3566 = vmatpush.msra.mxu0 %v2671
    %3567 = vmatpush.msra.mxu0 %v2655
    %3568 = vmatpush.msra.mxu0 %v2639
    %3569 = vmatpush.msra.mxu0 %v2623
    %3570 = vmatpush.msra.mxu0 %v2607
    %3571 = vmatpush.msra.mxu0 %v2591
    %3572 = vmatpush.msra.mxu0 %v2575
    %3573 = vmatpush.msra.mxu0 %v2559
    %3574 = vmatpush.msra.mxu0 %v2543
    %3575 = vmatpush.msra.mxu0 %v2527
    %3576 = vmatpush.msra.mxu0 %v2511
    %3577 = vmatpush.msra.mxu0 %v2495
    %3578 = vmatpush.msra.mxu0 %v2479
    %3579 = vmatmul.f32.gmra.mxu0 %v3488
    %v3580 = vpop.f32.mrf.mxu0
    %v3581 = vadd.f32 %v3493, %v3580
    %3582 = vdwg.mxu0
    %3583 = vmatpush.msra.mxu0 %v2720
    %3584 = vmatpush.msra.mxu0 %v2704
    %3585 = vmatpush.msra.mxu0 %v2688
    %3586 = vmatpush.msra.mxu0 %v2672
    %3587 = vmatpush.msra.mxu0 %v2656
    %3588 = vmatpush.msra.mxu0 %v2640
    %3589 = vmatpush.msra.mxu0 %v2624
    %3590 = vmatpush.msra.mxu0 %v2608
    %3591 = vmatpush.msra.mxu0 %v2592
    %3592 = vmatpush.msra.mxu0 %v2576
    %3593 = vmatpush.msra.mxu0 %v2560
    %3594 = vmatpush.msra.mxu0 %v2544
    %3595 = vmatpush.msra.mxu0 %v2528
    %3596 = vmatpush.msra.mxu0 %v2512
    %3597 = vmatpush.msra.mxu0 %v2496
    %3598 = vmatpush.msra.mxu0 %v2480
    %3599 = vmatmul.f32.gmra.mxu0 %v3488
    %v3600 = vpop.f32.mrf.mxu0
    %v3601 = vadd.f32 %v3494, %v3600
    %3602 = vdwg.mxu0
    %3603 = vmatpush.msra.mxu0 %v2721
    %3604 = vmatpush.msra.mxu0 %v2705
    %3605 = vmatpush.msra.mxu0 %v2689
    %3606 = vmatpush.msra.mxu0 %v2673
    %3607 = vmatpush.msra.mxu0 %v2657
    %3608 = vmatpush.msra.mxu0 %v2641
    %3609 = vmatpush.msra.mxu0 %v2625
    %3610 = vmatpush.msra.mxu0 %v2609
    %3611 = vmatpush.msra.mxu0 %v2593
    %3612 = vmatpush.msra.mxu0 %v2577
    %3613 = vmatpush.msra.mxu0 %v2561
    %3614 = vmatpush.msra.mxu0 %v2545
    %3615 = vmatpush.msra.mxu0 %v2529
    %3616 = vmatpush.msra.mxu0 %v2513
    %3617 = vmatpush.msra.mxu0 %v2497
    %3618 = vmatpush.msra.mxu0 %v2481
    %3619 = vmatmul.f32.gmra.mxu0 %v3488
    %v3620 = vpop.f32.mrf.mxu0
    %v3621 = vadd.f32 %v3495, %v3620
    %3622 = vdwg.mxu0
    %3623 = vmatpush.msra.mxu0 %v2722
    %3624 = vmatpush.msra.mxu0 %v2706
    %3625 = vmatpush.msra.mxu0 %v2690
    %3626 = vmatpush.msra.mxu0 %v2674
    %3627 = vmatpush.msra.mxu0 %v2658
    %3628 = vmatpush.msra.mxu0 %v2642
    %3629 = vmatpush.msra.mxu0 %v2626
    %3630 = vmatpush.msra.mxu0 %v2610
    %3631 = vmatpush.msra.mxu0 %v2594
    %3632 = vmatpush.msra.mxu0 %v2578
    %3633 = vmatpush.msra.mxu0 %v2562
    %3634 = vmatpush.msra.mxu0 %v2546
    %3635 = vmatpush.msra.mxu0 %v2530
    %3636 = vmatpush.msra.mxu0 %v2514
    %3637 = vmatpush.msra.mxu0 %v2498
    %3638 = vmatpush.msra.mxu0 %v2482
    %3639 = vmatmul.f32.gmra.mxu0 %v3488
    %v3640 = vpop.f32.mrf.mxu0
    %v3641 = vadd.f32 %v3496, %v3640
    %3642 = vdwg.mxu0
    %3643 = vmatpush.msra.mxu0 %v2723
    %3644 = vmatpush.msra.mxu0 %v2707
    %3645 = vmatpush.msra.mxu0 %v2691
    %3646 = vmatpush.msra.mxu0 %v2675
    %3647 = vmatpush.msra.mxu0 %v2659
    %3648 = vmatpush.msra.mxu0 %v2643
    %3649 = vmatpush.msra.mxu0 %v2627
    %3650 = vmatpush.msra.mxu0 %v2611
    %3651 = vmatpush.msra.mxu0 %v2595
    %3652 = vmatpush.msra.mxu0 %v2579
    %3653 = vmatpush.msra.mxu0 %v2563
    %3654 = vmatpush.msra.mxu0 %v2547
    %3655 = vmatpush.msra.mxu0 %v2531
    %3656 = vmatpush.msra.mxu0 %v2515
    %3657 = vmatpush.msra.mxu0 %v2499
    %3658 = vmatpush.msra.mxu0 %v2483
    %3659 = vmatmul.f32.gmra.mxu0 %v3488
    %v3660 = vpop.f32.mrf.mxu0
    %v3661 = vadd.f32 %v3497, %v3660
    %3662 = vdwg.mxu0
    %3663 = vmatpush.msra.mxu0 %v2724
    %3664 = vmatpush.msra.mxu0 %v2708
    %3665 = vmatpush.msra.mxu0 %v2692
    %3666 = vmatpush.msra.mxu0 %v2676
    %3667 = vmatpush.msra.mxu0 %v2660
    %3668 = vmatpush.msra.mxu0 %v2644
    %3669 = vmatpush.msra.mxu0 %v2628
    %3670 = vmatpush.msra.mxu0 %v2612
    %3671 = vmatpush.msra.mxu0 %v2596
    %3672 = vmatpush.msra.mxu0 %v2580
    %3673 = vmatpush.msra.mxu0 %v2564
    %3674 = vmatpush.msra.mxu0 %v2548
    %3675 = vmatpush.msra.mxu0 %v2532
    %3676 = vmatpush.msra.mxu0 %v2516
    %3677 = vmatpush.msra.mxu0 %v2500
    %3678 = vmatpush.msra.mxu0 %v2484
    %3679 = vmatmul.f32.gmra.mxu0 %v3488
    %v3680 = vpop.f32.mrf.mxu0
    %v3681 = vadd.f32 %v3498, %v3680
    %3682 = vdwg.mxu0
    %3683 = vmatpush.msra.mxu0 %v2725
    %3684 = vmatpush.msra.mxu0 %v2709
    %3685 = vmatpush.msra.mxu0 %v2693
    %3686 = vmatpush.msra.mxu0 %v2677
    %3687 = vmatpush.msra.mxu0 %v2661
    %3688 = vmatpush.msra.mxu0 %v2645
    %3689 = vmatpush.msra.mxu0 %v2629
    %3690 = vmatpush.msra.mxu0 %v2613
    %3691 = vmatpush.msra.mxu0 %v2597
    %3692 = vmatpush.msra.mxu0 %v2581
    %3693 = vmatpush.msra.mxu0 %v2565
    %3694 = vmatpush.msra.mxu0 %v2549
    %3695 = vmatpush.msra.mxu0 %v2533
    %3696 = vmatpush.msra.mxu0 %v2517
    %3697 = vmatpush.msra.mxu0 %v2501
    %3698 = vmatpush.msra.mxu0 %v2485
    %3699 = vmatmul.f32.gmra.mxu0 %v3488
    %v3700 = vpop.f32.mrf.mxu0
    %v3701 = vadd.f32 %v3499, %v3700
    %3702 = vdwg.mxu0
    %3703 = vmatpush.msra.mxu0 %v2726
    %3704 = vmatpush.msra.mxu0 %v2710
    %3705 = vmatpush.msra.mxu0 %v2694
    %3706 = vmatpush.msra.mxu0 %v2678
    %3707 = vmatpush.msra.mxu0 %v2662
    %3708 = vmatpush.msra.mxu0 %v2646
    %3709 = vmatpush.msra.mxu0 %v2630
    %3710 = vmatpush.msra.mxu0 %v2614
    %3711 = vmatpush.msra.mxu0 %v2598
    %3712 = vmatpush.msra.mxu0 %v2582
    %3713 = vmatpush.msra.mxu0 %v2566
    %3714 = vmatpush.msra.mxu0 %v2550
    %3715 = vmatpush.msra.mxu0 %v2534
    %3716 = vmatpush.msra.mxu0 %v2518
    %3717 = vmatpush.msra.mxu0 %v2502
    %3718 = vmatpush.msra.mxu0 %v2486
    %3719 = vmatmul.f32.gmra.mxu0 %v3488
    %v3720 = vpop.f32.mrf.mxu0
    %v3721 = vadd.f32 %v3500, %v3720
    %3722 = vdwg.mxu0
    %3723 = vmatpush.msra.mxu0 %v2727
    %3724 = vmatpush.msra.mxu0 %v2711
    %3725 = vmatpush.msra.mxu0 %v2695
    %3726 = vmatpush.msra.mxu0 %v2679
    %3727 = vmatpush.msra.mxu0 %v2663
    %3728 = vmatpush.msra.mxu0 %v2647
    %3729 = vmatpush.msra.mxu0 %v2631
    %3730 = vmatpush.msra.mxu0 %v2615
    %3731 = vmatpush.msra.mxu0 %v2599
    %3732 = vmatpush.msra.mxu0 %v2583
    %3733 = vmatpush.msra.mxu0 %v2567
    %3734 = vmatpush.msra.mxu0 %v2551
    %3735 = vmatpush.msra.mxu0 %v2535
    %3736 = vmatpush.msra.mxu0 %v2519
    %3737 = vmatpush.msra.mxu0 %v2503
    %3738 = vmatpush.msra.mxu0 %v2487
    %3739 = vmatmul.f32.gmra.mxu0 %v3488
    %v3740 = vpop.f32.mrf.mxu0
    %v3741 = vadd.f32 %v3501, %v3740
    %3742 = vdwg.mxu0
    %3743 = vmatpush.msra.mxu0 %v2728
    %3744 = vmatpush.msra.mxu0 %v2712
    %3745 = vmatpush.msra.mxu0 %v2696
    %3746 = vmatpush.msra.mxu0 %v2680
    %3747 = vmatpush.msra.mxu0 %v2664
    %3748 = vmatpush.msra.mxu0 %v2648
    %3749 = vmatpush.msra.mxu0 %v2632
    %3750 = vmatpush.msra.mxu0 %v2616
    %3751 = vmatpush.msra.mxu0 %v2600
    %3752 = vmatpush.msra.mxu0 %v2584
    %3753 = vmatpush.msra.mxu0 %v2568
    %3754 = vmatpush.msra.mxu0 %v2552
    %3755 = vmatpush.msra.mxu0 %v2536
    %3756 = vmatpush.msra.mxu0 %v2520
    %3757 = vmatpush.msra.mxu0 %v2504
    %3758 = vmatpush.msra.mxu0 %v2488
    %3759 = vmatmul.f32.gmra.mxu0 %v3488
    %v3760 = vpop.f32.mrf.mxu0
    %v3761 = vadd.f32 %v3502, %v3760
    %3762 = vdwg.mxu0
    %3763 = vmatpush.msra.mxu0 %v2729
    %3764 = vmatpush.msra.mxu0 %v2713
    %3765 = vmatpush.msra.mxu0 %v2697
    %3766 = vmatpush.msra.mxu0 %v2681
    %3767 = vmatpush.msra.mxu0 %v2665
    %3768 = vmatpush.msra.mxu0 %v2649
    %3769 = vmatpush.msra.mxu0 %v2633
    %3770 = vmatpush.msra.mxu0 %v2617
    %3771 = vmatpush.msra.mxu0 %v2601
    %3772 = vmatpush.msra.mxu0 %v2585
    %3773 = vmatpush.msra.mxu0 %v2569
    %3774 = vmatpush.msra.mxu0 %v2553
    %3775 = vmatpush.msra.mxu0 %v2537
    %3776 = vmatpush.msra.mxu0 %v2521
    %3777 = vmatpush.msra.mxu0 %v2505
    %3778 = vmatpush.msra.mxu0 %v2489
    %3779 = vmatmul.f32.gmra.mxu0 %v3488
    %v3780 = vpop.f32.mrf.mxu0
    %v3781 = vadd.f32 %v3503, %v3780
    %3782 = vdwg.mxu0
    %3783 = vmatpush.msra.mxu0 %v2730
    %3784 = vmatpush.msra.mxu0 %v2714
    %3785 = vmatpush.msra.mxu0 %v2698
    %3786 = vmatpush.msra.mxu0 %v2682
    %3787 = vmatpush.msra.mxu0 %v2666
    %3788 = vmatpush.msra.mxu0 %v2650
    %3789 = vmatpush.msra.mxu0 %v2634
    %3790 = vmatpush.msra.mxu0 %v2618
    %3791 = vmatpush.msra.mxu0 %v2602
    %3792 = vmatpush.msra.mxu0 %v2586
    %3793 = vmatpush.msra.mxu0 %v2570
    %3794 = vmatpush.msra.mxu0 %v2554
    %3795 = vmatpush.msra.mxu0 %v2538
    %3796 = vmatpush.msra.mxu0 %v2522
    %3797 = vmatpush.msra.mxu0 %v2506
    %3798 = vmatpush.msra.mxu0 %v2490
    %3799 = vmatmul.f32.gmra.mxu0 %v3488
    %v3800 = vpop.f32.mrf.mxu0
    %v3801 = vadd.f32 %v3504, %v3800
    %3802 = vdwg.mxu0
    %3803 = vmatpush.msra.mxu0 %v2731
    %3804 = vmatpush.msra.mxu0 %v2715
    %3805 = vmatpush.msra.mxu0 %v2699
    %3806 = vmatpush.msra.mxu0 %v2683
    %3807 = vmatpush.msra.mxu0 %v2667
    %3808 = vmatpush.msra.mxu0 %v2651
    %3809 = vmatpush.msra.mxu0 %v2635
    %3810 = vmatpush.msra.mxu0 %v2619
    %3811 = vmatpush.msra.mxu0 %v2603
    %3812 = vmatpush.msra.mxu0 %v2587
    %3813 = vmatpush.msra.mxu0 %v2571
    %3814 = vmatpush.msra.mxu0 %v2555
    %3815 = vmatpush.msra.mxu0 %v2539
    %3816 = vmatpush.msra.mxu0 %v2523
    %3817 = vmatpush.msra.mxu0 %v2507
    %3818 = vmatpush.msra.mxu0 %v2491
    %3819 = vmatmul.f32.gmra.mxu0 %v3488
    %v3820 = vpop.f32.mrf.mxu0
    %v3821 = vadd.f32 %v3505, %v3820
    %3822 = vdwg.mxu0
    %3823 = vmatpush.msra.mxu0 %v2732
    %3824 = vmatpush.msra.mxu0 %v2716
    %3825 = vmatpush.msra.mxu0 %v2700
    %3826 = vmatpush.msra.mxu0 %v2684
    %3827 = vmatpush.msra.mxu0 %v2668
    %3828 = vmatpush.msra.mxu0 %v2652
    %3829 = vmatpush.msra.mxu0 %v2636
    %3830 = vmatpush.msra.mxu0 %v2620
    %3831 = vmatpush.msra.mxu0 %v2604
    %3832 = vmatpush.msra.mxu0 %v2588
    %3833 = vmatpush.msra.mxu0 %v2572
    %3834 = vmatpush.msra.mxu0 %v2556
    %3835 = vmatpush.msra.mxu0 %v2540
    %3836 = vmatpush.msra.mxu0 %v2524
    %3837 = vmatpush.msra.mxu0 %v2508
    %3838 = vmatpush.msra.mxu0 %v2492
    %3839 = vmatmul.f32.gmra.mxu0 %v3488
    %v3840 = vpop.f32.mrf.mxu0
    %v3841 = vadd.f32 %v3506, %v3840
    %3842 = vdwg.mxu0
    %v3843 = vmax.f32 %v3541, 0.0
    %v3844 = vmax.f32 %v3561, 0.0
    %v3845 = vmax.f32 %v3581, 0.0
    %v3846 = vmax.f32 %v3601, 0.0
    %v3847 = vmax.f32 %v3621, 0.0
    %v3848 = vmax.f32 %v3641, 0.0
    %v3849 = vmax.f32 %v3661, 0.0
    %v3850 = vmax.f32 %v3681, 0.0
    %v3851 = vmax.f32 %v3701, 0.0
    %v3852 = vmax.f32 %v3721, 0.0
    %v3853 = vmax.f32 %v3741, 0.0
    %v3854 = vmax.f32 %v3761, 0.0
    %v3855 = vmax.f32 %v3781, 0.0
    %v3856 = vmax.f32 %v3801, 0.0
    %v3857 = vmax.f32 %v3821, 0.0
    %v3858 = vmax.f32 %v3841, 0.0
    %v3860 = vperm.slane %v2991, 0
    %3862 = vmatpush.msra.mxu0 %v2750
    %3863 = vmatpush.msra.mxu0 %v2749
    %3864 = vmatpush.msra.mxu0 %v2748
    %3865 = vmatpush.msra.mxu0 %v2747
    %3866 = vmatpush.msra.mxu0 %v2746
    %3867 = vmatpush.msra.mxu0 %v2745
    %3868 = vmatpush.msra.mxu0 %v2744
    %3869 = vmatpush.msra.mxu0 %v2743
    %3870 = vmatpush.msra.mxu0 %v2742
    %3871 = vmatpush.msra.mxu0 %v2741
    %3872 = vmatpush.msra.mxu0 %v2740
    %3873 = vmatpush.msra.mxu0 %v2739
    %3874 = vmatpush.msra.mxu0 %v2738
    %3875 = vmatpush.msra.mxu0 %v2737
    %3876 = vmatpush.msra.mxu0 %v2736
    %3877 = vmatpush.msra.mxu0 %v2735
    %3878 = vmatmul.f32.gmra.mxu0 %v3843
    %v3879 = vpop.f32.mrf.mxu0
    %v3880 = vadd.f32 %v3860, %v3879
    %3881 = vdwg.mxu0
    %3882 = vmatpush.msra.mxu0 %v2766
    %3883 = vmatpush.msra.mxu0 %v2765
    %3884 = vmatpush.msra.mxu0 %v2764
    %3885 = vmatpush.msra.mxu0 %v2763
    %3886 = vmatpush.msra.mxu0 %v2762
    %3887 = vmatpush.msra.mxu0 %v2761
    %3888 = vmatpush.msra.mxu0 %v2760
    %3889 = vmatpush.msra.mxu0 %v2759
    %3890 = vmatpush.msra.mxu0 %v2758
    %3891 = vmatpush.msra.mxu0 %v2757
    %3892 = vmatpush.msra.mxu0 %v2756
    %3893 = vmatpush.msra.mxu0 %v2755
    %3894 = vmatpush.msra.mxu0 %v2754
    %3895 = vmatpush.msra.mxu0 %v2753
    %3896 = vmatpush.msra.mxu0 %v2752
    %3897 = vmatpush.msra.mxu0 %v2751
    %3898 = vmatmul.f32.gmra.mxu0 %v3844
    %v3899 = vpop.f32.mrf.mxu0
    %v3900 = vadd.f32 %v3880, %v3899
    %3901 = vdwg.mxu0
    %3902 = vmatpush.msra.mxu0 %v2782
    %3903 = vmatpush.msra.mxu0 %v2781
    %3904 = vmatpush.msra.mxu0 %v2780
    %3905 = vmatpush.msra.mxu0 %v2779
    %3906 = vmatpush.msra.mxu0 %v2778
    %3907 = vmatpush.msra.mxu0 %v2777
    %3908 = vmatpush.msra.mxu0 %v2776
    %3909 = vmatpush.msra.mxu0 %v2775
    %3910 = vmatpush.msra.mxu0 %v2774
    %3911 = vmatpush.msra.mxu0 %v2773
    %3912 = vmatpush.msra.mxu0 %v2772
    %3913 = vmatpush.msra.mxu0 %v2771
    %3914 = vmatpush.msra.mxu0 %v2770
    %3915 = vmatpush.msra.mxu0 %v2769
    %3916 = vmatpush.msra.mxu0 %v2768
    %3917 = vmatpush.msra.mxu0 %v2767
    %3918 = vmatmul.f32.gmra.mxu0 %v3845
    %v3919 = vpop.f32.mrf.mxu0
    %v3920 = vadd.f32 %v3900, %v3919
    %3921 = vdwg.mxu0
    %3922 = vmatpush.msra.mxu0 %v2798
    %3923 = vmatpush.msra.mxu0 %v2797
    %3924 = vmatpush.msra.mxu0 %v2796
    %3925 = vmatpush.msra.mxu0 %v2795
    %3926 = vmatpush.msra.mxu0 %v2794
    %3927 = vmatpush.msra.mxu0 %v2793
    %3928 = vmatpush.msra.mxu0 %v2792
    %3929 = vmatpush.msra.mxu0 %v2791
    %3930 = vmatpush.msra.mxu0 %v2790
    %3931 = vmatpush.msra.mxu0 %v2789
    %3932 = vmatpush.msra.mxu0 %v2788
    %3933 = vmatpush.msra.mxu0 %v2787
    %3934 = vmatpush.msra.mxu0 %v2786
    %3935 = vmatpush.msra.mxu0 %v2785
    %3936 = vmatpush.msra.mxu0 %v2784
    %3937 = vmatpush.msra.mxu0 %v2783
    %3938 = vmatmul.f32.gmra.mxu0 %v3846
    %v3939 = vpop.f32.mrf.mxu0
    %v3940 = vadd.f32 %v3920, %v3939
    %3941 = vdwg.mxu0
    %3942 = vmatpush.msra.mxu0 %v2814
    %3943 = vmatpush.msra.mxu0 %v2813
    %3944 = vmatpush.msra.mxu0 %v2812
    %3945 = vmatpush.msra.mxu0 %v2811
    %3946 = vmatpush.msra.mxu0 %v2810
    %3947 = vmatpush.msra.mxu0 %v2809
    %3948 = vmatpush.msra.mxu0 %v2808
    %3949 = vmatpush.msra.mxu0 %v2807
    %3950 = vmatpush.msra.mxu0 %v2806
    %3951 = vmatpush.msra.mxu0 %v2805
    %3952 = vmatpush.msra.mxu0 %v2804
    %3953 = vmatpush.msra.mxu0 %v2803
    %3954 = vmatpush.msra.mxu0 %v2802
    %3955 = vmatpush.msra.mxu0 %v2801
    %3956 = vmatpush.msra.mxu0 %v2800
    %3957 = vmatpush.msra.mxu0 %v2799
    %3958 = vmatmul.f32.gmra.mxu0 %v3847
    %v3959 = vpop.f32.mrf.mxu0
    %v3960 = vadd.f32 %v3940, %v3959
    %3961 = vdwg.mxu0
    %3962 = vmatpush.msra.mxu0 %v2830
    %3963 = vmatpush.msra.mxu0 %v2829
    %3964 = vmatpush.msra.mxu0 %v2828
    %3965 = vmatpush.msra.mxu0 %v2827
    %3966 = vmatpush.msra.mxu0 %v2826
    %3967 = vmatpush.msra.mxu0 %v2825
    %3968 = vmatpush.msra.mxu0 %v2824
    %3969 = vmatpush.msra.mxu0 %v2823
    %3970 = vmatpush.msra.mxu0 %v2822
    %3971 = vmatpush.msra.mxu0 %v2821
    %3972 = vmatpush.msra.mxu0 %v2820
    %3973 = vmatpush.msra.mxu0 %v2819
    %3974 = vmatpush.msra.mxu0 %v2818
    %3975 = vmatpush.msra.mxu0 %v2817
    %3976 = vmatpush.msra.mxu0 %v2816
    %3977 = vmatpush.msra.mxu0 %v2815
    %3978 = vmatmul.f32.gmra.mxu0 %v3848
    %v3979 = vpop.f32.mrf.mxu0
    %v3980 = vadd.f32 %v3960, %v3979
    %3981 = vdwg.mxu0
    %3982 = vmatpush.msra.mxu0 %v2846
    %3983 = vmatpush.msra.mxu0 %v2845
    %3984 = vmatpush.msra.mxu0 %v2844
    %3985 = vmatpush.msra.mxu0 %v2843
    %3986 = vmatpush.msra.mxu0 %v2842
    %3987 = vmatpush.msra.mxu0 %v2841
    %3988 = vmatpush.msra.mxu0 %v2840
    %3989 = vmatpush.msra.mxu0 %v2839
    %3990 = vmatpush.msra.mxu0 %v2838
    %3991 = vmatpush.msra.mxu0 %v2837
    %3992 = vmatpush.msra.mxu0 %v2836
    %3993 = vmatpush.msra.mxu0 %v2835
    %3994 = vmatpush.msra.mxu0 %v2834
    %3995 = vmatpush.msra.mxu0 %v2833
    %3996 = vmatpush.msra.mxu0 %v2832
    %3997 = vmatpush.msra.mxu0 %v2831
    %3998 = vmatmul.f32.gmra.mxu0 %v3849
    %v3999 = vpop.f32.mrf.mxu0
    %v4000 = vadd.f32 %v3980, %v3999
    %4001 = vdwg.mxu0
    %4002 = vmatpush.msra.mxu0 %v2862
    %4003 = vmatpush.msra.mxu0 %v2861
    %4004 = vmatpush.msra.mxu0 %v2860
    %4005 = vmatpush.msra.mxu0 %v2859
    %4006 = vmatpush.msra.mxu0 %v2858
    %4007 = vmatpush.msra.mxu0 %v2857
    %4008 = vmatpush.msra.mxu0 %v2856
    %4009 = vmatpush.msra.mxu0 %v2855
    %4010 = vmatpush.msra.mxu0 %v2854
    %4011 = vmatpush.msra.mxu0 %v2853
    %4012 = vmatpush.msra.mxu0 %v2852
    %4013 = vmatpush.msra.mxu0 %v2851
    %4014 = vmatpush.msra.mxu0 %v2850
    %4015 = vmatpush.msra.mxu0 %v2849
    %4016 = vmatpush.msra.mxu0 %v2848
    %4017 = vmatpush.msra.mxu0 %v2847
    %4018 = vmatmul.f32.gmra.mxu0 %v3850
    %v4019 = vpop.f32.mrf.mxu0
    %v4020 = vadd.f32 %v4000, %v4019
    %4021 = vdwg.mxu0
    %4022 = vmatpush.msra.mxu0 %v2878
    %4023 = vmatpush.msra.mxu0 %v2877
    %4024 = vmatpush.msra.mxu0 %v2876
    %4025 = vmatpush.msra.mxu0 %v2875
    %4026 = vmatpush.msra.mxu0 %v2874
    %4027 = vmatpush.msra.mxu0 %v2873
    %4028 = vmatpush.msra.mxu0 %v2872
    %4029 = vmatpush.msra.mxu0 %v2871
    %4030 = vmatpush.msra.mxu0 %v2870
    %4031 = vmatpush.msra.mxu0 %v2869
    %4032 = vmatpush.msra.mxu0 %v2868
    %4033 = vmatpush.msra.mxu0 %v2867
    %4034 = vmatpush.msra.mxu0 %v2866
    %4035 = vmatpush.msra.mxu0 %v2865
    %4036 = vmatpush.msra.mxu0 %v2864
    %4037 = vmatpush.msra.mxu0 %v2863
    %4038 = vmatmul.f32.gmra.mxu0 %v3851
    %v4039 = vpop.f32.mrf.mxu0
    %v4040 = vadd.f32 %v4020, %v4039
    %4041 = vdwg.mxu0
    %4042 = vmatpush.msra.mxu0 %v2894
    %4043 = vmatpush.msra.mxu0 %v2893
    %4044 = vmatpush.msra.mxu0 %v2892
    %4045 = vmatpush.msra.mxu0 %v2891
    %4046 = vmatpush.msra.mxu0 %v2890
    %4047 = vmatpush.msra.mxu0 %v2889
    %4048 = vmatpush.msra.mxu0 %v2888
    %4049 = vmatpush.msra.mxu0 %v2887
    %4050 = vmatpush.msra.mxu0 %v2886
    %4051 = vmatpush.msra.mxu0 %v2885
    %4052 = vmatpush.msra.mxu0 %v2884
    %4053 = vmatpush.msra.mxu0 %v2883
    %4054 = vmatpush.msra.mxu0 %v2882
    %4055 = vmatpush.msra.mxu0 %v2881
    %4056 = vmatpush.msra.mxu0 %v2880
    %4057 = vmatpush.msra.mxu0 %v2879
    %4058 = vmatmul.f32.gmra.mxu0 %v3852
    %v4059 = vpop.f32.mrf.mxu0
    %v4060 = vadd.f32 %v4040, %v4059
    %4061 = vdwg.mxu0
    %4062 = vmatpush.msra.mxu0 %v2910
    %4063 = vmatpush.msra.mxu0 %v2909
    %4064 = vmatpush.msra.mxu0 %v2908
    %4065 = vmatpush.msra.mxu0 %v2907
    %4066 = vmatpush.msra.mxu0 %v2906
    %4067 = vmatpush.msra.mxu0 %v2905
    %4068 = vmatpush.msra.mxu0 %v2904
    %4069 = vmatpush.msra.mxu0 %v2903
    %4070 = vmatpush.msra.mxu0 %v2902
    %4071 = vmatpush.msra.mxu0 %v2901
    %4072 = vmatpush.msra.mxu0 %v2900
    %4073 = vmatpush.msra.mxu0 %v2899
    %4074 = vmatpush.msra.mxu0 %v2898
    %4075 = vmatpush.msra.mxu0 %v2897
    %4076 = vmatpush.msra.mxu0 %v2896
    %4077 = vmatpush.msra.mxu0 %v2895
    %4078 = vmatmul.f32.gmra.mxu0 %v3853
    %v4079 = vpop.f32.mrf.mxu0
    %v4080 = vadd.f32 %v4060, %v4079
    %4081 = vdwg.mxu0
    %4082 = vmatpush.msra.mxu0 %v2926
    %4083 = vmatpush.msra.mxu0 %v2925
    %4084 = vmatpush.msra.mxu0 %v2924
    %4085 = vmatpush.msra.mxu0 %v2923
    %4086 = vmatpush.msra.mxu0 %v2922
    %4087 = vmatpush.msra.mxu0 %v2921
    %4088 = vmatpush.msra.mxu0 %v2920
    %4089 = vmatpush.msra.mxu0 %v2919
    %4090 = vmatpush.msra.mxu0 %v2918
    %4091 = vmatpush.msra.mxu0 %v2917
    %4092 = vmatpush.msra.mxu0 %v2916
    %4093 = vmatpush.msra.mxu0 %v2915
    %4094 = vmatpush.msra.mxu0 %v2914
    %4095 = vmatpush.msra.mxu0 %v2913
    %4096 = vmatpush.msra.mxu0 %v2912
    %4097 = vmatpush.msra.mxu0 %v2911
    %4098 = vmatmul.f32.gmra.mxu0 %v3854
    %v4099 = vpop.f32.mrf.mxu0
    %v4100 = vadd.f32 %v4080, %v4099
    %4101 = vdwg.mxu0
    %4102 = vmatpush.msra.mxu0 %v2942
    %4103 = vmatpush.msra.mxu0 %v2941
    %4104 = vmatpush.msra.mxu0 %v2940
    %4105 = vmatpush.msra.mxu0 %v2939
    %4106 = vmatpush.msra.mxu0 %v2938
    %4107 = vmatpush.msra.mxu0 %v2937
    %4108 = vmatpush.msra.mxu0 %v2936
    %4109 = vmatpush.msra.mxu0 %v2935
    %4110 = vmatpush.msra.mxu0 %v2934
    %4111 = vmatpush.msra.mxu0 %v2933
    %4112 = vmatpush.msra.mxu0 %v2932
    %4113 = vmatpush.msra.mxu0 %v2931
    %4114 = vmatpush.msra.mxu0 %v2930
    %4115 = vmatpush.msra.mxu0 %v2929
    %4116 = vmatpush.msra.mxu0 %v2928
    %4117 = vmatpush.msra.mxu0 %v2927
    %4118 = vmatmul.f32.gmra.mxu0 %v3855
    %v4119 = vpop.f32.mrf.mxu0
    %v4120 = vadd.f32 %v4100, %v4119
    %4121 = vdwg.mxu0
    %4122 = vmatpush.msra.mxu0 %v2958
    %4123 = vmatpush.msra.mxu0 %v2957
    %4124 = vmatpush.msra.mxu0 %v2956
    %4125 = vmatpush.msra.mxu0 %v2955
    %4126 = vmatpush.msra.mxu0 %v2954
    %4127 = vmatpush.msra.mxu0 %v2953
    %4128 = vmatpush.msra.mxu0 %v2952
    %4129 = vmatpush.msra.mxu0 %v2951
    %4130 = vmatpush.msra.mxu0 %v2950
    %4131 = vmatpush.msra.mxu0 %v2949
    %4132 = vmatpush.msra.mxu0 %v2948
    %4133 = vmatpush.msra.mxu0 %v2947
    %4134 = vmatpush.msra.mxu0 %v2946
    %4135 = vmatpush.msra.mxu0 %v2945
    %4136 = vmatpush.msra.mxu0 %v2944
    %4137 = vmatpush.msra.mxu0 %v2943
    %4138 = vmatmul.f32.gmra.mxu0 %v3856
    %v4139 = vpop.f32.mrf.mxu0
    %v4140 = vadd.f32 %v4120, %v4139
    %4141 = vdwg.mxu0
    %4142 = vmatpush.msra.mxu0 %v2974
    %4143 = vmatpush.msra.mxu0 %v2973
    %4144 = vmatpush.msra.mxu0 %v2972
    %4145 = vmatpush.msra.mxu0 %v2971
    %4146 = vmatpush.msra.mxu0 %v2970
    %4147 = vmatpush.msra.mxu0 %v2969
    %4148 = vmatpush.msra.mxu0 %v2968
    %4149 = vmatpush.msra.mxu0 %v2967
    %4150 = vmatpush.msra.mxu0 %v2966
    %4151 = vmatpush.msra.mxu0 %v2965
    %4152 = vmatpush.msra.mxu0 %v2964
    %4153 = vmatpush.msra.mxu0 %v2963
    %4154 = vmatpush.msra.mxu0 %v2962
    %4155 = vmatpush.msra.mxu0 %v2961
    %4156 = vmatpush.msra.mxu0 %v2960
    %4157 = vmatpush.msra.mxu0 %v2959
    %4158 = vmatmul.f32.gmra.mxu0 %v3857
    %v4159 = vpop.f32.mrf.mxu0
    %v4160 = vadd.f32 %v4140, %v4159
    %4161 = vdwg.mxu0
    %4162 = vmatpush.msra.mxu0 %v2990
    %4163 = vmatpush.msra.mxu0 %v2989
    %4164 = vmatpush.msra.mxu0 %v2988
    %4165 = vmatpush.msra.mxu0 %v2987
    %4166 = vmatpush.msra.mxu0 %v2986
    %4167 = vmatpush.msra.mxu0 %v2985
    %4168 = vmatpush.msra.mxu0 %v2984
    %4169 = vmatpush.msra.mxu0 %v2983
    %4170 = vmatpush.msra.mxu0 %v2982
    %4171 = vmatpush.msra.mxu0 %v2981
    %4172 = vmatpush.msra.mxu0 %v2980
    %4173 = vmatpush.msra.mxu0 %v2979
    %4174 = vmatpush.msra.mxu0 %v2978
    %4175 = vmatpush.msra.mxu0 %v2977
    %4176 = vmatpush.msra.mxu0 %v2976
    %4177 = vmatpush.msra.mxu0 %v2975
    %4178 = vmatmul.f32.gmra.mxu0 %v3858
    %v4179 = vpop.f32.mrf.mxu0
    %v4180 = vadd.f32 %v4160, %v4179
    %4181 = vdwg.mxu0
    %v4182 = vadd.f32 %v3488, %v4180
    %v4183 = vsel %vm3458, %v4182, 0.0
    %4184 = vadd.xlane.f32.xlu0 %v4183
    %v4185 = vpop.xlane.xlu0 %4184
    %v4186 = vmul.f32 %v4185, %v1505
    %v4187 = vsub.f32 %v4182, %v4186
    %v4188 = vmul.f32 %v4187, %v4187
    %v4189 = vsel %vm3458, %v4188, 0.0
    %4190 = vadd.xlane.f32.xlu0 %v4189
    %v4191 = vpop.xlane.xlu0 %4190
    %v4192 = vmul.f32 %v4191, %v1505
    %v4193 = vadd.f32 %v4192, 1e-05
    %v4194 = vrsqrt.pop %v4193
    %v4195 = vmul.f32 %v4194, %v4193
    %v4196 = vmul.f32 %v4195, %v4194
    %v4197 = vmul.f32 0.5, %v4196
    %v4198 = vsub.f32 1.5, %v4197
    %v4199 = vmul.f32 %v4194, %v4198
    %vm4200 = vweird.f32 %v4193
    %vm4201 = vweird.f32 %v4194
    %vm4202 = vmor %vm4200, %vm4201
    %v4203 = vsel %vm4202, %v4194, %v4199
    %v4204 = vmul.f32 %v4187, %v4203
    %v4206 = vperm.slane %v2992, 0
    %v4208 = vmul.f32 %v4204, %v4206
    %v4210 = vperm.slane %v2993, 0
    %v4212 = vadd.f32 %v4208, %v4210
    %v4213 = vld [vmem:[%s55] sm:$0xff]
    %v4214 = vld [vmem:[%s55 + $0x8] sm:$0xff]
    %v4215 = vld [vmem:[%s55 + $0x10] sm:$0xff]
    %v4216 = vld [vmem:[%s55 + $0x18] sm:$0xff]
    %v4217 = vld [vmem:[%s55 + $0x20] sm:$0xff]
    %v4218 = vld [vmem:[%s55 + $0x28] sm:$0xff]
    %v4219 = vld [vmem:[%s55 + $0x30] sm:$0xff]
    %v4220 = vld [vmem:[%s55 + $0x38] sm:$0xff]
    %v4221 = vld [vmem:[%s55 + $0x40] sm:$0xff]
    %v4222 = vld [vmem:[%s55 + $0x48] sm:$0xff]
    %v4223 = vld [vmem:[%s55 + $0x50] sm:$0xff]
    %v4224 = vld [vmem:[%s55 + $0x58] sm:$0xff]
    %v4225 = vld [vmem:[%s55 + $0x60] sm:$0xff]
    %v4226 = vld [vmem:[%s55 + $0x68] sm:$0xff]
    %v4227 = vld [vmem:[%s55 + $0x70] sm:$0xff]
    %v4228 = vld [vmem:[%s55 + $0x78] sm:$0xff]
    %v4229 = vld [vmem:[#allocation2] sm:$0x1]
    %v4231 = vperm.slane %v4229, 0
    %4233 = vmatpush.msra.mxu0 %v4228
    %4234 = vmatpush.msra.mxu0 %v4227
    %4235 = vmatpush.msra.mxu0 %v4226
    %4236 = vmatpush.msra.mxu0 %v4225
    %4237 = vmatpush.msra.mxu0 %v4224
    %4238 = vmatpush.msra.mxu0 %v4223
    %4239 = vmatpush.msra.mxu0 %v4222
    %4240 = vmatpush.msra.mxu0 %v4221
    %4241 = vmatpush.msra.mxu0 %v4220
    %4242 = vmatpush.msra.mxu0 %v4219
    %4243 = vmatpush.msra.mxu0 %v4218
    %4244 = vmatpush.msra.mxu0 %v4217
    %4245 = vmatpush.msra.mxu0 %v4216
    %4246 = vmatpush.msra.mxu0 %v4215
    %4247 = vmatpush.msra.mxu0 %v4214
    %4248 = vmatpush.msra.mxu0 %v4213
    %4249 = vmatmul.f32.gmra.mxu0 %v4212
    %v4250 = vpop.f32.mrf.mxu0
    %v4251 = vadd.f32 %v4231, %v4250
    %4252 = vdwg.mxu0
    %vm4253 = vcmask 1024
    %4254 = vst.msk [vmem:[%s59] sm:$0x3] %vm4253, %v4251
    // Predicated region
    $region146: #{transformer_forward.1} parent=1 // pred_check
      _
    $region147: #{transformer_forward.1} parent=1 // pred_check_branch
      %4256 = sbr.rel (0) target = $region149
    $region148: #{transformer_forward.1} parent=1 // pred_region
      _
    $region149: #{transformer_forward.1} parent=1 // pred_fallthru
      _
    // Predicated region
    $region150: #{transformer_forward.1} parent=1 // pred_check
      _
    $region151: #{transformer_forward.1} parent=1 // pred_check_branch
      %4258 = sbr.rel (0) target = $region153
    $region152: #{transformer_forward.1} parent=1 // pred_region
      _
    $region153: #{transformer_forward.1} parent=1 // pred_fallthru
      _
    %4259 = vsyncpa [#allocation4], 1
    %4260 = vsyncpa [#allocation6], 1
    %4261 = vsyncpa [#allocation9], 1
    %4262 = vsyncpa [#allocation12], 1

</llo_original>
